<compile_context>
chip_gen: v5e
topology: v5e:2x2
jax: 0.10.0
libtpu: 0.0.40
codegen_flags: <defaults>
</compile_context>

<pallas_src>
import functools
import numpy as np
import jax
import jax.numpy as jnp
from jax.experimental import pallas as pl
from jax.experimental.pallas import tpu as pltpu

OUT_LANES = 128     # lane-dense padded output width (>= 1 + K)
HIDDEN_PAD = 1024   # 1000 padded up to a multiple of 128
HEAD_ROWS = 56      # rows of the packed head slab (8 bias rows + 32 + 8 + 8 weight rows)


# ----------------------------- Pallas kernel --------------------------------
def _dnn_kernel(K, x_ref,
                w1_ref, b1_ref, w2q_ref, w2s_ref, b2_ref, w3_ref, head_ref,
                out_ref):
    def dense(h_bf16, w_bf16, b_f32, relu):
        # bf16 x bf16 MXU matmul, f32 accumulation, f32 bias add
        y = jnp.dot(h_bf16, w_bf16, preferred_element_type=jnp.float32) + b_f32
        if relu:
            y = jnp.maximum(y, 0.0)
        return y

    # ---- head slab (one lane-dense [56,128] f32 input, statically sliced) ----
    head = head_ref[...]
    b3 = head[0:1, 0:32]
    bh1 = head[1:2, 0:8]
    bh2 = head[2:3, 0:8]
    bh3 = head[3:4, :]
    wh1 = head[8:40, 0:8].astype(jnp.bfloat16)    # [32, 8]
    wh2 = head[40:48, 0:8].astype(jnp.bfloat16)   # [8, 8]
    wh3 = head[48:56, :].astype(jnp.bfloat16)     # [8, 128]

    # ---- shared MLP (1024-padded hidden, W2 int8 dequantized to bf16) ----
    x = x_ref[...]                                                       # bf16 [bs, N*K]
    h = dense(x, w1_ref[...], b1_ref[...], True).astype(jnp.bfloat16)    # [bs, 1024]
    w2 = (w2q_ref[...].astype(jnp.float32) * w2s_ref[...]).astype(jnp.bfloat16)
    h = dense(h, w2, b2_ref[...], True).astype(jnp.bfloat16)             # [bs, 1024]
    feat = dense(h, w3_ref[...], b3, False).astype(jnp.bfloat16)         # [bs, 32]

    # ---- fused p/rb heads (block-diagonal) ----
    h = dense(feat, wh1, bh1, True).astype(jnp.bfloat16)                 # [bs, 8]
    h = dense(h, wh2, bh2, True).astype(jnp.bfloat16)                    # [bs, 8]
    logits = dense(h, wh3, bh3, False)                                   # [bs, 128] f32

    bs = logits.shape[0]
    lane = jax.lax.broadcasted_iota(jnp.int32, (bs, OUT_LANES), 1)
    is_p = lane == 0
    is_rb = (lane >= 1) & (lane <= K)

    # sigmoid (column 0)
    p_full = jax.nn.sigmoid(logits)

    # masked softmax over columns 1..K  (EXACT divide so rows sum to 1)
    rb_logits = jnp.where(is_rb, logits, -jnp.inf)
    m = jnp.max(rb_logits, axis=-1, keepdims=True)
    e = jnp.where(is_rb, jnp.exp(rb_logits - m), 0.0)
    denom = jnp.sum(e, axis=-1, keepdims=True)
    rb_full = e / denom

    # one lane-dense unmasked store
    out_ref[...] = jnp.where(is_p, p_full, rb_full)


# ----------------------------- wrapper ---------------------------------------
def _round_up(x, m):
    return (x + m - 1) // m * m


def dnn_forward(csi, packed_params, K, batch_block=None):
    """csi: [1, B, N, K]  (matches csi.view(csi.shape[1], -1))  ->  (p [B,1], rb [B,K])."""
    assert 1 + K <= OUT_LANES, "K too large for the 128-lane fused output"
    B = csi.shape[1]
    x = csi.reshape(B, -1).astype(jnp.bfloat16)

    if batch_block is None:
        batch_block = min(256, _round_up(B, 8))     # fill the MXU M dim for large B
    Bp = _round_up(B, batch_block)
    if Bp != B:
        x = jnp.pad(x, ((0, Bp - B), (0, 0)))
    grid = (Bp // batch_block,)

    def resident(shape):
        # same block every batch step -> DMA'd once per call, weights stay VMEM-resident
        nd = len(shape)
        return pl.BlockSpec(shape, lambda b, _nd=nd: (0,) * _nd)

    in_specs = [pl.BlockSpec((batch_block, x.shape[1]), lambda b: (b, 0))]
    in_specs += [resident(a.shape) for a in packed_params]

    out = pl.pallas_call(
        functools.partial(_dnn_kernel, K),
        grid=grid,
        in_specs=in_specs,
        out_specs=pl.BlockSpec((batch_block, OUT_LANES), lambda b: (b, 0)),
        out_shape=jax.ShapeDtypeStruct((Bp, OUT_LANES), jnp.float32),
        compiler_params=pltpu.CompilerParams(
            dimension_semantics=("parallel",),
            vmem_limit_bytes=32 << 20,
        ),
    )(x, *packed_params)

    p = out[:B, 0:1]
    rb = out[:B, 1:1 + K]
    return p, rb


# ----------------------------- params ----------------------------------------
def init_mlp(key, dims):
    """torch.nn.Linear-style init (uniform +-1/sqrt(fan_in)); W stored (in, out), b (1, out)."""
    params = []
    for din, dout in zip(dims[:-1], dims[1:]):
        key, kw, kb = jax.random.split(key, 3)
        bound = 1.0 / np.sqrt(din)
        W = jax.random.uniform(kw, (din, dout), jnp.float32, -bound, bound)
        b = jax.random.uniform(kb, (1, dout), jnp.float32, -bound, bound)
        params += [W, b]
    return params, key


def make_params(N, K, seed=0):
    key = jax.random.PRNGKey(seed)
    key, k_shared = jax.random.split(key)
    key, k_p = jax.random.split(key)
    key, k_rb = jax.random.split(key)
    shared, _ = init_mlp(k_shared, [N * K, 1000, 1000, 32])
    p_head, _ = init_mlp(k_p, [32, 4, 4, 1])
    rb_head, _ = init_mlp(k_rb, [32, 4, 4, K])
    return shared + p_head + rb_head


def pack_params(params, K):
    """Pad hidden 1000->1024, int8-quantize W2, fuse+pack heads into one [56,128] slab."""
    assert 1 + K <= OUT_LANES
    (W1, b1, W2, b2, W3, b3,
     Wp1, bp1, Wp2, bp2, Wp3, bp3,
     Wr1, br1, Wr2, br2, Wr3, br3) = params

    H = W1.shape[1]        # 1000
    HP = HIDDEN_PAD

    # shared MLP, zero-padded (math is identical)
    W1p = jnp.zeros((W1.shape[0], HP), jnp.float32).at[:, :H].set(W1)
    b1p = jnp.zeros((1, HP), jnp.float32).at[:, :H].set(b1)
    W2p = jnp.zeros((HP, HP), jnp.float32).at[:H, :H].set(W2)
    b2p = jnp.zeros((1, HP), jnp.float32).at[:, :H].set(b2)
    W3p = jnp.zeros((HP, W3.shape[1]), jnp.float32).at[:H, :].set(W3)

    # int8 per-output-channel quantization of the dominant 1024x1024 weight
    amax = jnp.max(jnp.abs(W2p), axis=0, keepdims=True)                 # [1, HP]
    w2s = jnp.where(amax > 0, amax / 127.0, 1.0).astype(jnp.float32)    # [1, HP]
    W2q = jnp.clip(jnp.round(W2p / w2s), -127, 127).astype(jnp.int8)    # [HP, HP]

    # fused heads (block-diagonal)
    Wh1 = jnp.concatenate([Wp1, Wr1], axis=1)                           # [32, 8]
    bh1 = jnp.concatenate([bp1, br1], axis=1)                           # [1, 8]
    Wh2 = jnp.zeros((8, 8), jnp.float32).at[:4, :4].set(Wp2).at[4:, 4:].set(Wr2)
    bh2 = jnp.concatenate([bp2, br2], axis=1)                           # [1, 8]
    Wh3 = (jnp.zeros((8, OUT_LANES), jnp.float32)
           .at[:4, 0:1].set(Wp3).at[4:, 1:1 + K].set(Wr3))              # [8, 128]
    bh3 = (jnp.zeros((1, OUT_LANES), jnp.float32)
           .at[:, 0:1].set(bp3).at[:, 1:1 + K].set(br3))                # [1, 128]

    # one lane-dense head slab [56, 128] f32 (bias rows 0..7, then Wh1 / Wh2 / Wh3)
    head = jnp.zeros((HEAD_ROWS, OUT_LANES), jnp.float32)
    head = head.at[0, :32].set(b3[0])
    head = head.at[1, :8].set(bh1[0])
    head = head.at[2, :8].set(bh2[0])
    head = head.at[3, :].set(bh3[0])
    head = head.at[8:40, :8].set(Wh1)
    head = head.at[40:48, :8].set(Wh2)
    head = head.at[48:56, :].set(Wh3)

    return (W1p.astype(jnp.bfloat16), b1p,
            W2q, w2s, b2p,
            W3p.astype(jnp.bfloat16), head)


# ----------------------------- pure-JAX references ----------------------------
def _ref_forward_packed(csi, packed, K):
    """Emulates the kernel arithmetic (bf16 activations, int8+scale W2, f32 accumulation)."""
    (W1, b1, W2q, w2s, b2, W3, head) = packed
    B = csi.shape[1]
    x = csi.reshape(B, -1).astype(jnp.bfloat16)

    def dense(h, W, b, relu):
        y = jnp.dot(h, W, preferred_element_type=jnp.float32) + b
        return jnp.maximum(y, 0.0) if relu else y

    b3 = head[0:1, 0:32]
    bh1 = head[1:2, 0:8]
    bh2 = head[2:3, 0:8]
    bh3 = head[3:4, :]
    Wh1 = head[8:40, 0:8].astype(jnp.bfloat16)
    Wh2 = head[40:48, 0:8].astype(jnp.bfloat16)
    Wh3 = head[48:56, :].astype(jnp.bfloat16)

    h = dense(x, W1, b1, True).astype(jnp.bfloat16)
    W2 = (W2q.astype(jnp.float32) * w2s).astype(jnp.bfloat16)
    h = dense(h, W2, b2, True).astype(jnp.bfloat16)
    feat = dense(h, W3, b3, False).astype(jnp.bfloat16)
    h = dense(feat, Wh1, bh1, True).astype(jnp.bfloat16)
    h = dense(h, Wh2, bh2, True).astype(jnp.bfloat16)
    logits = dense(h, Wh3, bh3, False)
    p = jax.nn.sigmoid(logits[:, 0:1])
    rb = jax.nn.softmax(logits[:, 1:1 + K], axis=1)
    return p, rb


def _ref_forward_f32(csi, params, K):
    """Full-precision semantic reference (matches the PyTorch forward)."""
    B = csi.shape[1]
    x = csi.reshape(B, -1).astype(jnp.float32)

    def mlp(h, ps):
        n = len(ps) // 2
        for i in range(n):
            h = h @ ps[2 * i] + ps[2 * i + 1]
            if i < n - 1:
                h = jnp.maximum(h, 0.0)
        return h

    feat = mlp(x, params[0:6])
    p = jax.nn.sigmoid(mlp(feat, params[6:12]))
    rb = jax.nn.softmax(mlp(feat, params[12:18]), axis=1)
    return p, rb


# ----------------------------- main -------------------------------------------
if __name__ == "__main__":
    net_par = {"N": 4, "K": 8}
    N, K = net_par["N"], net_par["K"]
    B = 8

    key = jax.random.PRNGKey(0)
    k_csi, k_csi2 = jax.random.split(key)
    csi = jax.random.normal(k_csi, (1, B, N, K), dtype=jnp.float32)

    raw_params = make_params(N, K, seed=0)
    packed = pack_params(raw_params, K)

    p, rb = dnn_forward(csi, packed, K)
    p = jax.block_until_ready(p)
    rb = jax.block_until_ready(rb)

    # tight check vs pure-JAX reference using the same packed (bf16/int8) weights
    p_bf, rb_bf = _ref_forward_packed(csi, packed, K)
    np.testing.assert_allclose(np.asarray(p), np.asarray(p_bf), rtol=2e-3, atol=2e-3)
    np.testing.assert_allclose(np.asarray(rb), np.asarray(rb_bf), rtol=2e-3, atol=2e-3)

    # loose semantic check vs the original f32 (PyTorch-equivalent) forward
    p_f32, rb_f32 = _ref_forward_f32(csi, raw_params, K)
    np.testing.assert_allclose(np.asarray(p), np.asarray(p_f32), rtol=5e-2, atol=5e-2)
    np.testing.assert_allclose(np.asarray(rb), np.asarray(rb_f32), rtol=5e-2, atol=5e-2)

    assert p.shape == (B, 1) and rb.shape == (B, K)
    assert np.allclose(np.asarray(rb).sum(axis=1), 1.0, atol=1e-3)

    # exercise the batch grid axis (grid > 1, padded batch) with resident weights
    B2 = 300
    csi2 = jax.random.normal(k_csi2, (1, B2, N, K), dtype=jnp.float32)
    p2, rb2 = dnn_forward(csi2, packed, K)
    p2 = jax.block_until_ready(p2)
    rb2 = jax.block_until_ready(rb2)
    p2_bf, rb2_bf = _ref_forward_packed(csi2, packed, K)
    np.testing.assert_allclose(np.asarray(p2), np.asarray(p2_bf), rtol=2e-3, atol=2e-3)
    np.testing.assert_allclose(np.asarray(rb2), np.asarray(rb2_bf), rtol=2e-3, atol=2e-3)
    assert p2.shape == (B2, 1) and rb2.shape == (B2, K)
    assert np.allclose(np.asarray(rb2).sum(axis=1), 1.0, atol=1e-3)

    print("KERNEL_OK")
</pallas_src>

<mosaic_0001>
module attributes {stable_mosaic.version = 11 : i64} {
  func.func @_dnn_kernel(%arg0: i32, %arg1: memref<8x32xbf16, #tpu.memory_space<vmem>>, %arg2: memref<32x1024xbf16, #tpu.memory_space<vmem>>, %arg3: memref<1x1024xf32, #tpu.memory_space<vmem>>, %arg4: memref<1024x1024xi8, #tpu.memory_space<vmem>>, %arg5: memref<1x1024xf32, #tpu.memory_space<vmem>>, %arg6: memref<1x1024xf32, #tpu.memory_space<vmem>>, %arg7: memref<1024x32xbf16, #tpu.memory_space<vmem>>, %arg8: memref<56x128xf32, #tpu.memory_space<vmem>>, %arg9: memref<8x128xf32, #tpu.memory_space<vmem>>) attributes {dimension_semantics = [#tpu.dimension_semantics<parallel>], iteration_bounds = array<i64: 1>, scalar_prefetch = 0 : i64, scratch_operands = 0 : i64, tpu.core_type = #tpu.core_type<tc>, window_params = [{transform_indices = @transform_0, window_bounds = array<i64: 8, 32>}, {pipeline_mode = #tpu.pipeline_mode<synchronous>, transform_indices = @transform_1, window_bounds = array<i64: 32, 1024>}, {pipeline_mode = #tpu.pipeline_mode<synchronous>, transform_indices = @transform_2, window_bounds = array<i64: 1, 1024>}, {pipeline_mode = #tpu.pipeline_mode<synchronous>, transform_indices = @transform_3, window_bounds = array<i64: 1024, 1024>}, {pipeline_mode = #tpu.pipeline_mode<synchronous>, transform_indices = @transform_4, window_bounds = array<i64: 1, 1024>}, {pipeline_mode = #tpu.pipeline_mode<synchronous>, transform_indices = @transform_5, window_bounds = array<i64: 1, 1024>}, {pipeline_mode = #tpu.pipeline_mode<synchronous>, transform_indices = @transform_6, window_bounds = array<i64: 1024, 32>}, {pipeline_mode = #tpu.pipeline_mode<synchronous>, transform_indices = @transform_7, window_bounds = array<i64: 56, 128>}, {transform_indices = @transform_8, window_bounds = array<i64: 8, 128>}]} {
    %c0 = arith.constant 0 : index
    %c0_0 = arith.constant 0 : index
    %0 = vector.load %arg8[%c0, %c0_0] : memref<56x128xf32, #tpu.memory_space<vmem>>, vector<56x128xf32>
    %1 = vector.extract_strided_slice %0 {offsets = [0, 0], sizes = [1, 32], strides = [1, 1]} : vector<56x128xf32> to vector<1x32xf32>
    %2 = vector.extract_strided_slice %0 {offsets = [1, 0], sizes = [1, 8], strides = [1, 1]} : vector<56x128xf32> to vector<1x8xf32>
    %3 = vector.extract_strided_slice %0 {offsets = [2, 0], sizes = [1, 8], strides = [1, 1]} : vector<56x128xf32> to vector<1x8xf32>
    %4 = vector.extract_strided_slice %0 {offsets = [3, 0], sizes = [1, 128], strides = [1, 1]} : vector<56x128xf32> to vector<1x128xf32>
    %5 = vector.extract_strided_slice %0 {offsets = [8, 0], sizes = [32, 8], strides = [1, 1]} : vector<56x128xf32> to vector<32x8xf32>
    %6 = arith.truncf %5 : vector<32x8xf32> to vector<32x8xbf16>
    %7 = vector.extract_strided_slice %0 {offsets = [40, 0], sizes = [8, 8], strides = [1, 1]} : vector<56x128xf32> to vector<8x8xf32>
    %8 = arith.truncf %7 : vector<8x8xf32> to vector<8x8xbf16>
    %9 = vector.extract_strided_slice %0 {offsets = [48, 0], sizes = [8, 128], strides = [1, 1]} : vector<56x128xf32> to vector<8x128xf32>
    %10 = arith.truncf %9 : vector<8x128xf32> to vector<8x128xbf16>
    %c0_1 = arith.constant 0 : index
    %c0_2 = arith.constant 0 : index
    %11 = vector.load %arg1[%c0_1, %c0_2] : memref<8x32xbf16, #tpu.memory_space<vmem>>, vector<8x32xbf16>
    %c0_3 = arith.constant 0 : index
    %c0_4 = arith.constant 0 : index
    %12 = vector.load %arg2[%c0_3, %c0_4] : memref<32x1024xbf16, #tpu.memory_space<vmem>>, vector<32x1024xbf16>
    %c0_5 = arith.constant 0 : index
    %c0_6 = arith.constant 0 : index
    %13 = vector.load %arg3[%c0_5, %c0_6] : memref<1x1024xf32, #tpu.memory_space<vmem>>, vector<1x1024xf32>
    %cst = arith.constant dense<0.000000e+00> : vector<8x1024xf32>
    %14 = tpu.matmul %11, %12, %cst {dimension_numbers = #tpu.dot_dimension_numbers<[1], [0], [0], [1], [0, 0, 1, 1], [], []>} : vector<8x32xbf16>, vector<32x1024xbf16>, vector<8x1024xf32> -> vector<8x1024xf32>
    %15 = vector.broadcast %13 : vector<1x1024xf32> to vector<8x1024xf32>
    %16 = arith.addf %14, %15 : vector<8x1024xf32>
    %cst_7 = arith.constant 0.000000e+00 : f32
    %17 = vector.broadcast %cst_7 : f32 to vector<8x1024xf32>
    %18 = arith.maximumf %16, %17 : vector<8x1024xf32>
    %19 = arith.truncf %18 : vector<8x1024xf32> to vector<8x1024xbf16>
    %c0_8 = arith.constant 0 : index
    %c0_9 = arith.constant 0 : index
    %20 = vector.load %arg4[%c0_8, %c0_9] : memref<1024x1024xi8, #tpu.memory_space<vmem>>, vector<1024x1024xi8>
    %21 = arith.sitofp %20 : vector<1024x1024xi8> to vector<1024x1024xf32>
    %c0_10 = arith.constant 0 : index
    %c0_11 = arith.constant 0 : index
    %22 = vector.load %arg5[%c0_10, %c0_11] : memref<1x1024xf32, #tpu.memory_space<vmem>>, vector<1x1024xf32>
    %23 = vector.broadcast %22 : vector<1x1024xf32> to vector<1024x1024xf32>
    %24 = arith.mulf %21, %23 : vector<1024x1024xf32>
    %25 = arith.truncf %24 : vector<1024x1024xf32> to vector<1024x1024xbf16>
    %c0_12 = arith.constant 0 : index
    %c0_13 = arith.constant 0 : index
    %26 = vector.load %arg6[%c0_12, %c0_13] : memref<1x1024xf32, #tpu.memory_space<vmem>>, vector<1x1024xf32>
    %cst_14 = arith.constant dense<0.000000e+00> : vector<8x1024xf32>
    %27 = tpu.matmul %19, %25, %cst_14 {dimension_numbers = #tpu.dot_dimension_numbers<[1], [0], [0], [1], [0, 0, 1, 1], [], []>} : vector<8x1024xbf16>, vector<1024x1024xbf16>, vector<8x1024xf32> -> vector<8x1024xf32>
    %28 = vector.broadcast %26 : vector<1x1024xf32> to vector<8x1024xf32>
    %29 = arith.addf %27, %28 : vector<8x1024xf32>
    %cst_15 = arith.constant 0.000000e+00 : f32
    %30 = vector.broadcast %cst_15 : f32 to vector<8x1024xf32>
    %31 = arith.maximumf %29, %30 : vector<8x1024xf32>
    %32 = arith.truncf %31 : vector<8x1024xf32> to vector<8x1024xbf16>
    %c0_16 = arith.constant 0 : index
    %c0_17 = arith.constant 0 : index
    %33 = vector.load %arg7[%c0_16, %c0_17] : memref<1024x32xbf16, #tpu.memory_space<vmem>>, vector<1024x32xbf16>
    %cst_18 = arith.constant dense<0.000000e+00> : vector<8x32xf32>
    %34 = tpu.matmul %32, %33, %cst_18 {dimension_numbers = #tpu.dot_dimension_numbers<[1], [0], [0], [1], [0, 0, 1, 1], [], []>} : vector<8x1024xbf16>, vector<1024x32xbf16>, vector<8x32xf32> -> vector<8x32xf32>
    %35 = vector.broadcast %1 : vector<1x32xf32> to vector<8x32xf32>
    %36 = arith.addf %34, %35 : vector<8x32xf32>
    %37 = arith.truncf %36 : vector<8x32xf32> to vector<8x32xbf16>
    %cst_19 = arith.constant dense<0.000000e+00> : vector<8x8xf32>
    %38 = tpu.matmul %37, %6, %cst_19 {dimension_numbers = #tpu.dot_dimension_numbers<[1], [0], [0], [1], [0, 0, 1, 1], [], []>} : vector<8x32xbf16>, vector<32x8xbf16>, vector<8x8xf32> -> vector<8x8xf32>
    %39 = vector.broadcast %2 : vector<1x8xf32> to vector<8x8xf32>
    %40 = arith.addf %38, %39 : vector<8x8xf32>
    %cst_20 = arith.constant 0.000000e+00 : f32
    %41 = vector.broadcast %cst_20 : f32 to vector<8x8xf32>
    %42 = arith.maximumf %40, %41 : vector<8x8xf32>
    %43 = arith.truncf %42 : vector<8x8xf32> to vector<8x8xbf16>
    %cst_21 = arith.constant dense<0.000000e+00> : vector<8x8xf32>
    %44 = tpu.matmul %43, %8, %cst_21 {dimension_numbers = #tpu.dot_dimension_numbers<[1], [0], [0], [1], [0, 0, 1, 1], [], []>} : vector<8x8xbf16>, vector<8x8xbf16>, vector<8x8xf32> -> vector<8x8xf32>
    %45 = vector.broadcast %3 : vector<1x8xf32> to vector<8x8xf32>
    %46 = arith.addf %44, %45 : vector<8x8xf32>
    %cst_22 = arith.constant 0.000000e+00 : f32
    %47 = vector.broadcast %cst_22 : f32 to vector<8x8xf32>
    %48 = arith.maximumf %46, %47 : vector<8x8xf32>
    %49 = arith.truncf %48 : vector<8x8xf32> to vector<8x8xbf16>
    %cst_23 = arith.constant dense<0.000000e+00> : vector<8x128xf32>
    %50 = tpu.matmul %49, %10, %cst_23 {dimension_numbers = #tpu.dot_dimension_numbers<[1], [0], [0], [1], [0, 0, 1, 1], [], []>} : vector<8x8xbf16>, vector<8x128xbf16>, vector<8x128xf32> -> vector<8x128xf32>
    %51 = vector.broadcast %4 : vector<1x128xf32> to vector<8x128xf32>
    %52 = arith.addf %50, %51 : vector<8x128xf32>
    %53 = tpu.iota {dimensions = array<i32: 1>} : vector<8x128xi32>
    %c0_i32 = arith.constant 0 : i32
    %54 = vector.broadcast %c0_i32 : i32 to vector<8x128xi32>
    %55 = arith.cmpi eq, %53, %54 : vector<8x128xi32>
    %c1_i32 = arith.constant 1 : i32
    %56 = vector.broadcast %c1_i32 : i32 to vector<8x128xi32>
    %57 = arith.cmpi sge, %53, %56 : vector<8x128xi32>
    %c8_i32 = arith.constant 8 : i32
    %58 = vector.broadcast %c8_i32 : i32 to vector<8x128xi32>
    %59 = arith.cmpi sle, %53, %58 : vector<8x128xi32>
    %60 = arith.andi %57, %59 : vector<8x128xi1>
    %61 = arith.negf %52 : vector<8x128xf32>
    %62 = math.exp %61 : vector<8x128xf32>
    %cst_24 = arith.constant 1.000000e+00 : f32
    %63 = vector.broadcast %cst_24 : f32 to vector<8x128xf32>
    %64 = arith.addf %63, %62 : vector<8x128xf32>
    %65 = arith.divf %63, %64 : vector<8x128xf32>
    %cst_25 = arith.constant 0xFF800000 : f32
    %66 = vector.broadcast %cst_25 : f32 to vector<8x128xf32>
    %67 = arith.select %60, %52, %66 : vector<8x128xi1>, vector<8x128xf32>
    %cst_26 = arith.constant dense<0xFF800000> : vector<8xf32>
    %68 = vector.multi_reduction <maximumf>, %67, %cst_26 [1] : vector<8x128xf32> to vector<8xf32>
    %69 = vector.shape_cast %68 : vector<8xf32> to vector<8x1xf32>
    %70 = vector.broadcast %69 : vector<8x1xf32> to vector<8x128xf32>
    %71 = arith.subf %67, %70 : vector<8x128xf32>
    %72 = math.exp %71 : vector<8x128xf32>
    %cst_27 = arith.constant 0.000000e+00 : f32
    %73 = vector.broadcast %cst_27 : f32 to vector<8x128xf32>
    %74 = arith.select %60, %72, %73 : vector<8x128xi1>, vector<8x128xf32>
    %cst_28 = arith.constant dense<0.000000e+00> : vector<8xf32>
    %75 = vector.multi_reduction <add>, %74, %cst_28 [1] : vector<8x128xf32> to vector<8xf32>
    %76 = vector.shape_cast %75 : vector<8xf32> to vector<8x1xf32>
    %77 = vector.broadcast %76 : vector<8x1xf32> to vector<8x128xf32>
    %78 = arith.divf %74, %77 : vector<8x128xf32>
    %79 = arith.select %55, %65, %78 : vector<8x128xi1>, vector<8x128xf32>
    %c0_29 = arith.constant 0 : index
    %c0_30 = arith.constant 0 : index
    %80 = vector.load %arg9[%c0_29, %c0_30] : memref<8x128xf32, #tpu.memory_space<vmem>>, vector<8x128xf32>
    tpu.vector_store %arg9[%c0_29, %c0_30], %79 {strides = array<i32>} : memref<8x128xf32, #tpu.memory_space<vmem>>, vector<8x128xf32>,
    return
  }
  func.func @transform_0(%arg0: i32) -> (i32, i32) {
    %c0_i32 = arith.constant 0 : i32
    %c0_i32_0 = arith.constant 0 : i32
    return %arg0, %c0_i32 : i32, i32
  }
  func.func @transform_1(%arg0: i32) -> (i32, i32) {
    %c0_i32 = arith.constant 0 : i32
    %c0_i32_0 = arith.constant 0 : i32
    %c0_i32_1 = arith.constant 0 : i32
    return %c0_i32, %c0_i32_0 : i32, i32
  }
  func.func @transform_2(%arg0: i32) -> (i32, i32) {
    %c0_i32 = arith.constant 0 : i32
    %c0_i32_0 = arith.constant 0 : i32
    %c0_i32_1 = arith.constant 0 : i32
    return %c0_i32, %c0_i32_0 : i32, i32
  }
  func.func @transform_3(%arg0: i32) -> (i32, i32) {
    %c0_i32 = arith.constant 0 : i32
    %c0_i32_0 = arith.constant 0 : i32
    %c0_i32_1 = arith.constant 0 : i32
    return %c0_i32, %c0_i32_0 : i32, i32
  }
  func.func @transform_4(%arg0: i32) -> (i32, i32) {
    %c0_i32 = arith.constant 0 : i32
    %c0_i32_0 = arith.constant 0 : i32
    %c0_i32_1 = arith.constant 0 : i32
    return %c0_i32, %c0_i32_0 : i32, i32
  }
  func.func @transform_5(%arg0: i32) -> (i32, i32) {
    %c0_i32 = arith.constant 0 : i32
    %c0_i32_0 = arith.constant 0 : i32
    %c0_i32_1 = arith.constant 0 : i32
    return %c0_i32, %c0_i32_0 : i32, i32
  }
  func.func @transform_6(%arg0: i32) -> (i32, i32) {
    %c0_i32 = arith.constant 0 : i32
    %c0_i32_0 = arith.constant 0 : i32
    %c0_i32_1 = arith.constant 0 : i32
    return %c0_i32, %c0_i32_0 : i32, i32
  }
  func.func @transform_7(%arg0: i32) -> (i32, i32) {
    %c0_i32 = arith.constant 0 : i32
    %c0_i32_0 = arith.constant 0 : i32
    %c0_i32_1 = arith.constant 0 : i32
    return %c0_i32, %c0_i32_0 : i32, i32
  }
  func.func @transform_8(%arg0: i32) -> (i32, i32) {
    %c0_i32 = arith.constant 0 : i32
    %c0_i32_0 = arith.constant 0 : i32
    return %arg0, %c0_i32 : i32, i32
  }
}

</mosaic_0001>

<llo_original>
// kernel: tpu_custom_call.1
$region0: #{tpu_custom_call.1}
  #allocation0 [shape = 'u32[]', space=smem, size = 0x4, offset = 0x4, fixed_abs, tag = 'smem constant byte address 0x4 - core index']
  #allocation1 [shape = 'u32[72,128]{1,0:T(1,128)}', space=vmem, size = 0x9000, scoped, tag = 'internal scratch']
  %s0 = inlined_call_operand.vmem [shape: bf16[8,32], index: 0, kind: input, shape index: {}]
  %s1 = inlined_call_operand.vmem [shape: bf16[32,1024], index: 1, kind: input, shape index: {}]
  %s2 = inlined_call_operand.vmem [shape: f32[1,1024], index: 2, kind: input, shape index: {}]
  %s3 = inlined_call_operand.hbm [shape: s8[1024,1024], index: 3, kind: input, shape index: {}]
  %s4 = inlined_call_operand.vmem [shape: f32[1,1024], index: 4, kind: input, shape index: {}]
  %s5 = inlined_call_operand.vmem [shape: f32[1,1024], index: 5, kind: input, shape index: {}]
  %s6 = inlined_call_operand.vmem [shape: bf16[1024,32], index: 6, kind: input, shape index: {}]
  %s7 = inlined_call_operand.vmem [shape: f32[56,128], index: 7, kind: input, shape index: {}]
  %s8 = inlined_call_operand.hbm [shape: f32[8,128], index: 8, kind: output, shape index: {}]
  %s9 = sld [smem:[#allocation0]]
  $region46: #{tpu_custom_call.1} parent=0
    _
  %s11 = ssub.s32 1, %s9
  %s12 = scalar_select 0, %s11, %s9
  $region1: #{tpu_custom_call.1} parent=0
    #allocation2 [shape = 'u8[1048576]{0}', space=vmem, size = 0x100000, scoped, tag = 'input window, operand 3, single buffered']
    #allocation3 [shape = 's32[1]{0}', space=sflag, size = 0x4, scoped, tag = 'scoped memory for tpu_custom_call.1']
    #allocation4 [shape = 's32[1]{0}', space=sflag, size = 0x4, scoped, tag = 'scoped memory for tpu_custom_call.1']
    #allocation5 [shape = 'u8[4096]{0}', space=vmem, size = 0x1000, scoped, tag = 'output window, operand 0, single buffered']
    %13 = vsyncpa [#allocation3], 0
    %14 = vsyncpa [#allocation4], 0
    // Predicated region
    $region2: #{tpu_custom_call.1} parent=1 // pred_check
      _
    $region3: #{tpu_custom_call.1} parent=1 // pred_check_branch
      %16 = sbr.rel (0) target = $region5
    $region4: #{tpu_custom_call.1} parent=1 // pred_region
      _
    $region5: #{tpu_custom_call.1} parent=1 // pred_fallthru
      _
    // Predicated region
    $region6: #{tpu_custom_call.1} parent=1 // pred_check
      _
    $region7: #{tpu_custom_call.1} parent=1 // pred_check_branch
      %18 = sbr.rel (0) target = $region9
    $region8: #{tpu_custom_call.1} parent=1 // pred_region
      _
    $region9: #{tpu_custom_call.1} parent=1 // pred_fallthru
      _
    // Predicated region
    $region10: #{tpu_custom_call.1} parent=1 // pred_check
      _
    $region11: #{tpu_custom_call.1} parent=1 // pred_check_branch
      %20 = sbr.rel (0) target = $region13
    $region12: #{tpu_custom_call.1} parent=1 // pred_region
      _
    $region13: #{tpu_custom_call.1} parent=1 // pred_fallthru
      _
    // Predicated region
    $region14: #{tpu_custom_call.1} parent=1 // pred_check
      _
    $region15: #{tpu_custom_call.1} parent=1 // pred_check_branch
      %22 = sbr.rel (0) target = $region17
    $region16: #{tpu_custom_call.1} parent=1 // pred_region
      %24 = vsyncadd [#allocation3], 0
      %s25 = sshll.u32 %s3, 4
      %s26 = int_to_ptr.hbm [resolvable:$true] %s25
      %s27 = sshll.u32 [#allocation2], 4
      %s28 = int_to_ptr.vmem [resolvable:$true] %s27
      %33 = dma.hbm_to_vmem [thread:$0]  %s26, 32768, %s28, [#allocation3], 1024, 1024, 64
    $region17: #{tpu_custom_call.1} parent=1 // pred_fallthru
      _
    // Predicated region
    $region18: #{tpu_custom_call.1} parent=1 // pred_check
      _
    $region19: #{tpu_custom_call.1} parent=1 // pred_check_branch
      %35 = sbr.rel (0) target = $region21
    $region20: #{tpu_custom_call.1} parent=1 // pred_region
      _
    $region21: #{tpu_custom_call.1} parent=1 // pred_fallthru
      _
    // Predicated region
    $region22: #{tpu_custom_call.1} parent=1 // pred_check
      _
    $region23: #{tpu_custom_call.1} parent=1 // pred_check_branch
      %37 = sbr.rel (0) target = $region25
    $region24: #{tpu_custom_call.1} parent=1 // pred_region
      _
    $region25: #{tpu_custom_call.1} parent=1 // pred_fallthru
      _
    // Predicated region
    $region26: #{tpu_custom_call.1} parent=1 // pred_check
      _
    $region27: #{tpu_custom_call.1} parent=1 // pred_check_branch
      %39 = sbr.rel (0) target = $region29
    $region28: #{tpu_custom_call.1} parent=1 // pred_region
      _
    $region29: #{tpu_custom_call.1} parent=1 // pred_fallthru
      _
    // Predicated region
    $region30: #{tpu_custom_call.1} parent=1 // pred_check
      _
    $region31: #{tpu_custom_call.1} parent=1 // pred_check_branch
      %41 = sbr.rel (0) target = $region33
    $region32: #{tpu_custom_call.1} parent=1 // pred_region
      _
    $region33: #{tpu_custom_call.1} parent=1 // pred_fallthru
      _
    // Predicated region
    $region34: #{tpu_custom_call.1} parent=1 // pred_check
      _
    $region35: #{tpu_custom_call.1} parent=1 // pred_check_branch
      %43 = sbr.rel (0) target = $region37
    $region36: #{tpu_custom_call.1} parent=1 // pred_region
      %45 = dma.done [#allocation3], 32768
    $region37: #{tpu_custom_call.1} parent=1 // pred_fallthru
      _
    %v47 = vld [vmem:[%s7] sm:$0xff]
    %v48 = vld [vmem:[%s7 + $0x8] sm:$0xff]
    %v49 = vld [vmem:[%s7 + $0x10] sm:$0xff]
    %v50 = vld [vmem:[%s7 + $0x18] sm:$0xff]
    %v51 = vld [vmem:[%s7 + $0x20] sm:$0xff]
    %v52 = vld [vmem:[%s7 + $0x28] sm:$0xff]
    %v53 = vld [vmem:[%s7 + $0x30] sm:$0xff]
    %v54 = vpack.c.bf16 %v49, %v48
    %v55 = vpack.c.bf16 %v51, %v50
    %v56 = vpack.c.bf16 %v52, %v52
    %v57 = vpack.c.bf16 %v53, %v53
    %v58 = vld [vmem:[%s0] sm:$0xf]
    %v59 = vld [vmem:[%s1] sm:$0xff]
    %v60 = vld [vmem:[%s1 + $0x8] sm:$0xff]
    %v61 = vld [vmem:[%s1 + $0x10] sm:$0xff]
    %v62 = vld [vmem:[%s1 + $0x18] sm:$0xff]
    %v63 = vld [vmem:[%s1 + $0x20] sm:$0xff]
    %v64 = vld [vmem:[%s1 + $0x28] sm:$0xff]
    %v65 = vld [vmem:[%s1 + $0x30] sm:$0xff]
    %v66 = vld [vmem:[%s1 + $0x38] sm:$0xff]
    %v67 = vld [vmem:[%s1 + $0x40] sm:$0xff]
    %v68 = vld [vmem:[%s1 + $0x48] sm:$0xff]
    %v69 = vld [vmem:[%s1 + $0x50] sm:$0xff]
    %v70 = vld [vmem:[%s1 + $0x58] sm:$0xff]
    %v71 = vld [vmem:[%s1 + $0x60] sm:$0xff]
    %v72 = vld [vmem:[%s1 + $0x68] sm:$0xff]
    %v73 = vld [vmem:[%s1 + $0x70] sm:$0xff]
    %v74 = vld [vmem:[%s1 + $0x78] sm:$0xff]
    %v75 = vld [vmem:[%s2] sm:$0xff]
    %v77 = vperm.slane %v75, 0
    %v78 = vperm.slane %v75, 1
    %v79 = vperm.slane %v75, 2
    %v80 = vperm.slane %v75, 3
    %v81 = vperm.slane %v75, 4
    %v82 = vperm.slane %v75, 5
    %v83 = vperm.slane %v75, 6
    %v84 = vperm.slane %v75, 7
    %v109 = vunpack.c.l.b16 %v59
    %v110 = vunpack.c.h.b16 %v59
    %v111 = vunpack.c.l.b16 %v60
    %v112 = vunpack.c.h.b16 %v60
    %v113 = vunpack.c.l.b16 %v61
    %v114 = vunpack.c.h.b16 %v61
    %v115 = vunpack.c.l.b16 %v62
    %v116 = vunpack.c.h.b16 %v62
    %v117 = vunpack.c.l.b16 %v63
    %v118 = vunpack.c.h.b16 %v63
    %v119 = vunpack.c.l.b16 %v64
    %v120 = vunpack.c.h.b16 %v64
    %v121 = vunpack.c.l.b16 %v65
    %v122 = vunpack.c.h.b16 %v65
    %v123 = vunpack.c.l.b16 %v66
    %v124 = vunpack.c.h.b16 %v66
    %v125 = vunpack.c.l.b16 %v67
    %v126 = vunpack.c.h.b16 %v67
    %v127 = vunpack.c.l.b16 %v68
    %v128 = vunpack.c.h.b16 %v68
    %v129 = vunpack.c.l.b16 %v69
    %v130 = vunpack.c.h.b16 %v69
    %v131 = vunpack.c.l.b16 %v70
    %v132 = vunpack.c.h.b16 %v70
    %v133 = vunpack.c.l.b16 %v71
    %v134 = vunpack.c.h.b16 %v71
    %v135 = vunpack.c.l.b16 %v72
    %v136 = vunpack.c.h.b16 %v72
    %v137 = vunpack.c.l.b16 %v73
    %v138 = vunpack.c.h.b16 %v73
    %v139 = vunpack.c.l.b16 %v74
    %v140 = vunpack.c.h.b16 %v74
    %v141 = vpack.c.b16 %v117, %v109
    %v142 = vpack.c.b16 %v118, %v110
    %v143 = vpack.c.b16 %v119, %v111
    %v144 = vpack.c.b16 %v120, %v112
    %v145 = vpack.c.b16 %v121, %v113
    %v146 = vpack.c.b16 %v122, %v114
    %v147 = vpack.c.b16 %v123, %v115
    %v148 = vpack.c.b16 %v124, %v116
    %v149 = vpack.c.b16 %v133, %v125
    %v150 = vpack.c.b16 %v134, %v126
    %v151 = vpack.c.b16 %v135, %v127
    %v152 = vpack.c.b16 %v136, %v128
    %v153 = vpack.c.b16 %v137, %v129
    %v154 = vpack.c.b16 %v138, %v130
    %v155 = vpack.c.b16 %v139, %v131
    %v156 = vpack.c.b16 %v140, %v132
    %vm173 = vcmask 261120
    %v175 = vsel %vm173, %v58, 0
    %177 = vmatpush.bf16.msra.mxu0 0
    %178 = vmatpush.bf16.msra.mxu0 0
    %179 = vmatpush.bf16.msra.mxu0 0
    %180 = vmatpush.bf16.msra.mxu0 0
    %181 = vmatpush.bf16.msra.mxu0 0
    %182 = vmatpush.bf16.msra.mxu0 0
    %183 = vmatpush.bf16.msra.mxu0 %v149
    %184 = vmatpush.bf16.msra.mxu0 %v141
    %185 = vmatmul.bf16.gmra.mxu0 %v175
    %v186 = vpop.f32.mrf.mxu0
    %v187 = vadd.f32 %v77, %v186
    %v188 = vpop.f32.mrf.mxu0
    %189 = vdwg.mxu0
    %190 = vmatpush.bf16.msra.mxu0 0
    %191 = vmatpush.bf16.msra.mxu0 0
    %192 = vmatpush.bf16.msra.mxu0 0
    %193 = vmatpush.bf16.msra.mxu0 0
    %194 = vmatpush.bf16.msra.mxu0 0
    %195 = vmatpush.bf16.msra.mxu0 0
    %196 = vmatpush.bf16.msra.mxu0 %v150
    %197 = vmatpush.bf16.msra.mxu0 %v142
    %198 = vmatmul.bf16.gmra.mxu0 %v175
    %v199 = vpop.f32.mrf.mxu0
    %v200 = vadd.f32 %v78, %v199
    %v201 = vpop.f32.mrf.mxu0
    %202 = vdwg.mxu0
    %203 = vmatpush.bf16.msra.mxu0 0
    %204 = vmatpush.bf16.msra.mxu0 0
    %205 = vmatpush.bf16.msra.mxu0 0
    %206 = vmatpush.bf16.msra.mxu0 0
    %207 = vmatpush.bf16.msra.mxu0 0
    %208 = vmatpush.bf16.msra.mxu0 0
    %209 = vmatpush.bf16.msra.mxu0 %v151
    %210 = vmatpush.bf16.msra.mxu0 %v143
    %211 = vmatmul.bf16.gmra.mxu0 %v175
    %v212 = vpop.f32.mrf.mxu0
    %v213 = vadd.f32 %v79, %v212
    %v214 = vpop.f32.mrf.mxu0
    %215 = vdwg.mxu0
    %216 = vmatpush.bf16.msra.mxu0 0
    %217 = vmatpush.bf16.msra.mxu0 0
    %218 = vmatpush.bf16.msra.mxu0 0
    %219 = vmatpush.bf16.msra.mxu0 0
    %220 = vmatpush.bf16.msra.mxu0 0
    %221 = vmatpush.bf16.msra.mxu0 0
    %222 = vmatpush.bf16.msra.mxu0 %v152
    %223 = vmatpush.bf16.msra.mxu0 %v144
    %224 = vmatmul.bf16.gmra.mxu0 %v175
    %v225 = vpop.f32.mrf.mxu0
    %v226 = vadd.f32 %v80, %v225
    %v227 = vpop.f32.mrf.mxu0
    %228 = vdwg.mxu0
    %229 = vmatpush.bf16.msra.mxu0 0
    %230 = vmatpush.bf16.msra.mxu0 0
    %231 = vmatpush.bf16.msra.mxu0 0
    %232 = vmatpush.bf16.msra.mxu0 0
    %233 = vmatpush.bf16.msra.mxu0 0
    %234 = vmatpush.bf16.msra.mxu0 0
    %235 = vmatpush.bf16.msra.mxu0 %v153
    %236 = vmatpush.bf16.msra.mxu0 %v145
    %237 = vmatmul.bf16.gmra.mxu0 %v175
    %v238 = vpop.f32.mrf.mxu0
    %v239 = vadd.f32 %v81, %v238
    %v240 = vpop.f32.mrf.mxu0
    %241 = vdwg.mxu0
    %242 = vmatpush.bf16.msra.mxu0 0
    %243 = vmatpush.bf16.msra.mxu0 0
    %244 = vmatpush.bf16.msra.mxu0 0
    %245 = vmatpush.bf16.msra.mxu0 0
    %246 = vmatpush.bf16.msra.mxu0 0
    %247 = vmatpush.bf16.msra.mxu0 0
    %248 = vmatpush.bf16.msra.mxu0 %v154
    %249 = vmatpush.bf16.msra.mxu0 %v146
    %250 = vmatmul.bf16.gmra.mxu0 %v175
    %v251 = vpop.f32.mrf.mxu0
    %v252 = vadd.f32 %v82, %v251
    %v253 = vpop.f32.mrf.mxu0
    %254 = vdwg.mxu0
    %255 = vmatpush.bf16.msra.mxu0 0
    %256 = vmatpush.bf16.msra.mxu0 0
    %257 = vmatpush.bf16.msra.mxu0 0
    %258 = vmatpush.bf16.msra.mxu0 0
    %259 = vmatpush.bf16.msra.mxu0 0
    %260 = vmatpush.bf16.msra.mxu0 0
    %261 = vmatpush.bf16.msra.mxu0 %v155
    %262 = vmatpush.bf16.msra.mxu0 %v147
    %263 = vmatmul.bf16.gmra.mxu0 %v175
    %v264 = vpop.f32.mrf.mxu0
    %v265 = vadd.f32 %v83, %v264
    %v266 = vpop.f32.mrf.mxu0
    %267 = vdwg.mxu0
    %268 = vmatpush.bf16.msra.mxu0 0
    %269 = vmatpush.bf16.msra.mxu0 0
    %270 = vmatpush.bf16.msra.mxu0 0
    %271 = vmatpush.bf16.msra.mxu0 0
    %272 = vmatpush.bf16.msra.mxu0 0
    %273 = vmatpush.bf16.msra.mxu0 0
    %274 = vmatpush.bf16.msra.mxu0 %v156
    %275 = vmatpush.bf16.msra.mxu0 %v148
    %276 = vmatmul.bf16.gmra.mxu0 %v175
    %v277 = vpop.f32.mrf.mxu0
    %v278 = vadd.f32 %v84, %v277
    %v279 = vpop.f32.mrf.mxu0
    %280 = vdwg.mxu0
    %v281 = vmax.f32 %v187, 0.0
    %v282 = vmax.f32 %v200, 0.0
    %v283 = vmax.f32 %v213, 0.0
    %v284 = vmax.f32 %v226, 0.0
    %v285 = vmax.f32 %v239, 0.0
    %v286 = vmax.f32 %v252, 0.0
    %v287 = vmax.f32 %v265, 0.0
    %v288 = vmax.f32 %v278, 0.0
    %v289 = vpack.c.bf16 %v281, %v281
    %v290 = vpack.c.bf16 %v282, %v282
    %v291 = vpack.c.bf16 %v283, %v283
    %v292 = vpack.c.bf16 %v284, %v284
    %v293 = vpack.c.bf16 %v285, %v285
    %v294 = vpack.c.bf16 %v286, %v286
    %v295 = vpack.c.bf16 %v287, %v287
    %v296 = vpack.c.bf16 %v288, %v288
    %v297 = vld [vmem:[#allocation2] sm:$0xff]
    %v298 = vld [vmem:[#allocation2 + $0x8] sm:$0xff]
    %v299 = vld [vmem:[#allocation2 + $0x10] sm:$0xff]
    %v300 = vld [vmem:[#allocation2 + $0x18] sm:$0xff]
    %v301 = vld [vmem:[#allocation2 + $0x20] sm:$0xff]
    %v302 = vld [vmem:[#allocation2 + $0x28] sm:$0xff]
    %v303 = vld [vmem:[#allocation2 + $0x30] sm:$0xff]
    %v304 = vld [vmem:[#allocation2 + $0x38] sm:$0xff]
    %v305 = vld [vmem:[#allocation2 + $0x40] sm:$0xff]
    %v306 = vld [vmem:[#allocation2 + $0x48] sm:$0xff]
    %v307 = vld [vmem:[#allocation2 + $0x50] sm:$0xff]
    %v308 = vld [vmem:[#allocation2 + $0x58] sm:$0xff]
    %v309 = vld [vmem:[#allocation2 + $0x60] sm:$0xff]
    %v310 = vld [vmem:[#allocation2 + $0x68] sm:$0xff]
    %v311 = vld [vmem:[#allocation2 + $0x70] sm:$0xff]
    %v312 = vld [vmem:[#allocation2 + $0x78] sm:$0xff]
    %v313 = vld [vmem:[#allocation2 + $0x80] sm:$0xff]
    %v314 = vld [vmem:[#allocation2 + $0x88] sm:$0xff]
    %v315 = vld [vmem:[#allocation2 + $0x90] sm:$0xff]
    %v316 = vld [vmem:[#allocation2 + $0x98] sm:$0xff]
    %v317 = vld [vmem:[#allocation2 + $0xa0] sm:$0xff]
    %v318 = vld [vmem:[#allocation2 + $0xa8] sm:$0xff]
    %v319 = vld [vmem:[#allocation2 + $0xb0] sm:$0xff]
    %v320 = vld [vmem:[#allocation2 + $0xb8] sm:$0xff]
    %v321 = vld [vmem:[#allocation2 + $0xc0] sm:$0xff]
    %v322 = vld [vmem:[#allocation2 + $0xc8] sm:$0xff]
    %v323 = vld [vmem:[#allocation2 + $0xd0] sm:$0xff]
    %v324 = vld [vmem:[#allocation2 + $0xd8] sm:$0xff]
    %v325 = vld [vmem:[#allocation2 + $0xe0] sm:$0xff]
    %v326 = vld [vmem:[#allocation2 + $0xe8] sm:$0xff]
    %v327 = vld [vmem:[#allocation2 + $0xf0] sm:$0xff]
    %v328 = vld [vmem:[#allocation2 + $0xf8] sm:$0xff]
    %v329 = vld [vmem:[#allocation2 + $0x100] sm:$0xff]
    %v330 = vld [vmem:[#allocation2 + $0x108] sm:$0xff]
    %v331 = vld [vmem:[#allocation2 + $0x110] sm:$0xff]
    %v332 = vld [vmem:[#allocation2 + $0x118] sm:$0xff]
    %v333 = vld [vmem:[#allocation2 + $0x120] sm:$0xff]
    %v334 = vld [vmem:[#allocation2 + $0x128] sm:$0xff]
    %v335 = vld [vmem:[#allocation2 + $0x130] sm:$0xff]
    %v336 = vld [vmem:[#allocation2 + $0x138] sm:$0xff]
    %v337 = vld [vmem:[#allocation2 + $0x140] sm:$0xff]
    %v338 = vld [vmem:[#allocation2 + $0x148] sm:$0xff]
    %v339 = vld [vmem:[#allocation2 + $0x150] sm:$0xff]
    %v340 = vld [vmem:[#allocation2 + $0x158] sm:$0xff]
    %v341 = vld [vmem:[#allocation2 + $0x160] sm:$0xff]
    %v342 = vld [vmem:[#allocation2 + $0x168] sm:$0xff]
    %v343 = vld [vmem:[#allocation2 + $0x170] sm:$0xff]
    %v344 = vld [vmem:[#allocation2 + $0x178] sm:$0xff]
    %v345 = vld [vmem:[#allocation2 + $0x180] sm:$0xff]
    %v346 = vld [vmem:[#allocation2 + $0x188] sm:$0xff]
    %v347 = vld [vmem:[#allocation2 + $0x190] sm:$0xff]
    %v348 = vld [vmem:[#allocation2 + $0x198] sm:$0xff]
    %v349 = vld [vmem:[#allocation2 + $0x1a0] sm:$0xff]
    %v350 = vld [vmem:[#allocation2 + $0x1a8] sm:$0xff]
    %v351 = vld [vmem:[#allocation2 + $0x1b0] sm:$0xff]
    %v352 = vld [vmem:[#allocation2 + $0x1b8] sm:$0xff]
    %v353 = vld [vmem:[#allocation2 + $0x1c0] sm:$0xff]
    %v354 = vld [vmem:[#allocation2 + $0x1c8] sm:$0xff]
    %v355 = vld [vmem:[#allocation2 + $0x1d0] sm:$0xff]
    %v356 = vld [vmem:[#allocation2 + $0x1d8] sm:$0xff]
    %v357 = vld [vmem:[#allocation2 + $0x1e0] sm:$0xff]
    %v358 = vld [vmem:[#allocation2 + $0x1e8] sm:$0xff]
    %v359 = vld [vmem:[#allocation2 + $0x1f0] sm:$0xff]
    %v360 = vld [vmem:[#allocation2 + $0x1f8] sm:$0xff]
    %v361 = vld [vmem:[#allocation2 + $0x200] sm:$0xff]
    %v362 = vld [vmem:[#allocation2 + $0x208] sm:$0xff]
    %v363 = vld [vmem:[#allocation2 + $0x210] sm:$0xff]
    %v364 = vld [vmem:[#allocation2 + $0x218] sm:$0xff]
    %v365 = vld [vmem:[#allocation2 + $0x220] sm:$0xff]
    %v366 = vld [vmem:[#allocation2 + $0x228] sm:$0xff]
    %v367 = vld [vmem:[#allocation2 + $0x230] sm:$0xff]
    %v368 = vld [vmem:[#allocation2 + $0x238] sm:$0xff]
    %v369 = vld [vmem:[#allocation2 + $0x240] sm:$0xff]
    %v370 = vld [vmem:[#allocation2 + $0x248] sm:$0xff]
    %v371 = vld [vmem:[#allocation2 + $0x250] sm:$0xff]
    %v372 = vld [vmem:[#allocation2 + $0x258] sm:$0xff]
    %v373 = vld [vmem:[#allocation2 + $0x260] sm:$0xff]
    %v374 = vld [vmem:[#allocation2 + $0x268] sm:$0xff]
    %v375 = vld [vmem:[#allocation2 + $0x270] sm:$0xff]
    %v376 = vld [vmem:[#allocation2 + $0x278] sm:$0xff]
    %v377 = vld [vmem:[#allocation2 + $0x280] sm:$0xff]
    %v378 = vld [vmem:[#allocation2 + $0x288] sm:$0xff]
    %v379 = vld [vmem:[#allocation2 + $0x290] sm:$0xff]
    %v380 = vld [vmem:[#allocation2 + $0x298] sm:$0xff]
    %v381 = vld [vmem:[#allocation2 + $0x2a0] sm:$0xff]
    %v382 = vld [vmem:[#allocation2 + $0x2a8] sm:$0xff]
    %v383 = vld [vmem:[#allocation2 + $0x2b0] sm:$0xff]
    %v384 = vld [vmem:[#allocation2 + $0x2b8] sm:$0xff]
    %v385 = vld [vmem:[#allocation2 + $0x2c0] sm:$0xff]
    %v386 = vld [vmem:[#allocation2 + $0x2c8] sm:$0xff]
    %v387 = vld [vmem:[#allocation2 + $0x2d0] sm:$0xff]
    %v388 = vld [vmem:[#allocation2 + $0x2d8] sm:$0xff]
    %v389 = vld [vmem:[#allocation2 + $0x2e0] sm:$0xff]
    %v390 = vld [vmem:[#allocation2 + $0x2e8] sm:$0xff]
    %v391 = vld [vmem:[#allocation2 + $0x2f0] sm:$0xff]
    %v392 = vld [vmem:[#allocation2 + $0x2f8] sm:$0xff]
    %v393 = vld [vmem:[#allocation2 + $0x300] sm:$0xff]
    %v394 = vld [vmem:[#allocation2 + $0x308] sm:$0xff]
    %v395 = vld [vmem:[#allocation2 + $0x310] sm:$0xff]
    %v396 = vld [vmem:[#allocation2 + $0x318] sm:$0xff]
    %v397 = vld [vmem:[#allocation2 + $0x320] sm:$0xff]
    %v398 = vld [vmem:[#allocation2 + $0x328] sm:$0xff]
    %v399 = vld [vmem:[#allocation2 + $0x330] sm:$0xff]
    %v400 = vld [vmem:[#allocation2 + $0x338] sm:$0xff]
    %v401 = vld [vmem:[#allocation2 + $0x340] sm:$0xff]
    %v402 = vld [vmem:[#allocation2 + $0x348] sm:$0xff]
    %v403 = vld [vmem:[#allocation2 + $0x350] sm:$0xff]
    %v404 = vld [vmem:[#allocation2 + $0x358] sm:$0xff]
    %v405 = vld [vmem:[#allocation2 + $0x360] sm:$0xff]
    %v406 = vld [vmem:[#allocation2 + $0x368] sm:$0xff]
    %v407 = vld [vmem:[#allocation2 + $0x370] sm:$0xff]
    %v408 = vld [vmem:[#allocation2 + $0x378] sm:$0xff]
    %v409 = vld [vmem:[#allocation2 + $0x380] sm:$0xff]
    %v410 = vld [vmem:[#allocation2 + $0x388] sm:$0xff]
    %v411 = vld [vmem:[#allocation2 + $0x390] sm:$0xff]
    %v412 = vld [vmem:[#allocation2 + $0x398] sm:$0xff]
    %v413 = vld [vmem:[#allocation2 + $0x3a0] sm:$0xff]
    %v414 = vld [vmem:[#allocation2 + $0x3a8] sm:$0xff]
    %v415 = vld [vmem:[#allocation2 + $0x3b0] sm:$0xff]
    %v416 = vld [vmem:[#allocation2 + $0x3b8] sm:$0xff]
    %v417 = vld [vmem:[#allocation2 + $0x3c0] sm:$0xff]
    %v418 = vld [vmem:[#allocation2 + $0x3c8] sm:$0xff]
    %v419 = vld [vmem:[#allocation2 + $0x3d0] sm:$0xff]
    %v420 = vld [vmem:[#allocation2 + $0x3d8] sm:$0xff]
    %v421 = vld [vmem:[#allocation2 + $0x3e0] sm:$0xff]
    %v422 = vld [vmem:[#allocation2 + $0x3e8] sm:$0xff]
    %v423 = vld [vmem:[#allocation2 + $0x3f0] sm:$0xff]
    %v424 = vld [vmem:[#allocation2 + $0x3f8] sm:$0xff]
    %v425 = vld [vmem:[#allocation2 + $0x400] sm:$0xff]
    %v426 = vld [vmem:[#allocation2 + $0x408] sm:$0xff]
    %v427 = vld [vmem:[#allocation2 + $0x410] sm:$0xff]
    %v428 = vld [vmem:[#allocation2 + $0x418] sm:$0xff]
    %v429 = vld [vmem:[#allocation2 + $0x420] sm:$0xff]
    %v430 = vld [vmem:[#allocation2 + $0x428] sm:$0xff]
    %v431 = vld [vmem:[#allocation2 + $0x430] sm:$0xff]
    %v432 = vld [vmem:[#allocation2 + $0x438] sm:$0xff]
    %v433 = vld [vmem:[#allocation2 + $0x440] sm:$0xff]
    %v434 = vld [vmem:[#allocation2 + $0x448] sm:$0xff]
    %v435 = vld [vmem:[#allocation2 + $0x450] sm:$0xff]
    %v436 = vld [vmem:[#allocation2 + $0x458] sm:$0xff]
    %v437 = vld [vmem:[#allocation2 + $0x460] sm:$0xff]
    %v438 = vld [vmem:[#allocation2 + $0x468] sm:$0xff]
    %v439 = vld [vmem:[#allocation2 + $0x470] sm:$0xff]
    %v440 = vld [vmem:[#allocation2 + $0x478] sm:$0xff]
    %v441 = vld [vmem:[#allocation2 + $0x480] sm:$0xff]
    %v442 = vld [vmem:[#allocation2 + $0x488] sm:$0xff]
    %v443 = vld [vmem:[#allocation2 + $0x490] sm:$0xff]
    %v444 = vld [vmem:[#allocation2 + $0x498] sm:$0xff]
    %v445 = vld [vmem:[#allocation2 + $0x4a0] sm:$0xff]
    %v446 = vld [vmem:[#allocation2 + $0x4a8] sm:$0xff]
    %v447 = vld [vmem:[#allocation2 + $0x4b0] sm:$0xff]
    %v448 = vld [vmem:[#allocation2 + $0x4b8] sm:$0xff]
    %v449 = vld [vmem:[#allocation2 + $0x4c0] sm:$0xff]
    %v450 = vld [vmem:[#allocation2 + $0x4c8] sm:$0xff]
    %v451 = vld [vmem:[#allocation2 + $0x4d0] sm:$0xff]
    %v452 = vld [vmem:[#allocation2 + $0x4d8] sm:$0xff]
    %v453 = vld [vmem:[#allocation2 + $0x4e0] sm:$0xff]
    %v454 = vld [vmem:[#allocation2 + $0x4e8] sm:$0xff]
    %v455 = vld [vmem:[#allocation2 + $0x4f0] sm:$0xff]
    %v456 = vld [vmem:[#allocation2 + $0x4f8] sm:$0xff]
    %v457 = vld [vmem:[#allocation2 + $0x500] sm:$0xff]
    %v458 = vld [vmem:[#allocation2 + $0x508] sm:$0xff]
    %v459 = vld [vmem:[#allocation2 + $0x510] sm:$0xff]
    %v460 = vld [vmem:[#allocation2 + $0x518] sm:$0xff]
    %v461 = vld [vmem:[#allocation2 + $0x520] sm:$0xff]
    %v462 = vld [vmem:[#allocation2 + $0x528] sm:$0xff]
    %v463 = vld [vmem:[#allocation2 + $0x530] sm:$0xff]
    %v464 = vld [vmem:[#allocation2 + $0x538] sm:$0xff]
    %v465 = vld [vmem:[#allocation2 + $0x540] sm:$0xff]
    %v466 = vld [vmem:[#allocation2 + $0x548] sm:$0xff]
    %v467 = vld [vmem:[#allocation2 + $0x550] sm:$0xff]
    %v468 = vld [vmem:[#allocation2 + $0x558] sm:$0xff]
    %v469 = vld [vmem:[#allocation2 + $0x560] sm:$0xff]
    %v470 = vld [vmem:[#allocation2 + $0x568] sm:$0xff]
    %v471 = vld [vmem:[#allocation2 + $0x570] sm:$0xff]
    %v472 = vld [vmem:[#allocation2 + $0x578] sm:$0xff]
    %v473 = vld [vmem:[#allocation2 + $0x580] sm:$0xff]
    %v474 = vld [vmem:[#allocation2 + $0x588] sm:$0xff]
    %v475 = vld [vmem:[#allocation2 + $0x590] sm:$0xff]
    %v476 = vld [vmem:[#allocation2 + $0x598] sm:$0xff]
    %v477 = vld [vmem:[#allocation2 + $0x5a0] sm:$0xff]
    %v478 = vld [vmem:[#allocation2 + $0x5a8] sm:$0xff]
    %v479 = vld [vmem:[#allocation2 + $0x5b0] sm:$0xff]
    %v480 = vld [vmem:[#allocation2 + $0x5b8] sm:$0xff]
    %v481 = vld [vmem:[#allocation2 + $0x5c0] sm:$0xff]
    %v482 = vld [vmem:[#allocation2 + $0x5c8] sm:$0xff]
    %v483 = vld [vmem:[#allocation2 + $0x5d0] sm:$0xff]
    %v484 = vld [vmem:[#allocation2 + $0x5d8] sm:$0xff]
    %v485 = vld [vmem:[#allocation2 + $0x5e0] sm:$0xff]
    %v486 = vld [vmem:[#allocation2 + $0x5e8] sm:$0xff]
    %v487 = vld [vmem:[#allocation2 + $0x5f0] sm:$0xff]
    %v488 = vld [vmem:[#allocation2 + $0x5f8] sm:$0xff]
    %v489 = vld [vmem:[#allocation2 + $0x600] sm:$0xff]
    %v490 = vld [vmem:[#allocation2 + $0x608] sm:$0xff]
    %v491 = vld [vmem:[#allocation2 + $0x610] sm:$0xff]
    %v492 = vld [vmem:[#allocation2 + $0x618] sm:$0xff]
    %v493 = vld [vmem:[#allocation2 + $0x620] sm:$0xff]
    %v494 = vld [vmem:[#allocation2 + $0x628] sm:$0xff]
    %v495 = vld [vmem:[#allocation2 + $0x630] sm:$0xff]
    %v496 = vld [vmem:[#allocation2 + $0x638] sm:$0xff]
    %v497 = vld [vmem:[#allocation2 + $0x640] sm:$0xff]
    %v498 = vld [vmem:[#allocation2 + $0x648] sm:$0xff]
    %v499 = vld [vmem:[#allocation2 + $0x650] sm:$0xff]
    %v500 = vld [vmem:[#allocation2 + $0x658] sm:$0xff]
    %v501 = vld [vmem:[#allocation2 + $0x660] sm:$0xff]
    %v502 = vld [vmem:[#allocation2 + $0x668] sm:$0xff]
    %v503 = vld [vmem:[#allocation2 + $0x670] sm:$0xff]
    %v504 = vld [vmem:[#allocation2 + $0x678] sm:$0xff]
    %v505 = vld [vmem:[#allocation2 + $0x680] sm:$0xff]
    %v506 = vld [vmem:[#allocation2 + $0x688] sm:$0xff]
    %v507 = vld [vmem:[#allocation2 + $0x690] sm:$0xff]
    %v508 = vld [vmem:[#allocation2 + $0x698] sm:$0xff]
    %v509 = vld [vmem:[#allocation2 + $0x6a0] sm:$0xff]
    %v510 = vld [vmem:[#allocation2 + $0x6a8] sm:$0xff]
    %v511 = vld [vmem:[#allocation2 + $0x6b0] sm:$0xff]
    %v512 = vld [vmem:[#allocation2 + $0x6b8] sm:$0xff]
    %v513 = vld [vmem:[#allocation2 + $0x6c0] sm:$0xff]
    %v514 = vld [vmem:[#allocation2 + $0x6c8] sm:$0xff]
    %v515 = vld [vmem:[#allocation2 + $0x6d0] sm:$0xff]
    %v516 = vld [vmem:[#allocation2 + $0x6d8] sm:$0xff]
    %v517 = vld [vmem:[#allocation2 + $0x6e0] sm:$0xff]
    %v518 = vld [vmem:[#allocation2 + $0x6e8] sm:$0xff]
    %v519 = vld [vmem:[#allocation2 + $0x6f0] sm:$0xff]
    %v520 = vld [vmem:[#allocation2 + $0x6f8] sm:$0xff]
    %v521 = vld [vmem:[#allocation2 + $0x700] sm:$0xff]
    %v522 = vld [vmem:[#allocation2 + $0x708] sm:$0xff]
    %v523 = vld [vmem:[#allocation2 + $0x710] sm:$0xff]
    %v524 = vld [vmem:[#allocation2 + $0x718] sm:$0xff]
    %v525 = vld [vmem:[#allocation2 + $0x720] sm:$0xff]
    %v526 = vld [vmem:[#allocation2 + $0x728] sm:$0xff]
    %v527 = vld [vmem:[#allocation2 + $0x730] sm:$0xff]
    %v528 = vld [vmem:[#allocation2 + $0x738] sm:$0xff]
    %v529 = vld [vmem:[#allocation2 + $0x740] sm:$0xff]
    %v530 = vld [vmem:[#allocation2 + $0x748] sm:$0xff]
    %v531 = vld [vmem:[#allocation2 + $0x750] sm:$0xff]
    %v532 = vld [vmem:[#allocation2 + $0x758] sm:$0xff]
    %v533 = vld [vmem:[#allocation2 + $0x760] sm:$0xff]
    %v534 = vld [vmem:[#allocation2 + $0x768] sm:$0xff]
    %v535 = vld [vmem:[#allocation2 + $0x770] sm:$0xff]
    %v536 = vld [vmem:[#allocation2 + $0x778] sm:$0xff]
    %v537 = vld [vmem:[#allocation2 + $0x780] sm:$0xff]
    %v538 = vld [vmem:[#allocation2 + $0x788] sm:$0xff]
    %v539 = vld [vmem:[#allocation2 + $0x790] sm:$0xff]
    %v540 = vld [vmem:[#allocation2 + $0x798] sm:$0xff]
    %v541 = vld [vmem:[#allocation2 + $0x7a0] sm:$0xff]
    %v542 = vld [vmem:[#allocation2 + $0x7a8] sm:$0xff]
    %v543 = vld [vmem:[#allocation2 + $0x7b0] sm:$0xff]
    %v544 = vld [vmem:[#allocation2 + $0x7b8] sm:$0xff]
    %v545 = vld [vmem:[#allocation2 + $0x7c0] sm:$0xff]
    %v546 = vld [vmem:[#allocation2 + $0x7c8] sm:$0xff]
    %v547 = vld [vmem:[#allocation2 + $0x7d0] sm:$0xff]
    %v548 = vld [vmem:[#allocation2 + $0x7d8] sm:$0xff]
    %v549 = vld [vmem:[#allocation2 + $0x7e0] sm:$0xff]
    %v550 = vld [vmem:[#allocation2 + $0x7e8] sm:$0xff]
    %v551 = vld [vmem:[#allocation2 + $0x7f0] sm:$0xff]
    %v552 = vld [vmem:[#allocation2 + $0x7f8] sm:$0xff]
    %v553 = vunpack.c.0.s8 %v297
    %v554 = vunpack.c.0.s8 %v298
    %v555 = vunpack.c.0.s8 %v299
    %v556 = vunpack.c.0.s8 %v300
    %v557 = vunpack.c.0.s8 %v301
    %v558 = vunpack.c.0.s8 %v302
    %v559 = vunpack.c.0.s8 %v303
    %v560 = vunpack.c.0.s8 %v304
    %v561 = vunpack.c.1.s8 %v297
    %v562 = vunpack.c.1.s8 %v298
    %v563 = vunpack.c.1.s8 %v299
    %v564 = vunpack.c.1.s8 %v300
    %v565 = vunpack.c.1.s8 %v301
    %v566 = vunpack.c.1.s8 %v302
    %v567 = vunpack.c.1.s8 %v303
    %v568 = vunpack.c.1.s8 %v304
    %v569 = vunpack.c.2.s8 %v297
    %v570 = vunpack.c.2.s8 %v298
    %v571 = vunpack.c.2.s8 %v299
    %v572 = vunpack.c.2.s8 %v300
    %v573 = vunpack.c.2.s8 %v301
    %v574 = vunpack.c.2.s8 %v302
    %v575 = vunpack.c.2.s8 %v303
    %v576 = vunpack.c.2.s8 %v304
    %v577 = vunpack.c.3.s8 %v297
    %v578 = vunpack.c.3.s8 %v298
    %v579 = vunpack.c.3.s8 %v299
    %v580 = vunpack.c.3.s8 %v300
    %v581 = vunpack.c.3.s8 %v301
    %v582 = vunpack.c.3.s8 %v302
    %v583 = vunpack.c.3.s8 %v303
    %v584 = vunpack.c.3.s8 %v304
    %v585 = vunpack.c.0.s8 %v305
    %v586 = vunpack.c.0.s8 %v306
    %v587 = vunpack.c.0.s8 %v307
    %v588 = vunpack.c.0.s8 %v308
    %v589 = vunpack.c.0.s8 %v309
    %v590 = vunpack.c.0.s8 %v310
    %v591 = vunpack.c.0.s8 %v311
    %v592 = vunpack.c.0.s8 %v312
    %v593 = vunpack.c.1.s8 %v305
    %v594 = vunpack.c.1.s8 %v306
    %v595 = vunpack.c.1.s8 %v307
    %v596 = vunpack.c.1.s8 %v308
    %v597 = vunpack.c.1.s8 %v309
    %v598 = vunpack.c.1.s8 %v310
    %v599 = vunpack.c.1.s8 %v311
    %v600 = vunpack.c.1.s8 %v312
    %v601 = vunpack.c.2.s8 %v305
    %v602 = vunpack.c.2.s8 %v306
    %v603 = vunpack.c.2.s8 %v307
    %v604 = vunpack.c.2.s8 %v308
    %v605 = vunpack.c.2.s8 %v309
    %v606 = vunpack.c.2.s8 %v310
    %v607 = vunpack.c.2.s8 %v311
    %v608 = vunpack.c.2.s8 %v312
    %v609 = vunpack.c.3.s8 %v305
    %v610 = vunpack.c.3.s8 %v306
    %v611 = vunpack.c.3.s8 %v307
    %v612 = vunpack.c.3.s8 %v308
    %v613 = vunpack.c.3.s8 %v309
    %v614 = vunpack.c.3.s8 %v310
    %v615 = vunpack.c.3.s8 %v311
    %v616 = vunpack.c.3.s8 %v312
    %v617 = vunpack.c.0.s8 %v313
    %v618 = vunpack.c.0.s8 %v314
    %v619 = vunpack.c.0.s8 %v315
    %v620 = vunpack.c.0.s8 %v316
    %v621 = vunpack.c.0.s8 %v317
    %v622 = vunpack.c.0.s8 %v318
    %v623 = vunpack.c.0.s8 %v319
    %v624 = vunpack.c.0.s8 %v320
    %v625 = vunpack.c.1.s8 %v313
    %v626 = vunpack.c.1.s8 %v314
    %v627 = vunpack.c.1.s8 %v315
    %v628 = vunpack.c.1.s8 %v316
    %v629 = vunpack.c.1.s8 %v317
    %v630 = vunpack.c.1.s8 %v318
    %v631 = vunpack.c.1.s8 %v319
    %v632 = vunpack.c.1.s8 %v320
    %v633 = vunpack.c.2.s8 %v313
    %v634 = vunpack.c.2.s8 %v314
    %v635 = vunpack.c.2.s8 %v315
    %v636 = vunpack.c.2.s8 %v316
    %v637 = vunpack.c.2.s8 %v317
    %v638 = vunpack.c.2.s8 %v318
    %v639 = vunpack.c.2.s8 %v319
    %v640 = vunpack.c.2.s8 %v320
    %v641 = vunpack.c.3.s8 %v313
    %v642 = vunpack.c.3.s8 %v314
    %v643 = vunpack.c.3.s8 %v315
    %v644 = vunpack.c.3.s8 %v316
    %v645 = vunpack.c.3.s8 %v317
    %v646 = vunpack.c.3.s8 %v318
    %v647 = vunpack.c.3.s8 %v319
    %v648 = vunpack.c.3.s8 %v320
    %v649 = vunpack.c.0.s8 %v321
    %v650 = vunpack.c.0.s8 %v322
    %v651 = vunpack.c.0.s8 %v323
    %v652 = vunpack.c.0.s8 %v324
    %v653 = vunpack.c.0.s8 %v325
    %v654 = vunpack.c.0.s8 %v326
    %v655 = vunpack.c.0.s8 %v327
    %v656 = vunpack.c.0.s8 %v328
    %v657 = vunpack.c.1.s8 %v321
    %v658 = vunpack.c.1.s8 %v322
    %v659 = vunpack.c.1.s8 %v323
    %v660 = vunpack.c.1.s8 %v324
    %v661 = vunpack.c.1.s8 %v325
    %v662 = vunpack.c.1.s8 %v326
    %v663 = vunpack.c.1.s8 %v327
    %v664 = vunpack.c.1.s8 %v328
    %v665 = vunpack.c.2.s8 %v321
    %v666 = vunpack.c.2.s8 %v322
    %v667 = vunpack.c.2.s8 %v323
    %v668 = vunpack.c.2.s8 %v324
    %v669 = vunpack.c.2.s8 %v325
    %v670 = vunpack.c.2.s8 %v326
    %v671 = vunpack.c.2.s8 %v327
    %v672 = vunpack.c.2.s8 %v328
    %v673 = vunpack.c.3.s8 %v321
    %v674 = vunpack.c.3.s8 %v322
    %v675 = vunpack.c.3.s8 %v323
    %v676 = vunpack.c.3.s8 %v324
    %v677 = vunpack.c.3.s8 %v325
    %v678 = vunpack.c.3.s8 %v326
    %v679 = vunpack.c.3.s8 %v327
    %v680 = vunpack.c.3.s8 %v328
    %v681 = vunpack.c.0.s8 %v329
    %v682 = vunpack.c.0.s8 %v330
    %v683 = vunpack.c.0.s8 %v331
    %v684 = vunpack.c.0.s8 %v332
    %v685 = vunpack.c.0.s8 %v333
    %v686 = vunpack.c.0.s8 %v334
    %v687 = vunpack.c.0.s8 %v335
    %v688 = vunpack.c.0.s8 %v336
    %v689 = vunpack.c.1.s8 %v329
    %v690 = vunpack.c.1.s8 %v330
    %v691 = vunpack.c.1.s8 %v331
    %v692 = vunpack.c.1.s8 %v332
    %v693 = vunpack.c.1.s8 %v333
    %v694 = vunpack.c.1.s8 %v334
    %v695 = vunpack.c.1.s8 %v335
    %v696 = vunpack.c.1.s8 %v336
    %v697 = vunpack.c.2.s8 %v329
    %v698 = vunpack.c.2.s8 %v330
    %v699 = vunpack.c.2.s8 %v331
    %v700 = vunpack.c.2.s8 %v332
    %v701 = vunpack.c.2.s8 %v333
    %v702 = vunpack.c.2.s8 %v334
    %v703 = vunpack.c.2.s8 %v335
    %v704 = vunpack.c.2.s8 %v336
    %v705 = vunpack.c.3.s8 %v329
    %v706 = vunpack.c.3.s8 %v330
    %v707 = vunpack.c.3.s8 %v331
    %v708 = vunpack.c.3.s8 %v332
    %v709 = vunpack.c.3.s8 %v333
    %v710 = vunpack.c.3.s8 %v334
    %v711 = vunpack.c.3.s8 %v335
    %v712 = vunpack.c.3.s8 %v336
    %v713 = vunpack.c.0.s8 %v337
    %v714 = vunpack.c.0.s8 %v338
    %v715 = vunpack.c.0.s8 %v339
    %v716 = vunpack.c.0.s8 %v340
    %v717 = vunpack.c.0.s8 %v341
    %v718 = vunpack.c.0.s8 %v342
    %v719 = vunpack.c.0.s8 %v343
    %v720 = vunpack.c.0.s8 %v344
    %v721 = vunpack.c.1.s8 %v337
    %v722 = vunpack.c.1.s8 %v338
    %v723 = vunpack.c.1.s8 %v339
    %v724 = vunpack.c.1.s8 %v340
    %v725 = vunpack.c.1.s8 %v341
    %v726 = vunpack.c.1.s8 %v342
    %v727 = vunpack.c.1.s8 %v343
    %v728 = vunpack.c.1.s8 %v344
    %v729 = vunpack.c.2.s8 %v337
    %v730 = vunpack.c.2.s8 %v338
    %v731 = vunpack.c.2.s8 %v339
    %v732 = vunpack.c.2.s8 %v340
    %v733 = vunpack.c.2.s8 %v341
    %v734 = vunpack.c.2.s8 %v342
    %v735 = vunpack.c.2.s8 %v343
    %v736 = vunpack.c.2.s8 %v344
    %v737 = vunpack.c.3.s8 %v337
    %v738 = vunpack.c.3.s8 %v338
    %v739 = vunpack.c.3.s8 %v339
    %v740 = vunpack.c.3.s8 %v340
    %v741 = vunpack.c.3.s8 %v341
    %v742 = vunpack.c.3.s8 %v342
    %v743 = vunpack.c.3.s8 %v343
    %v744 = vunpack.c.3.s8 %v344
    %v745 = vunpack.c.0.s8 %v345
    %v746 = vunpack.c.0.s8 %v346
    %v747 = vunpack.c.0.s8 %v347
    %v748 = vunpack.c.0.s8 %v348
    %v749 = vunpack.c.0.s8 %v349
    %v750 = vunpack.c.0.s8 %v350
    %v751 = vunpack.c.0.s8 %v351
    %v752 = vunpack.c.0.s8 %v352
    %v753 = vunpack.c.1.s8 %v345
    %v754 = vunpack.c.1.s8 %v346
    %v755 = vunpack.c.1.s8 %v347
    %v756 = vunpack.c.1.s8 %v348
    %v757 = vunpack.c.1.s8 %v349
    %v758 = vunpack.c.1.s8 %v350
    %v759 = vunpack.c.1.s8 %v351
    %v760 = vunpack.c.1.s8 %v352
    %v761 = vunpack.c.2.s8 %v345
    %v762 = vunpack.c.2.s8 %v346
    %v763 = vunpack.c.2.s8 %v347
    %v764 = vunpack.c.2.s8 %v348
    %v765 = vunpack.c.2.s8 %v349
    %v766 = vunpack.c.2.s8 %v350
    %v767 = vunpack.c.2.s8 %v351
    %v768 = vunpack.c.2.s8 %v352
    %v769 = vunpack.c.3.s8 %v345
    %v770 = vunpack.c.3.s8 %v346
    %v771 = vunpack.c.3.s8 %v347
    %v772 = vunpack.c.3.s8 %v348
    %v773 = vunpack.c.3.s8 %v349
    %v774 = vunpack.c.3.s8 %v350
    %v775 = vunpack.c.3.s8 %v351
    %v776 = vunpack.c.3.s8 %v352
    %v777 = vunpack.c.0.s8 %v353
    %v778 = vunpack.c.0.s8 %v354
    %v779 = vunpack.c.0.s8 %v355
    %v780 = vunpack.c.0.s8 %v356
    %v781 = vunpack.c.0.s8 %v357
    %v782 = vunpack.c.0.s8 %v358
    %v783 = vunpack.c.0.s8 %v359
    %v784 = vunpack.c.0.s8 %v360
    %v785 = vunpack.c.1.s8 %v353
    %v786 = vunpack.c.1.s8 %v354
    %v787 = vunpack.c.1.s8 %v355
    %v788 = vunpack.c.1.s8 %v356
    %v789 = vunpack.c.1.s8 %v357
    %v790 = vunpack.c.1.s8 %v358
    %v791 = vunpack.c.1.s8 %v359
    %v792 = vunpack.c.1.s8 %v360
    %v793 = vunpack.c.2.s8 %v353
    %v794 = vunpack.c.2.s8 %v354
    %v795 = vunpack.c.2.s8 %v355
    %v796 = vunpack.c.2.s8 %v356
    %v797 = vunpack.c.2.s8 %v357
    %v798 = vunpack.c.2.s8 %v358
    %v799 = vunpack.c.2.s8 %v359
    %v800 = vunpack.c.2.s8 %v360
    %v801 = vunpack.c.3.s8 %v353
    %v802 = vunpack.c.3.s8 %v354
    %v803 = vunpack.c.3.s8 %v355
    %v804 = vunpack.c.3.s8 %v356
    %v805 = vunpack.c.3.s8 %v357
    %v806 = vunpack.c.3.s8 %v358
    %v807 = vunpack.c.3.s8 %v359
    %v808 = vunpack.c.3.s8 %v360
    %v809 = vunpack.c.0.s8 %v361
    %v810 = vunpack.c.0.s8 %v362
    %v811 = vunpack.c.0.s8 %v363
    %v812 = vunpack.c.0.s8 %v364
    %v813 = vunpack.c.0.s8 %v365
    %v814 = vunpack.c.0.s8 %v366
    %v815 = vunpack.c.0.s8 %v367
    %v816 = vunpack.c.0.s8 %v368
    %v817 = vunpack.c.1.s8 %v361
    %v818 = vunpack.c.1.s8 %v362
    %v819 = vunpack.c.1.s8 %v363
    %v820 = vunpack.c.1.s8 %v364
    %v821 = vunpack.c.1.s8 %v365
    %v822 = vunpack.c.1.s8 %v366
    %v823 = vunpack.c.1.s8 %v367
    %v824 = vunpack.c.1.s8 %v368
    %v825 = vunpack.c.2.s8 %v361
    %v826 = vunpack.c.2.s8 %v362
    %v827 = vunpack.c.2.s8 %v363
    %v828 = vunpack.c.2.s8 %v364
    %v829 = vunpack.c.2.s8 %v365
    %v830 = vunpack.c.2.s8 %v366
    %v831 = vunpack.c.2.s8 %v367
    %v832 = vunpack.c.2.s8 %v368
    %v833 = vunpack.c.3.s8 %v361
    %v834 = vunpack.c.3.s8 %v362
    %v835 = vunpack.c.3.s8 %v363
    %v836 = vunpack.c.3.s8 %v364
    %v837 = vunpack.c.3.s8 %v365
    %v838 = vunpack.c.3.s8 %v366
    %v839 = vunpack.c.3.s8 %v367
    %v840 = vunpack.c.3.s8 %v368
    %v841 = vunpack.c.0.s8 %v369
    %v842 = vunpack.c.0.s8 %v370
    %v843 = vunpack.c.0.s8 %v371
    %v844 = vunpack.c.0.s8 %v372
    %v845 = vunpack.c.0.s8 %v373
    %v846 = vunpack.c.0.s8 %v374
    %v847 = vunpack.c.0.s8 %v375
    %v848 = vunpack.c.0.s8 %v376
    %v849 = vunpack.c.1.s8 %v369
    %v850 = vunpack.c.1.s8 %v370
    %v851 = vunpack.c.1.s8 %v371
    %v852 = vunpack.c.1.s8 %v372
    %v853 = vunpack.c.1.s8 %v373
    %v854 = vunpack.c.1.s8 %v374
    %v855 = vunpack.c.1.s8 %v375
    %v856 = vunpack.c.1.s8 %v376
    %v857 = vunpack.c.2.s8 %v369
    %v858 = vunpack.c.2.s8 %v370
    %v859 = vunpack.c.2.s8 %v371
    %v860 = vunpack.c.2.s8 %v372
    %v861 = vunpack.c.2.s8 %v373
    %v862 = vunpack.c.2.s8 %v374
    %v863 = vunpack.c.2.s8 %v375
    %v864 = vunpack.c.2.s8 %v376
    %v865 = vunpack.c.3.s8 %v369
    %v866 = vunpack.c.3.s8 %v370
    %v867 = vunpack.c.3.s8 %v371
    %v868 = vunpack.c.3.s8 %v372
    %v869 = vunpack.c.3.s8 %v373
    %v870 = vunpack.c.3.s8 %v374
    %v871 = vunpack.c.3.s8 %v375
    %v872 = vunpack.c.3.s8 %v376
    %v873 = vunpack.c.0.s8 %v377
    %v874 = vunpack.c.0.s8 %v378
    %v875 = vunpack.c.0.s8 %v379
    %v876 = vunpack.c.0.s8 %v380
    %v877 = vunpack.c.0.s8 %v381
    %v878 = vunpack.c.0.s8 %v382
    %v879 = vunpack.c.0.s8 %v383
    %v880 = vunpack.c.0.s8 %v384
    %v881 = vunpack.c.1.s8 %v377
    %v882 = vunpack.c.1.s8 %v378
    %v883 = vunpack.c.1.s8 %v379
    %v884 = vunpack.c.1.s8 %v380
    %v885 = vunpack.c.1.s8 %v381
    %v886 = vunpack.c.1.s8 %v382
    %v887 = vunpack.c.1.s8 %v383
    %v888 = vunpack.c.1.s8 %v384
    %v889 = vunpack.c.2.s8 %v377
    %v890 = vunpack.c.2.s8 %v378
    %v891 = vunpack.c.2.s8 %v379
    %v892 = vunpack.c.2.s8 %v380
    %v893 = vunpack.c.2.s8 %v381
    %v894 = vunpack.c.2.s8 %v382
    %v895 = vunpack.c.2.s8 %v383
    %v896 = vunpack.c.2.s8 %v384
    %v897 = vunpack.c.3.s8 %v377
    %v898 = vunpack.c.3.s8 %v378
    %v899 = vunpack.c.3.s8 %v379
    %v900 = vunpack.c.3.s8 %v380
    %v901 = vunpack.c.3.s8 %v381
    %v902 = vunpack.c.3.s8 %v382
    %v903 = vunpack.c.3.s8 %v383
    %v904 = vunpack.c.3.s8 %v384
    %v905 = vunpack.c.0.s8 %v385
    %v906 = vunpack.c.0.s8 %v386
    %v907 = vunpack.c.0.s8 %v387
    %v908 = vunpack.c.0.s8 %v388
    %v909 = vunpack.c.0.s8 %v389
    %v910 = vunpack.c.0.s8 %v390
    %v911 = vunpack.c.0.s8 %v391
    %v912 = vunpack.c.0.s8 %v392
    %v913 = vunpack.c.1.s8 %v385
    %v914 = vunpack.c.1.s8 %v386
    %v915 = vunpack.c.1.s8 %v387
    %v916 = vunpack.c.1.s8 %v388
    %v917 = vunpack.c.1.s8 %v389
    %v918 = vunpack.c.1.s8 %v390
    %v919 = vunpack.c.1.s8 %v391
    %v920 = vunpack.c.1.s8 %v392
    %v921 = vunpack.c.2.s8 %v385
    %v922 = vunpack.c.2.s8 %v386
    %v923 = vunpack.c.2.s8 %v387
    %v924 = vunpack.c.2.s8 %v388
    %v925 = vunpack.c.2.s8 %v389
    %v926 = vunpack.c.2.s8 %v390
    %v927 = vunpack.c.2.s8 %v391
    %v928 = vunpack.c.2.s8 %v392
    %v929 = vunpack.c.3.s8 %v385
    %v930 = vunpack.c.3.s8 %v386
    %v931 = vunpack.c.3.s8 %v387
    %v932 = vunpack.c.3.s8 %v388
    %v933 = vunpack.c.3.s8 %v389
    %v934 = vunpack.c.3.s8 %v390
    %v935 = vunpack.c.3.s8 %v391
    %v936 = vunpack.c.3.s8 %v392
    %v937 = vunpack.c.0.s8 %v393
    %v938 = vunpack.c.0.s8 %v394
    %v939 = vunpack.c.0.s8 %v395
    %v940 = vunpack.c.0.s8 %v396
    %v941 = vunpack.c.0.s8 %v397
    %v942 = vunpack.c.0.s8 %v398
    %v943 = vunpack.c.0.s8 %v399
    %v944 = vunpack.c.0.s8 %v400
    %v945 = vunpack.c.1.s8 %v393
    %v946 = vunpack.c.1.s8 %v394
    %v947 = vunpack.c.1.s8 %v395
    %v948 = vunpack.c.1.s8 %v396
    %v949 = vunpack.c.1.s8 %v397
    %v950 = vunpack.c.1.s8 %v398
    %v951 = vunpack.c.1.s8 %v399
    %v952 = vunpack.c.1.s8 %v400
    %v953 = vunpack.c.2.s8 %v393
    %v954 = vunpack.c.2.s8 %v394
    %v955 = vunpack.c.2.s8 %v395
    %v956 = vunpack.c.2.s8 %v396
    %v957 = vunpack.c.2.s8 %v397
    %v958 = vunpack.c.2.s8 %v398
    %v959 = vunpack.c.2.s8 %v399
    %v960 = vunpack.c.2.s8 %v400
    %v961 = vunpack.c.3.s8 %v393
    %v962 = vunpack.c.3.s8 %v394
    %v963 = vunpack.c.3.s8 %v395
    %v964 = vunpack.c.3.s8 %v396
    %v965 = vunpack.c.3.s8 %v397
    %v966 = vunpack.c.3.s8 %v398
    %v967 = vunpack.c.3.s8 %v399
    %v968 = vunpack.c.3.s8 %v400
    %v969 = vunpack.c.0.s8 %v401
    %v970 = vunpack.c.0.s8 %v402
    %v971 = vunpack.c.0.s8 %v403
    %v972 = vunpack.c.0.s8 %v404
    %v973 = vunpack.c.0.s8 %v405
    %v974 = vunpack.c.0.s8 %v406
    %v975 = vunpack.c.0.s8 %v407
    %v976 = vunpack.c.0.s8 %v408
    %v977 = vunpack.c.1.s8 %v401
    %v978 = vunpack.c.1.s8 %v402
    %v979 = vunpack.c.1.s8 %v403
    %v980 = vunpack.c.1.s8 %v404
    %v981 = vunpack.c.1.s8 %v405
    %v982 = vunpack.c.1.s8 %v406
    %v983 = vunpack.c.1.s8 %v407
    %v984 = vunpack.c.1.s8 %v408
    %v985 = vunpack.c.2.s8 %v401
    %v986 = vunpack.c.2.s8 %v402
    %v987 = vunpack.c.2.s8 %v403
    %v988 = vunpack.c.2.s8 %v404
    %v989 = vunpack.c.2.s8 %v405
    %v990 = vunpack.c.2.s8 %v406
    %v991 = vunpack.c.2.s8 %v407
    %v992 = vunpack.c.2.s8 %v408
    %v993 = vunpack.c.3.s8 %v401
    %v994 = vunpack.c.3.s8 %v402
    %v995 = vunpack.c.3.s8 %v403
    %v996 = vunpack.c.3.s8 %v404
    %v997 = vunpack.c.3.s8 %v405
    %v998 = vunpack.c.3.s8 %v406
    %v999 = vunpack.c.3.s8 %v407
    %v1000 = vunpack.c.3.s8 %v408
    %v1001 = vunpack.c.0.s8 %v409
    %v1002 = vunpack.c.0.s8 %v410
    %v1003 = vunpack.c.0.s8 %v411
    %v1004 = vunpack.c.0.s8 %v412
    %v1005 = vunpack.c.0.s8 %v413
    %v1006 = vunpack.c.0.s8 %v414
    %v1007 = vunpack.c.0.s8 %v415
    %v1008 = vunpack.c.0.s8 %v416
    %v1009 = vunpack.c.1.s8 %v409
    %v1010 = vunpack.c.1.s8 %v410
    %v1011 = vunpack.c.1.s8 %v411
    %v1012 = vunpack.c.1.s8 %v412
    %v1013 = vunpack.c.1.s8 %v413
    %v1014 = vunpack.c.1.s8 %v414
    %v1015 = vunpack.c.1.s8 %v415
    %v1016 = vunpack.c.1.s8 %v416
    %v1017 = vunpack.c.2.s8 %v409
    %v1018 = vunpack.c.2.s8 %v410
    %v1019 = vunpack.c.2.s8 %v411
    %v1020 = vunpack.c.2.s8 %v412
    %v1021 = vunpack.c.2.s8 %v413
    %v1022 = vunpack.c.2.s8 %v414
    %v1023 = vunpack.c.2.s8 %v415
    %v1024 = vunpack.c.2.s8 %v416
    %v1025 = vunpack.c.3.s8 %v409
    %v1026 = vunpack.c.3.s8 %v410
    %v1027 = vunpack.c.3.s8 %v411
    %v1028 = vunpack.c.3.s8 %v412
    %v1029 = vunpack.c.3.s8 %v413
    %v1030 = vunpack.c.3.s8 %v414
    %v1031 = vunpack.c.3.s8 %v415
    %v1032 = vunpack.c.3.s8 %v416
    %v1033 = vunpack.c.0.s8 %v417
    %v1034 = vunpack.c.0.s8 %v418
    %v1035 = vunpack.c.0.s8 %v419
    %v1036 = vunpack.c.0.s8 %v420
    %v1037 = vunpack.c.0.s8 %v421
    %v1038 = vunpack.c.0.s8 %v422
    %v1039 = vunpack.c.0.s8 %v423
    %v1040 = vunpack.c.0.s8 %v424
    %v1041 = vunpack.c.1.s8 %v417
    %v1042 = vunpack.c.1.s8 %v418
    %v1043 = vunpack.c.1.s8 %v419
    %v1044 = vunpack.c.1.s8 %v420
    %v1045 = vunpack.c.1.s8 %v421
    %v1046 = vunpack.c.1.s8 %v422
    %v1047 = vunpack.c.1.s8 %v423
    %v1048 = vunpack.c.1.s8 %v424
    %v1049 = vunpack.c.2.s8 %v417
    %v1050 = vunpack.c.2.s8 %v418
    %v1051 = vunpack.c.2.s8 %v419
    %v1052 = vunpack.c.2.s8 %v420
    %v1053 = vunpack.c.2.s8 %v421
    %v1054 = vunpack.c.2.s8 %v422
    %v1055 = vunpack.c.2.s8 %v423
    %v1056 = vunpack.c.2.s8 %v424
    %v1057 = vunpack.c.3.s8 %v417
    %v1058 = vunpack.c.3.s8 %v418
    %v1059 = vunpack.c.3.s8 %v419
    %v1060 = vunpack.c.3.s8 %v420
    %v1061 = vunpack.c.3.s8 %v421
    %v1062 = vunpack.c.3.s8 %v422
    %v1063 = vunpack.c.3.s8 %v423
    %v1064 = vunpack.c.3.s8 %v424
    %v1065 = vunpack.c.0.s8 %v425
    %v1066 = vunpack.c.0.s8 %v426
    %v1067 = vunpack.c.0.s8 %v427
    %v1068 = vunpack.c.0.s8 %v428
    %v1069 = vunpack.c.0.s8 %v429
    %v1070 = vunpack.c.0.s8 %v430
    %v1071 = vunpack.c.0.s8 %v431
    %v1072 = vunpack.c.0.s8 %v432
    %v1073 = vunpack.c.1.s8 %v425
    %v1074 = vunpack.c.1.s8 %v426
    %v1075 = vunpack.c.1.s8 %v427
    %v1076 = vunpack.c.1.s8 %v428
    %v1077 = vunpack.c.1.s8 %v429
    %v1078 = vunpack.c.1.s8 %v430
    %v1079 = vunpack.c.1.s8 %v431
    %v1080 = vunpack.c.1.s8 %v432
    %v1081 = vunpack.c.2.s8 %v425
    %v1082 = vunpack.c.2.s8 %v426
    %v1083 = vunpack.c.2.s8 %v427
    %v1084 = vunpack.c.2.s8 %v428
    %v1085 = vunpack.c.2.s8 %v429
    %v1086 = vunpack.c.2.s8 %v430
    %v1087 = vunpack.c.2.s8 %v431
    %v1088 = vunpack.c.2.s8 %v432
    %v1089 = vunpack.c.3.s8 %v425
    %v1090 = vunpack.c.3.s8 %v426
    %v1091 = vunpack.c.3.s8 %v427
    %v1092 = vunpack.c.3.s8 %v428
    %v1093 = vunpack.c.3.s8 %v429
    %v1094 = vunpack.c.3.s8 %v430
    %v1095 = vunpack.c.3.s8 %v431
    %v1096 = vunpack.c.3.s8 %v432
    %v1097 = vunpack.c.0.s8 %v433
    %v1098 = vunpack.c.0.s8 %v434
    %v1099 = vunpack.c.0.s8 %v435
    %v1100 = vunpack.c.0.s8 %v436
    %v1101 = vunpack.c.0.s8 %v437
    %v1102 = vunpack.c.0.s8 %v438
    %v1103 = vunpack.c.0.s8 %v439
    %v1104 = vunpack.c.0.s8 %v440
    %v1105 = vunpack.c.1.s8 %v433
    %v1106 = vunpack.c.1.s8 %v434
    %v1107 = vunpack.c.1.s8 %v435
    %v1108 = vunpack.c.1.s8 %v436
    %v1109 = vunpack.c.1.s8 %v437
    %v1110 = vunpack.c.1.s8 %v438
    %v1111 = vunpack.c.1.s8 %v439
    %v1112 = vunpack.c.1.s8 %v440
    %v1113 = vunpack.c.2.s8 %v433
    %v1114 = vunpack.c.2.s8 %v434
    %v1115 = vunpack.c.2.s8 %v435
    %v1116 = vunpack.c.2.s8 %v436
    %v1117 = vunpack.c.2.s8 %v437
    %v1118 = vunpack.c.2.s8 %v438
    %v1119 = vunpack.c.2.s8 %v439
    %v1120 = vunpack.c.2.s8 %v440
    %v1121 = vunpack.c.3.s8 %v433
    %v1122 = vunpack.c.3.s8 %v434
    %v1123 = vunpack.c.3.s8 %v435
    %v1124 = vunpack.c.3.s8 %v436
    %v1125 = vunpack.c.3.s8 %v437
    %v1126 = vunpack.c.3.s8 %v438
    %v1127 = vunpack.c.3.s8 %v439
    %v1128 = vunpack.c.3.s8 %v440
    %v1129 = vunpack.c.0.s8 %v441
    %v1130 = vunpack.c.0.s8 %v442
    %v1131 = vunpack.c.0.s8 %v443
    %v1132 = vunpack.c.0.s8 %v444
    %v1133 = vunpack.c.0.s8 %v445
    %v1134 = vunpack.c.0.s8 %v446
    %v1135 = vunpack.c.0.s8 %v447
    %v1136 = vunpack.c.0.s8 %v448
    %v1137 = vunpack.c.1.s8 %v441
    %v1138 = vunpack.c.1.s8 %v442
    %v1139 = vunpack.c.1.s8 %v443
    %v1140 = vunpack.c.1.s8 %v444
    %v1141 = vunpack.c.1.s8 %v445
    %v1142 = vunpack.c.1.s8 %v446
    %v1143 = vunpack.c.1.s8 %v447
    %v1144 = vunpack.c.1.s8 %v448
    %v1145 = vunpack.c.2.s8 %v441
    %v1146 = vunpack.c.2.s8 %v442
    %v1147 = vunpack.c.2.s8 %v443
    %v1148 = vunpack.c.2.s8 %v444
    %v1149 = vunpack.c.2.s8 %v445
    %v1150 = vunpack.c.2.s8 %v446
    %v1151 = vunpack.c.2.s8 %v447
    %v1152 = vunpack.c.2.s8 %v448
    %v1153 = vunpack.c.3.s8 %v441
    %v1154 = vunpack.c.3.s8 %v442
    %v1155 = vunpack.c.3.s8 %v443
    %v1156 = vunpack.c.3.s8 %v444
    %v1157 = vunpack.c.3.s8 %v445
    %v1158 = vunpack.c.3.s8 %v446
    %v1159 = vunpack.c.3.s8 %v447
    %v1160 = vunpack.c.3.s8 %v448
    %v1161 = vunpack.c.0.s8 %v449
    %v1162 = vunpack.c.0.s8 %v450
    %v1163 = vunpack.c.0.s8 %v451
    %v1164 = vunpack.c.0.s8 %v452
    %v1165 = vunpack.c.0.s8 %v453
    %v1166 = vunpack.c.0.s8 %v454
    %v1167 = vunpack.c.0.s8 %v455
    %v1168 = vunpack.c.0.s8 %v456
    %v1169 = vunpack.c.1.s8 %v449
    %v1170 = vunpack.c.1.s8 %v450
    %v1171 = vunpack.c.1.s8 %v451
    %v1172 = vunpack.c.1.s8 %v452
    %v1173 = vunpack.c.1.s8 %v453
    %v1174 = vunpack.c.1.s8 %v454
    %v1175 = vunpack.c.1.s8 %v455
    %v1176 = vunpack.c.1.s8 %v456
    %v1177 = vunpack.c.2.s8 %v449
    %v1178 = vunpack.c.2.s8 %v450
    %v1179 = vunpack.c.2.s8 %v451
    %v1180 = vunpack.c.2.s8 %v452
    %v1181 = vunpack.c.2.s8 %v453
    %v1182 = vunpack.c.2.s8 %v454
    %v1183 = vunpack.c.2.s8 %v455
    %v1184 = vunpack.c.2.s8 %v456
    %v1185 = vunpack.c.3.s8 %v449
    %v1186 = vunpack.c.3.s8 %v450
    %v1187 = vunpack.c.3.s8 %v451
    %v1188 = vunpack.c.3.s8 %v452
    %v1189 = vunpack.c.3.s8 %v453
    %v1190 = vunpack.c.3.s8 %v454
    %v1191 = vunpack.c.3.s8 %v455
    %v1192 = vunpack.c.3.s8 %v456
    %v1193 = vunpack.c.0.s8 %v457
    %v1194 = vunpack.c.0.s8 %v458
    %v1195 = vunpack.c.0.s8 %v459
    %v1196 = vunpack.c.0.s8 %v460
    %v1197 = vunpack.c.0.s8 %v461
    %v1198 = vunpack.c.0.s8 %v462
    %v1199 = vunpack.c.0.s8 %v463
    %v1200 = vunpack.c.0.s8 %v464
    %v1201 = vunpack.c.1.s8 %v457
    %v1202 = vunpack.c.1.s8 %v458
    %v1203 = vunpack.c.1.s8 %v459
    %v1204 = vunpack.c.1.s8 %v460
    %v1205 = vunpack.c.1.s8 %v461
    %v1206 = vunpack.c.1.s8 %v462
    %v1207 = vunpack.c.1.s8 %v463
    %v1208 = vunpack.c.1.s8 %v464
    %v1209 = vunpack.c.2.s8 %v457
    %v1210 = vunpack.c.2.s8 %v458
    %v1211 = vunpack.c.2.s8 %v459
    %v1212 = vunpack.c.2.s8 %v460
    %v1213 = vunpack.c.2.s8 %v461
    %v1214 = vunpack.c.2.s8 %v462
    %v1215 = vunpack.c.2.s8 %v463
    %v1216 = vunpack.c.2.s8 %v464
    %v1217 = vunpack.c.3.s8 %v457
    %v1218 = vunpack.c.3.s8 %v458
    %v1219 = vunpack.c.3.s8 %v459
    %v1220 = vunpack.c.3.s8 %v460
    %v1221 = vunpack.c.3.s8 %v461
    %v1222 = vunpack.c.3.s8 %v462
    %v1223 = vunpack.c.3.s8 %v463
    %v1224 = vunpack.c.3.s8 %v464
    %v1225 = vunpack.c.0.s8 %v465
    %v1226 = vunpack.c.0.s8 %v466
    %v1227 = vunpack.c.0.s8 %v467
    %v1228 = vunpack.c.0.s8 %v468
    %v1229 = vunpack.c.0.s8 %v469
    %v1230 = vunpack.c.0.s8 %v470
    %v1231 = vunpack.c.0.s8 %v471
    %v1232 = vunpack.c.0.s8 %v472
    %v1233 = vunpack.c.1.s8 %v465
    %v1234 = vunpack.c.1.s8 %v466
    %v1235 = vunpack.c.1.s8 %v467
    %v1236 = vunpack.c.1.s8 %v468
    %v1237 = vunpack.c.1.s8 %v469
    %v1238 = vunpack.c.1.s8 %v470
    %v1239 = vunpack.c.1.s8 %v471
    %v1240 = vunpack.c.1.s8 %v472
    %v1241 = vunpack.c.2.s8 %v465
    %v1242 = vunpack.c.2.s8 %v466
    %v1243 = vunpack.c.2.s8 %v467
    %v1244 = vunpack.c.2.s8 %v468
    %v1245 = vunpack.c.2.s8 %v469
    %v1246 = vunpack.c.2.s8 %v470
    %v1247 = vunpack.c.2.s8 %v471
    %v1248 = vunpack.c.2.s8 %v472
    %v1249 = vunpack.c.3.s8 %v465
    %v1250 = vunpack.c.3.s8 %v466
    %v1251 = vunpack.c.3.s8 %v467
    %v1252 = vunpack.c.3.s8 %v468
    %v1253 = vunpack.c.3.s8 %v469
    %v1254 = vunpack.c.3.s8 %v470
    %v1255 = vunpack.c.3.s8 %v471
    %v1256 = vunpack.c.3.s8 %v472
    %v1257 = vunpack.c.0.s8 %v473
    %v1258 = vunpack.c.0.s8 %v474
    %v1259 = vunpack.c.0.s8 %v475
    %v1260 = vunpack.c.0.s8 %v476
    %v1261 = vunpack.c.0.s8 %v477
    %v1262 = vunpack.c.0.s8 %v478
    %v1263 = vunpack.c.0.s8 %v479
    %v1264 = vunpack.c.0.s8 %v480
    %v1265 = vunpack.c.1.s8 %v473
    %v1266 = vunpack.c.1.s8 %v474
    %v1267 = vunpack.c.1.s8 %v475
    %v1268 = vunpack.c.1.s8 %v476
    %v1269 = vunpack.c.1.s8 %v477
    %v1270 = vunpack.c.1.s8 %v478
    %v1271 = vunpack.c.1.s8 %v479
    %v1272 = vunpack.c.1.s8 %v480
    %v1273 = vunpack.c.2.s8 %v473
    %v1274 = vunpack.c.2.s8 %v474
    %v1275 = vunpack.c.2.s8 %v475
    %v1276 = vunpack.c.2.s8 %v476
    %v1277 = vunpack.c.2.s8 %v477
    %v1278 = vunpack.c.2.s8 %v478
    %v1279 = vunpack.c.2.s8 %v479
    %v1280 = vunpack.c.2.s8 %v480
    %v1281 = vunpack.c.3.s8 %v473
    %v1282 = vunpack.c.3.s8 %v474
    %v1283 = vunpack.c.3.s8 %v475
    %v1284 = vunpack.c.3.s8 %v476
    %v1285 = vunpack.c.3.s8 %v477
    %v1286 = vunpack.c.3.s8 %v478
    %v1287 = vunpack.c.3.s8 %v479
    %v1288 = vunpack.c.3.s8 %v480
    %v1289 = vunpack.c.0.s8 %v481
    %v1290 = vunpack.c.0.s8 %v482
    %v1291 = vunpack.c.0.s8 %v483
    %v1292 = vunpack.c.0.s8 %v484
    %v1293 = vunpack.c.0.s8 %v485
    %v1294 = vunpack.c.0.s8 %v486
    %v1295 = vunpack.c.0.s8 %v487
    %v1296 = vunpack.c.0.s8 %v488
    %v1297 = vunpack.c.1.s8 %v481
    %v1298 = vunpack.c.1.s8 %v482
    %v1299 = vunpack.c.1.s8 %v483
    %v1300 = vunpack.c.1.s8 %v484
    %v1301 = vunpack.c.1.s8 %v485
    %v1302 = vunpack.c.1.s8 %v486
    %v1303 = vunpack.c.1.s8 %v487
    %v1304 = vunpack.c.1.s8 %v488
    %v1305 = vunpack.c.2.s8 %v481
    %v1306 = vunpack.c.2.s8 %v482
    %v1307 = vunpack.c.2.s8 %v483
    %v1308 = vunpack.c.2.s8 %v484
    %v1309 = vunpack.c.2.s8 %v485
    %v1310 = vunpack.c.2.s8 %v486
    %v1311 = vunpack.c.2.s8 %v487
    %v1312 = vunpack.c.2.s8 %v488
    %v1313 = vunpack.c.3.s8 %v481
    %v1314 = vunpack.c.3.s8 %v482
    %v1315 = vunpack.c.3.s8 %v483
    %v1316 = vunpack.c.3.s8 %v484
    %v1317 = vunpack.c.3.s8 %v485
    %v1318 = vunpack.c.3.s8 %v486
    %v1319 = vunpack.c.3.s8 %v487
    %v1320 = vunpack.c.3.s8 %v488
    %v1321 = vunpack.c.0.s8 %v489
    %v1322 = vunpack.c.0.s8 %v490
    %v1323 = vunpack.c.0.s8 %v491
    %v1324 = vunpack.c.0.s8 %v492
    %v1325 = vunpack.c.0.s8 %v493
    %v1326 = vunpack.c.0.s8 %v494
    %v1327 = vunpack.c.0.s8 %v495
    %v1328 = vunpack.c.0.s8 %v496
    %v1329 = vunpack.c.1.s8 %v489
    %v1330 = vunpack.c.1.s8 %v490
    %v1331 = vunpack.c.1.s8 %v491
    %v1332 = vunpack.c.1.s8 %v492
    %v1333 = vunpack.c.1.s8 %v493
    %v1334 = vunpack.c.1.s8 %v494
    %v1335 = vunpack.c.1.s8 %v495
    %v1336 = vunpack.c.1.s8 %v496
    %v1337 = vunpack.c.2.s8 %v489
    %v1338 = vunpack.c.2.s8 %v490
    %v1339 = vunpack.c.2.s8 %v491
    %v1340 = vunpack.c.2.s8 %v492
    %v1341 = vunpack.c.2.s8 %v493
    %v1342 = vunpack.c.2.s8 %v494
    %v1343 = vunpack.c.2.s8 %v495
    %v1344 = vunpack.c.2.s8 %v496
    %v1345 = vunpack.c.3.s8 %v489
    %v1346 = vunpack.c.3.s8 %v490
    %v1347 = vunpack.c.3.s8 %v491
    %v1348 = vunpack.c.3.s8 %v492
    %v1349 = vunpack.c.3.s8 %v493
    %v1350 = vunpack.c.3.s8 %v494
    %v1351 = vunpack.c.3.s8 %v495
    %v1352 = vunpack.c.3.s8 %v496
    %v1353 = vunpack.c.0.s8 %v497
    %v1354 = vunpack.c.0.s8 %v498
    %v1355 = vunpack.c.0.s8 %v499
    %v1356 = vunpack.c.0.s8 %v500
    %v1357 = vunpack.c.0.s8 %v501
    %v1358 = vunpack.c.0.s8 %v502
    %v1359 = vunpack.c.0.s8 %v503
    %v1360 = vunpack.c.0.s8 %v504
    %v1361 = vunpack.c.1.s8 %v497
    %v1362 = vunpack.c.1.s8 %v498
    %v1363 = vunpack.c.1.s8 %v499
    %v1364 = vunpack.c.1.s8 %v500
    %v1365 = vunpack.c.1.s8 %v501
    %v1366 = vunpack.c.1.s8 %v502
    %v1367 = vunpack.c.1.s8 %v503
    %v1368 = vunpack.c.1.s8 %v504
    %v1369 = vunpack.c.2.s8 %v497
    %v1370 = vunpack.c.2.s8 %v498
    %v1371 = vunpack.c.2.s8 %v499
    %v1372 = vunpack.c.2.s8 %v500
    %v1373 = vunpack.c.2.s8 %v501
    %v1374 = vunpack.c.2.s8 %v502
    %v1375 = vunpack.c.2.s8 %v503
    %v1376 = vunpack.c.2.s8 %v504
    %v1377 = vunpack.c.3.s8 %v497
    %v1378 = vunpack.c.3.s8 %v498
    %v1379 = vunpack.c.3.s8 %v499
    %v1380 = vunpack.c.3.s8 %v500
    %v1381 = vunpack.c.3.s8 %v501
    %v1382 = vunpack.c.3.s8 %v502
    %v1383 = vunpack.c.3.s8 %v503
    %v1384 = vunpack.c.3.s8 %v504
    %v1385 = vunpack.c.0.s8 %v505
    %v1386 = vunpack.c.0.s8 %v506
    %v1387 = vunpack.c.0.s8 %v507
    %v1388 = vunpack.c.0.s8 %v508
    %v1389 = vunpack.c.0.s8 %v509
    %v1390 = vunpack.c.0.s8 %v510
    %v1391 = vunpack.c.0.s8 %v511
    %v1392 = vunpack.c.0.s8 %v512
    %v1393 = vunpack.c.1.s8 %v505
    %v1394 = vunpack.c.1.s8 %v506
    %v1395 = vunpack.c.1.s8 %v507
    %v1396 = vunpack.c.1.s8 %v508
    %v1397 = vunpack.c.1.s8 %v509
    %v1398 = vunpack.c.1.s8 %v510
    %v1399 = vunpack.c.1.s8 %v511
    %v1400 = vunpack.c.1.s8 %v512
    %v1401 = vunpack.c.2.s8 %v505
    %v1402 = vunpack.c.2.s8 %v506
    %v1403 = vunpack.c.2.s8 %v507
    %v1404 = vunpack.c.2.s8 %v508
    %v1405 = vunpack.c.2.s8 %v509
    %v1406 = vunpack.c.2.s8 %v510
    %v1407 = vunpack.c.2.s8 %v511
    %v1408 = vunpack.c.2.s8 %v512
    %v1409 = vunpack.c.3.s8 %v505
    %v1410 = vunpack.c.3.s8 %v506
    %v1411 = vunpack.c.3.s8 %v507
    %v1412 = vunpack.c.3.s8 %v508
    %v1413 = vunpack.c.3.s8 %v509
    %v1414 = vunpack.c.3.s8 %v510
    %v1415 = vunpack.c.3.s8 %v511
    %v1416 = vunpack.c.3.s8 %v512
    %v1417 = vunpack.c.0.s8 %v513
    %v1418 = vunpack.c.0.s8 %v514
    %v1419 = vunpack.c.0.s8 %v515
    %v1420 = vunpack.c.0.s8 %v516
    %v1421 = vunpack.c.0.s8 %v517
    %v1422 = vunpack.c.0.s8 %v518
    %v1423 = vunpack.c.0.s8 %v519
    %v1424 = vunpack.c.0.s8 %v520
    %v1425 = vunpack.c.1.s8 %v513
    %v1426 = vunpack.c.1.s8 %v514
    %v1427 = vunpack.c.1.s8 %v515
    %v1428 = vunpack.c.1.s8 %v516
    %v1429 = vunpack.c.1.s8 %v517
    %v1430 = vunpack.c.1.s8 %v518
    %v1431 = vunpack.c.1.s8 %v519
    %v1432 = vunpack.c.1.s8 %v520
    %v1433 = vunpack.c.2.s8 %v513
    %v1434 = vunpack.c.2.s8 %v514
    %v1435 = vunpack.c.2.s8 %v515
    %v1436 = vunpack.c.2.s8 %v516
    %v1437 = vunpack.c.2.s8 %v517
    %v1438 = vunpack.c.2.s8 %v518
    %v1439 = vunpack.c.2.s8 %v519
    %v1440 = vunpack.c.2.s8 %v520
    %v1441 = vunpack.c.3.s8 %v513
    %v1442 = vunpack.c.3.s8 %v514
    %v1443 = vunpack.c.3.s8 %v515
    %v1444 = vunpack.c.3.s8 %v516
    %v1445 = vunpack.c.3.s8 %v517
    %v1446 = vunpack.c.3.s8 %v518
    %v1447 = vunpack.c.3.s8 %v519
    %v1448 = vunpack.c.3.s8 %v520
    %v1449 = vunpack.c.0.s8 %v521
    %v1450 = vunpack.c.0.s8 %v522
    %v1451 = vunpack.c.0.s8 %v523
    %v1452 = vunpack.c.0.s8 %v524
    %v1453 = vunpack.c.0.s8 %v525
    %v1454 = vunpack.c.0.s8 %v526
    %v1455 = vunpack.c.0.s8 %v527
    %v1456 = vunpack.c.0.s8 %v528
    %v1457 = vunpack.c.1.s8 %v521
    %v1458 = vunpack.c.1.s8 %v522
    %v1459 = vunpack.c.1.s8 %v523
    %v1460 = vunpack.c.1.s8 %v524
    %v1461 = vunpack.c.1.s8 %v525
    %v1462 = vunpack.c.1.s8 %v526
    %v1463 = vunpack.c.1.s8 %v527
    %v1464 = vunpack.c.1.s8 %v528
    %v1465 = vunpack.c.2.s8 %v521
    %v1466 = vunpack.c.2.s8 %v522
    %v1467 = vunpack.c.2.s8 %v523
    %v1468 = vunpack.c.2.s8 %v524
    %v1469 = vunpack.c.2.s8 %v525
    %v1470 = vunpack.c.2.s8 %v526
    %v1471 = vunpack.c.2.s8 %v527
    %v1472 = vunpack.c.2.s8 %v528
    %v1473 = vunpack.c.3.s8 %v521
    %v1474 = vunpack.c.3.s8 %v522
    %v1475 = vunpack.c.3.s8 %v523
    %v1476 = vunpack.c.3.s8 %v524
    %v1477 = vunpack.c.3.s8 %v525
    %v1478 = vunpack.c.3.s8 %v526
    %v1479 = vunpack.c.3.s8 %v527
    %v1480 = vunpack.c.3.s8 %v528
    %v1481 = vunpack.c.0.s8 %v529
    %v1482 = vunpack.c.0.s8 %v530
    %v1483 = vunpack.c.0.s8 %v531
    %v1484 = vunpack.c.0.s8 %v532
    %v1485 = vunpack.c.0.s8 %v533
    %v1486 = vunpack.c.0.s8 %v534
    %v1487 = vunpack.c.0.s8 %v535
    %v1488 = vunpack.c.0.s8 %v536
    %v1489 = vunpack.c.1.s8 %v529
    %v1490 = vunpack.c.1.s8 %v530
    %v1491 = vunpack.c.1.s8 %v531
    %v1492 = vunpack.c.1.s8 %v532
    %v1493 = vunpack.c.1.s8 %v533
    %v1494 = vunpack.c.1.s8 %v534
    %v1495 = vunpack.c.1.s8 %v535
    %v1496 = vunpack.c.1.s8 %v536
    %v1497 = vunpack.c.2.s8 %v529
    %v1498 = vunpack.c.2.s8 %v530
    %v1499 = vunpack.c.2.s8 %v531
    %v1500 = vunpack.c.2.s8 %v532
    %v1501 = vunpack.c.2.s8 %v533
    %v1502 = vunpack.c.2.s8 %v534
    %v1503 = vunpack.c.2.s8 %v535
    %v1504 = vunpack.c.2.s8 %v536
    %v1505 = vunpack.c.3.s8 %v529
    %v1506 = vunpack.c.3.s8 %v530
    %v1507 = vunpack.c.3.s8 %v531
    %v1508 = vunpack.c.3.s8 %v532
    %v1509 = vunpack.c.3.s8 %v533
    %v1510 = vunpack.c.3.s8 %v534
    %v1511 = vunpack.c.3.s8 %v535
    %v1512 = vunpack.c.3.s8 %v536
    %v1513 = vunpack.c.0.s8 %v537
    %v1514 = vunpack.c.0.s8 %v538
    %v1515 = vunpack.c.0.s8 %v539
    %v1516 = vunpack.c.0.s8 %v540
    %v1517 = vunpack.c.0.s8 %v541
    %v1518 = vunpack.c.0.s8 %v542
    %v1519 = vunpack.c.0.s8 %v543
    %v1520 = vunpack.c.0.s8 %v544
    %v1521 = vunpack.c.1.s8 %v537
    %v1522 = vunpack.c.1.s8 %v538
    %v1523 = vunpack.c.1.s8 %v539
    %v1524 = vunpack.c.1.s8 %v540
    %v1525 = vunpack.c.1.s8 %v541
    %v1526 = vunpack.c.1.s8 %v542
    %v1527 = vunpack.c.1.s8 %v543
    %v1528 = vunpack.c.1.s8 %v544
    %v1529 = vunpack.c.2.s8 %v537
    %v1530 = vunpack.c.2.s8 %v538
    %v1531 = vunpack.c.2.s8 %v539
    %v1532 = vunpack.c.2.s8 %v540
    %v1533 = vunpack.c.2.s8 %v541
    %v1534 = vunpack.c.2.s8 %v542
    %v1535 = vunpack.c.2.s8 %v543
    %v1536 = vunpack.c.2.s8 %v544
    %v1537 = vunpack.c.3.s8 %v537
    %v1538 = vunpack.c.3.s8 %v538
    %v1539 = vunpack.c.3.s8 %v539
    %v1540 = vunpack.c.3.s8 %v540
    %v1541 = vunpack.c.3.s8 %v541
    %v1542 = vunpack.c.3.s8 %v542
    %v1543 = vunpack.c.3.s8 %v543
    %v1544 = vunpack.c.3.s8 %v544
    %v1545 = vunpack.c.0.s8 %v545
    %v1546 = vunpack.c.0.s8 %v546
    %v1547 = vunpack.c.0.s8 %v547
    %v1548 = vunpack.c.0.s8 %v548
    %v1549 = vunpack.c.0.s8 %v549
    %v1550 = vunpack.c.0.s8 %v550
    %v1551 = vunpack.c.0.s8 %v551
    %v1552 = vunpack.c.0.s8 %v552
    %v1553 = vunpack.c.1.s8 %v545
    %v1554 = vunpack.c.1.s8 %v546
    %v1555 = vunpack.c.1.s8 %v547
    %v1556 = vunpack.c.1.s8 %v548
    %v1557 = vunpack.c.1.s8 %v549
    %v1558 = vunpack.c.1.s8 %v550
    %v1559 = vunpack.c.1.s8 %v551
    %v1560 = vunpack.c.1.s8 %v552
    %v1561 = vunpack.c.2.s8 %v545
    %v1562 = vunpack.c.2.s8 %v546
    %v1563 = vunpack.c.2.s8 %v547
    %v1564 = vunpack.c.2.s8 %v548
    %v1565 = vunpack.c.2.s8 %v549
    %v1566 = vunpack.c.2.s8 %v550
    %v1567 = vunpack.c.2.s8 %v551
    %v1568 = vunpack.c.2.s8 %v552
    %v1569 = vunpack.c.3.s8 %v545
    %v1570 = vunpack.c.3.s8 %v546
    %v1571 = vunpack.c.3.s8 %v547
    %v1572 = vunpack.c.3.s8 %v548
    %v1573 = vunpack.c.3.s8 %v549
    %v1574 = vunpack.c.3.s8 %v550
    %v1575 = vunpack.c.3.s8 %v551
    %v1576 = vunpack.c.3.s8 %v552
    %v1577 = vcvt.s32.f32 %v553
    %v1578 = vcvt.s32.f32 %v554
    %v1579 = vcvt.s32.f32 %v555
    %v1580 = vcvt.s32.f32 %v556
    %v1581 = vcvt.s32.f32 %v557
    %v1582 = vcvt.s32.f32 %v558
    %v1583 = vcvt.s32.f32 %v559
    %v1584 = vcvt.s32.f32 %v560
    %v1585 = vcvt.s32.f32 %v561
    %v1586 = vcvt.s32.f32 %v562
    %v1587 = vcvt.s32.f32 %v563
    %v1588 = vcvt.s32.f32 %v564
    %v1589 = vcvt.s32.f32 %v565
    %v1590 = vcvt.s32.f32 %v566
    %v1591 = vcvt.s32.f32 %v567
    %v1592 = vcvt.s32.f32 %v568
    %v1593 = vcvt.s32.f32 %v569
    %v1594 = vcvt.s32.f32 %v570
    %v1595 = vcvt.s32.f32 %v571
    %v1596 = vcvt.s32.f32 %v572
    %v1597 = vcvt.s32.f32 %v573
    %v1598 = vcvt.s32.f32 %v574
    %v1599 = vcvt.s32.f32 %v575
    %v1600 = vcvt.s32.f32 %v576
    %v1601 = vcvt.s32.f32 %v577
    %v1602 = vcvt.s32.f32 %v578
    %v1603 = vcvt.s32.f32 %v579
    %v1604 = vcvt.s32.f32 %v580
    %v1605 = vcvt.s32.f32 %v581
    %v1606 = vcvt.s32.f32 %v582
    %v1607 = vcvt.s32.f32 %v583
    %v1608 = vcvt.s32.f32 %v584
    %v1609 = vcvt.s32.f32 %v585
    %v1610 = vcvt.s32.f32 %v586
    %v1611 = vcvt.s32.f32 %v587
    %v1612 = vcvt.s32.f32 %v588
    %v1613 = vcvt.s32.f32 %v589
    %v1614 = vcvt.s32.f32 %v590
    %v1615 = vcvt.s32.f32 %v591
    %v1616 = vcvt.s32.f32 %v592
    %v1617 = vcvt.s32.f32 %v593
    %v1618 = vcvt.s32.f32 %v594
    %v1619 = vcvt.s32.f32 %v595
    %v1620 = vcvt.s32.f32 %v596
    %v1621 = vcvt.s32.f32 %v597
    %v1622 = vcvt.s32.f32 %v598
    %v1623 = vcvt.s32.f32 %v599
    %v1624 = vcvt.s32.f32 %v600
    %v1625 = vcvt.s32.f32 %v601
    %v1626 = vcvt.s32.f32 %v602
    %v1627 = vcvt.s32.f32 %v603
    %v1628 = vcvt.s32.f32 %v604
    %v1629 = vcvt.s32.f32 %v605
    %v1630 = vcvt.s32.f32 %v606
    %v1631 = vcvt.s32.f32 %v607
    %v1632 = vcvt.s32.f32 %v608
    %v1633 = vcvt.s32.f32 %v609
    %v1634 = vcvt.s32.f32 %v610
    %v1635 = vcvt.s32.f32 %v611
    %v1636 = vcvt.s32.f32 %v612
    %v1637 = vcvt.s32.f32 %v613
    %v1638 = vcvt.s32.f32 %v614
    %v1639 = vcvt.s32.f32 %v615
    %v1640 = vcvt.s32.f32 %v616
    %v1641 = vcvt.s32.f32 %v617
    %v1642 = vcvt.s32.f32 %v618
    %v1643 = vcvt.s32.f32 %v619
    %v1644 = vcvt.s32.f32 %v620
    %v1645 = vcvt.s32.f32 %v621
    %v1646 = vcvt.s32.f32 %v622
    %v1647 = vcvt.s32.f32 %v623
    %v1648 = vcvt.s32.f32 %v624
    %v1649 = vcvt.s32.f32 %v625
    %v1650 = vcvt.s32.f32 %v626
    %v1651 = vcvt.s32.f32 %v627
    %v1652 = vcvt.s32.f32 %v628
    %v1653 = vcvt.s32.f32 %v629
    %v1654 = vcvt.s32.f32 %v630
    %v1655 = vcvt.s32.f32 %v631
    %v1656 = vcvt.s32.f32 %v632
    %v1657 = vcvt.s32.f32 %v633
    %v1658 = vcvt.s32.f32 %v634
    %v1659 = vcvt.s32.f32 %v635
    %v1660 = vcvt.s32.f32 %v636
    %v1661 = vcvt.s32.f32 %v637
    %v1662 = vcvt.s32.f32 %v638
    %v1663 = vcvt.s32.f32 %v639
    %v1664 = vcvt.s32.f32 %v640
    %v1665 = vcvt.s32.f32 %v641
    %v1666 = vcvt.s32.f32 %v642
    %v1667 = vcvt.s32.f32 %v643
    %v1668 = vcvt.s32.f32 %v644
    %v1669 = vcvt.s32.f32 %v645
    %v1670 = vcvt.s32.f32 %v646
    %v1671 = vcvt.s32.f32 %v647
    %v1672 = vcvt.s32.f32 %v648
    %v1673 = vcvt.s32.f32 %v649
    %v1674 = vcvt.s32.f32 %v650
    %v1675 = vcvt.s32.f32 %v651
    %v1676 = vcvt.s32.f32 %v652
    %v1677 = vcvt.s32.f32 %v653
    %v1678 = vcvt.s32.f32 %v654
    %v1679 = vcvt.s32.f32 %v655
    %v1680 = vcvt.s32.f32 %v656
    %v1681 = vcvt.s32.f32 %v657
    %v1682 = vcvt.s32.f32 %v658
    %v1683 = vcvt.s32.f32 %v659
    %v1684 = vcvt.s32.f32 %v660
    %v1685 = vcvt.s32.f32 %v661
    %v1686 = vcvt.s32.f32 %v662
    %v1687 = vcvt.s32.f32 %v663
    %v1688 = vcvt.s32.f32 %v664
    %v1689 = vcvt.s32.f32 %v665
    %v1690 = vcvt.s32.f32 %v666
    %v1691 = vcvt.s32.f32 %v667
    %v1692 = vcvt.s32.f32 %v668
    %v1693 = vcvt.s32.f32 %v669
    %v1694 = vcvt.s32.f32 %v670
    %v1695 = vcvt.s32.f32 %v671
    %v1696 = vcvt.s32.f32 %v672
    %v1697 = vcvt.s32.f32 %v673
    %v1698 = vcvt.s32.f32 %v674
    %v1699 = vcvt.s32.f32 %v675
    %v1700 = vcvt.s32.f32 %v676
    %v1701 = vcvt.s32.f32 %v677
    %v1702 = vcvt.s32.f32 %v678
    %v1703 = vcvt.s32.f32 %v679
    %v1704 = vcvt.s32.f32 %v680
    %v1705 = vcvt.s32.f32 %v681
    %v1706 = vcvt.s32.f32 %v682
    %v1707 = vcvt.s32.f32 %v683
    %v1708 = vcvt.s32.f32 %v684
    %v1709 = vcvt.s32.f32 %v685
    %v1710 = vcvt.s32.f32 %v686
    %v1711 = vcvt.s32.f32 %v687
    %v1712 = vcvt.s32.f32 %v688
    %v1713 = vcvt.s32.f32 %v689
    %v1714 = vcvt.s32.f32 %v690
    %v1715 = vcvt.s32.f32 %v691
    %v1716 = vcvt.s32.f32 %v692
    %v1717 = vcvt.s32.f32 %v693
    %v1718 = vcvt.s32.f32 %v694
    %v1719 = vcvt.s32.f32 %v695
    %v1720 = vcvt.s32.f32 %v696
    %v1721 = vcvt.s32.f32 %v697
    %v1722 = vcvt.s32.f32 %v698
    %v1723 = vcvt.s32.f32 %v699
    %v1724 = vcvt.s32.f32 %v700
    %v1725 = vcvt.s32.f32 %v701
    %v1726 = vcvt.s32.f32 %v702
    %v1727 = vcvt.s32.f32 %v703
    %v1728 = vcvt.s32.f32 %v704
    %v1729 = vcvt.s32.f32 %v705
    %v1730 = vcvt.s32.f32 %v706
    %v1731 = vcvt.s32.f32 %v707
    %v1732 = vcvt.s32.f32 %v708
    %v1733 = vcvt.s32.f32 %v709
    %v1734 = vcvt.s32.f32 %v710
    %v1735 = vcvt.s32.f32 %v711
    %v1736 = vcvt.s32.f32 %v712
    %v1737 = vcvt.s32.f32 %v713
    %v1738 = vcvt.s32.f32 %v714
    %v1739 = vcvt.s32.f32 %v715
    %v1740 = vcvt.s32.f32 %v716
    %v1741 = vcvt.s32.f32 %v717
    %v1742 = vcvt.s32.f32 %v718
    %v1743 = vcvt.s32.f32 %v719
    %v1744 = vcvt.s32.f32 %v720
    %v1745 = vcvt.s32.f32 %v721
    %v1746 = vcvt.s32.f32 %v722
    %v1747 = vcvt.s32.f32 %v723
    %v1748 = vcvt.s32.f32 %v724
    %v1749 = vcvt.s32.f32 %v725
    %v1750 = vcvt.s32.f32 %v726
    %v1751 = vcvt.s32.f32 %v727
    %v1752 = vcvt.s32.f32 %v728
    %v1753 = vcvt.s32.f32 %v729
    %v1754 = vcvt.s32.f32 %v730
    %v1755 = vcvt.s32.f32 %v731
    %v1756 = vcvt.s32.f32 %v732
    %v1757 = vcvt.s32.f32 %v733
    %v1758 = vcvt.s32.f32 %v734
    %v1759 = vcvt.s32.f32 %v735
    %v1760 = vcvt.s32.f32 %v736
    %v1761 = vcvt.s32.f32 %v737
    %v1762 = vcvt.s32.f32 %v738
    %v1763 = vcvt.s32.f32 %v739
    %v1764 = vcvt.s32.f32 %v740
    %v1765 = vcvt.s32.f32 %v741
    %v1766 = vcvt.s32.f32 %v742
    %v1767 = vcvt.s32.f32 %v743
    %v1768 = vcvt.s32.f32 %v744
    %v1769 = vcvt.s32.f32 %v745
    %v1770 = vcvt.s32.f32 %v746
    %v1771 = vcvt.s32.f32 %v747
    %v1772 = vcvt.s32.f32 %v748
    %v1773 = vcvt.s32.f32 %v749
    %v1774 = vcvt.s32.f32 %v750
    %v1775 = vcvt.s32.f32 %v751
    %v1776 = vcvt.s32.f32 %v752
    %v1777 = vcvt.s32.f32 %v753
    %v1778 = vcvt.s32.f32 %v754
    %v1779 = vcvt.s32.f32 %v755
    %v1780 = vcvt.s32.f32 %v756
    %v1781 = vcvt.s32.f32 %v757
    %v1782 = vcvt.s32.f32 %v758
    %v1783 = vcvt.s32.f32 %v759
    %v1784 = vcvt.s32.f32 %v760
    %v1785 = vcvt.s32.f32 %v761
    %v1786 = vcvt.s32.f32 %v762
    %v1787 = vcvt.s32.f32 %v763
    %v1788 = vcvt.s32.f32 %v764
    %v1789 = vcvt.s32.f32 %v765
    %v1790 = vcvt.s32.f32 %v766
    %v1791 = vcvt.s32.f32 %v767
    %v1792 = vcvt.s32.f32 %v768
    %v1793 = vcvt.s32.f32 %v769
    %v1794 = vcvt.s32.f32 %v770
    %v1795 = vcvt.s32.f32 %v771
    %v1796 = vcvt.s32.f32 %v772
    %v1797 = vcvt.s32.f32 %v773
    %v1798 = vcvt.s32.f32 %v774
    %v1799 = vcvt.s32.f32 %v775
    %v1800 = vcvt.s32.f32 %v776
    %v1801 = vcvt.s32.f32 %v777
    %v1802 = vcvt.s32.f32 %v778
    %v1803 = vcvt.s32.f32 %v779
    %v1804 = vcvt.s32.f32 %v780
    %v1805 = vcvt.s32.f32 %v781
    %v1806 = vcvt.s32.f32 %v782
    %v1807 = vcvt.s32.f32 %v783
    %v1808 = vcvt.s32.f32 %v784
    %v1809 = vcvt.s32.f32 %v785
    %v1810 = vcvt.s32.f32 %v786
    %v1811 = vcvt.s32.f32 %v787
    %v1812 = vcvt.s32.f32 %v788
    %v1813 = vcvt.s32.f32 %v789
    %v1814 = vcvt.s32.f32 %v790
    %v1815 = vcvt.s32.f32 %v791
    %v1816 = vcvt.s32.f32 %v792
    %v1817 = vcvt.s32.f32 %v793
    %v1818 = vcvt.s32.f32 %v794
    %v1819 = vcvt.s32.f32 %v795
    %v1820 = vcvt.s32.f32 %v796
    %v1821 = vcvt.s32.f32 %v797
    %v1822 = vcvt.s32.f32 %v798
    %v1823 = vcvt.s32.f32 %v799
    %v1824 = vcvt.s32.f32 %v800
    %v1825 = vcvt.s32.f32 %v801
    %v1826 = vcvt.s32.f32 %v802
    %v1827 = vcvt.s32.f32 %v803
    %v1828 = vcvt.s32.f32 %v804
    %v1829 = vcvt.s32.f32 %v805
    %v1830 = vcvt.s32.f32 %v806
    %v1831 = vcvt.s32.f32 %v807
    %v1832 = vcvt.s32.f32 %v808
    %v1833 = vcvt.s32.f32 %v809
    %v1834 = vcvt.s32.f32 %v810
    %v1835 = vcvt.s32.f32 %v811
    %v1836 = vcvt.s32.f32 %v812
    %v1837 = vcvt.s32.f32 %v813
    %v1838 = vcvt.s32.f32 %v814
    %v1839 = vcvt.s32.f32 %v815
    %v1840 = vcvt.s32.f32 %v816
    %v1841 = vcvt.s32.f32 %v817
    %v1842 = vcvt.s32.f32 %v818
    %v1843 = vcvt.s32.f32 %v819
    %v1844 = vcvt.s32.f32 %v820
    %v1845 = vcvt.s32.f32 %v821
    %v1846 = vcvt.s32.f32 %v822
    %v1847 = vcvt.s32.f32 %v823
    %v1848 = vcvt.s32.f32 %v824
    %v1849 = vcvt.s32.f32 %v825
    %v1850 = vcvt.s32.f32 %v826
    %v1851 = vcvt.s32.f32 %v827
    %v1852 = vcvt.s32.f32 %v828
    %v1853 = vcvt.s32.f32 %v829
    %v1854 = vcvt.s32.f32 %v830
    %v1855 = vcvt.s32.f32 %v831
    %v1856 = vcvt.s32.f32 %v832
    %v1857 = vcvt.s32.f32 %v833
    %v1858 = vcvt.s32.f32 %v834
    %v1859 = vcvt.s32.f32 %v835
    %v1860 = vcvt.s32.f32 %v836
    %v1861 = vcvt.s32.f32 %v837
    %v1862 = vcvt.s32.f32 %v838
    %v1863 = vcvt.s32.f32 %v839
    %v1864 = vcvt.s32.f32 %v840
    %v1865 = vcvt.s32.f32 %v841
    %v1866 = vcvt.s32.f32 %v842
    %v1867 = vcvt.s32.f32 %v843
    %v1868 = vcvt.s32.f32 %v844
    %v1869 = vcvt.s32.f32 %v845
    %v1870 = vcvt.s32.f32 %v846
    %v1871 = vcvt.s32.f32 %v847
    %v1872 = vcvt.s32.f32 %v848
    %v1873 = vcvt.s32.f32 %v849
    %v1874 = vcvt.s32.f32 %v850
    %v1875 = vcvt.s32.f32 %v851
    %v1876 = vcvt.s32.f32 %v852
    %v1877 = vcvt.s32.f32 %v853
    %v1878 = vcvt.s32.f32 %v854
    %v1879 = vcvt.s32.f32 %v855
    %v1880 = vcvt.s32.f32 %v856
    %v1881 = vcvt.s32.f32 %v857
    %v1882 = vcvt.s32.f32 %v858
    %v1883 = vcvt.s32.f32 %v859
    %v1884 = vcvt.s32.f32 %v860
    %v1885 = vcvt.s32.f32 %v861
    %v1886 = vcvt.s32.f32 %v862
    %v1887 = vcvt.s32.f32 %v863
    %v1888 = vcvt.s32.f32 %v864
    %v1889 = vcvt.s32.f32 %v865
    %v1890 = vcvt.s32.f32 %v866
    %v1891 = vcvt.s32.f32 %v867
    %v1892 = vcvt.s32.f32 %v868
    %v1893 = vcvt.s32.f32 %v869
    %v1894 = vcvt.s32.f32 %v870
    %v1895 = vcvt.s32.f32 %v871
    %v1896 = vcvt.s32.f32 %v872
    %v1897 = vcvt.s32.f32 %v873
    %v1898 = vcvt.s32.f32 %v874
    %v1899 = vcvt.s32.f32 %v875
    %v1900 = vcvt.s32.f32 %v876
    %v1901 = vcvt.s32.f32 %v877
    %v1902 = vcvt.s32.f32 %v878
    %v1903 = vcvt.s32.f32 %v879
    %v1904 = vcvt.s32.f32 %v880
    %v1905 = vcvt.s32.f32 %v881
    %v1906 = vcvt.s32.f32 %v882
    %v1907 = vcvt.s32.f32 %v883
    %v1908 = vcvt.s32.f32 %v884
    %v1909 = vcvt.s32.f32 %v885
    %v1910 = vcvt.s32.f32 %v886
    %v1911 = vcvt.s32.f32 %v887
    %v1912 = vcvt.s32.f32 %v888
    %v1913 = vcvt.s32.f32 %v889
    %v1914 = vcvt.s32.f32 %v890
    %v1915 = vcvt.s32.f32 %v891
    %v1916 = vcvt.s32.f32 %v892
    %v1917 = vcvt.s32.f32 %v893
    %v1918 = vcvt.s32.f32 %v894
    %v1919 = vcvt.s32.f32 %v895
    %v1920 = vcvt.s32.f32 %v896
    %v1921 = vcvt.s32.f32 %v897
    %v1922 = vcvt.s32.f32 %v898
    %v1923 = vcvt.s32.f32 %v899
    %v1924 = vcvt.s32.f32 %v900
    %v1925 = vcvt.s32.f32 %v901
    %v1926 = vcvt.s32.f32 %v902
    %v1927 = vcvt.s32.f32 %v903
    %v1928 = vcvt.s32.f32 %v904
    %v1929 = vcvt.s32.f32 %v905
    %v1930 = vcvt.s32.f32 %v906
    %v1931 = vcvt.s32.f32 %v907
    %v1932 = vcvt.s32.f32 %v908
    %v1933 = vcvt.s32.f32 %v909
    %v1934 = vcvt.s32.f32 %v910
    %v1935 = vcvt.s32.f32 %v911
    %v1936 = vcvt.s32.f32 %v912
    %v1937 = vcvt.s32.f32 %v913
    %v1938 = vcvt.s32.f32 %v914
    %v1939 = vcvt.s32.f32 %v915
    %v1940 = vcvt.s32.f32 %v916
    %v1941 = vcvt.s32.f32 %v917
    %v1942 = vcvt.s32.f32 %v918
    %v1943 = vcvt.s32.f32 %v919
    %v1944 = vcvt.s32.f32 %v920
    %v1945 = vcvt.s32.f32 %v921
    %v1946 = vcvt.s32.f32 %v922
    %v1947 = vcvt.s32.f32 %v923
    %v1948 = vcvt.s32.f32 %v924
    %v1949 = vcvt.s32.f32 %v925
    %v1950 = vcvt.s32.f32 %v926
    %v1951 = vcvt.s32.f32 %v927
    %v1952 = vcvt.s32.f32 %v928
    %v1953 = vcvt.s32.f32 %v929
    %v1954 = vcvt.s32.f32 %v930
    %v1955 = vcvt.s32.f32 %v931
    %v1956 = vcvt.s32.f32 %v932
    %v1957 = vcvt.s32.f32 %v933
    %v1958 = vcvt.s32.f32 %v934
    %v1959 = vcvt.s32.f32 %v935
    %v1960 = vcvt.s32.f32 %v936
    %v1961 = vcvt.s32.f32 %v937
    %v1962 = vcvt.s32.f32 %v938
    %v1963 = vcvt.s32.f32 %v939
    %v1964 = vcvt.s32.f32 %v940
    %v1965 = vcvt.s32.f32 %v941
    %v1966 = vcvt.s32.f32 %v942
    %v1967 = vcvt.s32.f32 %v943
    %v1968 = vcvt.s32.f32 %v944
    %v1969 = vcvt.s32.f32 %v945
    %v1970 = vcvt.s32.f32 %v946
    %v1971 = vcvt.s32.f32 %v947
    %v1972 = vcvt.s32.f32 %v948
    %v1973 = vcvt.s32.f32 %v949
    %v1974 = vcvt.s32.f32 %v950
    %v1975 = vcvt.s32.f32 %v951
    %v1976 = vcvt.s32.f32 %v952
    %v1977 = vcvt.s32.f32 %v953
    %v1978 = vcvt.s32.f32 %v954
    %v1979 = vcvt.s32.f32 %v955
    %v1980 = vcvt.s32.f32 %v956
    %v1981 = vcvt.s32.f32 %v957
    %v1982 = vcvt.s32.f32 %v958
    %v1983 = vcvt.s32.f32 %v959
    %v1984 = vcvt.s32.f32 %v960
    %v1985 = vcvt.s32.f32 %v961
    %v1986 = vcvt.s32.f32 %v962
    %v1987 = vcvt.s32.f32 %v963
    %v1988 = vcvt.s32.f32 %v964
    %v1989 = vcvt.s32.f32 %v965
    %v1990 = vcvt.s32.f32 %v966
    %v1991 = vcvt.s32.f32 %v967
    %v1992 = vcvt.s32.f32 %v968
    %v1993 = vcvt.s32.f32 %v969
    %v1994 = vcvt.s32.f32 %v970
    %v1995 = vcvt.s32.f32 %v971
    %v1996 = vcvt.s32.f32 %v972
    %v1997 = vcvt.s32.f32 %v973
    %v1998 = vcvt.s32.f32 %v974
    %v1999 = vcvt.s32.f32 %v975
    %v2000 = vcvt.s32.f32 %v976
    %v2001 = vcvt.s32.f32 %v977
    %v2002 = vcvt.s32.f32 %v978
    %v2003 = vcvt.s32.f32 %v979
    %v2004 = vcvt.s32.f32 %v980
    %v2005 = vcvt.s32.f32 %v981
    %v2006 = vcvt.s32.f32 %v982
    %v2007 = vcvt.s32.f32 %v983
    %v2008 = vcvt.s32.f32 %v984
    %v2009 = vcvt.s32.f32 %v985
    %v2010 = vcvt.s32.f32 %v986
    %v2011 = vcvt.s32.f32 %v987
    %v2012 = vcvt.s32.f32 %v988
    %v2013 = vcvt.s32.f32 %v989
    %v2014 = vcvt.s32.f32 %v990
    %v2015 = vcvt.s32.f32 %v991
    %v2016 = vcvt.s32.f32 %v992
    %v2017 = vcvt.s32.f32 %v993
    %v2018 = vcvt.s32.f32 %v994
    %v2019 = vcvt.s32.f32 %v995
    %v2020 = vcvt.s32.f32 %v996
    %v2021 = vcvt.s32.f32 %v997
    %v2022 = vcvt.s32.f32 %v998
    %v2023 = vcvt.s32.f32 %v999
    %v2024 = vcvt.s32.f32 %v1000
    %v2025 = vcvt.s32.f32 %v1001
    %v2026 = vcvt.s32.f32 %v1002
    %v2027 = vcvt.s32.f32 %v1003
    %v2028 = vcvt.s32.f32 %v1004
    %v2029 = vcvt.s32.f32 %v1005
    %v2030 = vcvt.s32.f32 %v1006
    %v2031 = vcvt.s32.f32 %v1007
    %v2032 = vcvt.s32.f32 %v1008
    %v2033 = vcvt.s32.f32 %v1009
    %v2034 = vcvt.s32.f32 %v1010
    %v2035 = vcvt.s32.f32 %v1011
    %v2036 = vcvt.s32.f32 %v1012
    %v2037 = vcvt.s32.f32 %v1013
    %v2038 = vcvt.s32.f32 %v1014
    %v2039 = vcvt.s32.f32 %v1015
    %v2040 = vcvt.s32.f32 %v1016
    %v2041 = vcvt.s32.f32 %v1017
    %v2042 = vcvt.s32.f32 %v1018
    %v2043 = vcvt.s32.f32 %v1019
    %v2044 = vcvt.s32.f32 %v1020
    %v2045 = vcvt.s32.f32 %v1021
    %v2046 = vcvt.s32.f32 %v1022
    %v2047 = vcvt.s32.f32 %v1023
    %v2048 = vcvt.s32.f32 %v1024
    %v2049 = vcvt.s32.f32 %v1025
    %v2050 = vcvt.s32.f32 %v1026
    %v2051 = vcvt.s32.f32 %v1027
    %v2052 = vcvt.s32.f32 %v1028
    %v2053 = vcvt.s32.f32 %v1029
    %v2054 = vcvt.s32.f32 %v1030
    %v2055 = vcvt.s32.f32 %v1031
    %v2056 = vcvt.s32.f32 %v1032
    %v2057 = vcvt.s32.f32 %v1033
    %v2058 = vcvt.s32.f32 %v1034
    %v2059 = vcvt.s32.f32 %v1035
    %v2060 = vcvt.s32.f32 %v1036
    %v2061 = vcvt.s32.f32 %v1037
    %v2062 = vcvt.s32.f32 %v1038
    %v2063 = vcvt.s32.f32 %v1039
    %v2064 = vcvt.s32.f32 %v1040
    %v2065 = vcvt.s32.f32 %v1041
    %v2066 = vcvt.s32.f32 %v1042
    %v2067 = vcvt.s32.f32 %v1043
    %v2068 = vcvt.s32.f32 %v1044
    %v2069 = vcvt.s32.f32 %v1045
    %v2070 = vcvt.s32.f32 %v1046
    %v2071 = vcvt.s32.f32 %v1047
    %v2072 = vcvt.s32.f32 %v1048
    %v2073 = vcvt.s32.f32 %v1049
    %v2074 = vcvt.s32.f32 %v1050
    %v2075 = vcvt.s32.f32 %v1051
    %v2076 = vcvt.s32.f32 %v1052
    %v2077 = vcvt.s32.f32 %v1053
    %v2078 = vcvt.s32.f32 %v1054
    %v2079 = vcvt.s32.f32 %v1055
    %v2080 = vcvt.s32.f32 %v1056
    %v2081 = vcvt.s32.f32 %v1057
    %v2082 = vcvt.s32.f32 %v1058
    %v2083 = vcvt.s32.f32 %v1059
    %v2084 = vcvt.s32.f32 %v1060
    %v2085 = vcvt.s32.f32 %v1061
    %v2086 = vcvt.s32.f32 %v1062
    %v2087 = vcvt.s32.f32 %v1063
    %v2088 = vcvt.s32.f32 %v1064
    %v2089 = vcvt.s32.f32 %v1065
    %v2090 = vcvt.s32.f32 %v1066
    %v2091 = vcvt.s32.f32 %v1067
    %v2092 = vcvt.s32.f32 %v1068
    %v2093 = vcvt.s32.f32 %v1069
    %v2094 = vcvt.s32.f32 %v1070
    %v2095 = vcvt.s32.f32 %v1071
    %v2096 = vcvt.s32.f32 %v1072
    %v2097 = vcvt.s32.f32 %v1073
    %v2098 = vcvt.s32.f32 %v1074
    %v2099 = vcvt.s32.f32 %v1075
    %v2100 = vcvt.s32.f32 %v1076
    %v2101 = vcvt.s32.f32 %v1077
    %v2102 = vcvt.s32.f32 %v1078
    %v2103 = vcvt.s32.f32 %v1079
    %v2104 = vcvt.s32.f32 %v1080
    %v2105 = vcvt.s32.f32 %v1081
    %v2106 = vcvt.s32.f32 %v1082
    %v2107 = vcvt.s32.f32 %v1083
    %v2108 = vcvt.s32.f32 %v1084
    %v2109 = vcvt.s32.f32 %v1085
    %v2110 = vcvt.s32.f32 %v1086
    %v2111 = vcvt.s32.f32 %v1087
    %v2112 = vcvt.s32.f32 %v1088
    %v2113 = vcvt.s32.f32 %v1089
    %v2114 = vcvt.s32.f32 %v1090
    %v2115 = vcvt.s32.f32 %v1091
    %v2116 = vcvt.s32.f32 %v1092
    %v2117 = vcvt.s32.f32 %v1093
    %v2118 = vcvt.s32.f32 %v1094
    %v2119 = vcvt.s32.f32 %v1095
    %v2120 = vcvt.s32.f32 %v1096
    %v2121 = vcvt.s32.f32 %v1097
    %v2122 = vcvt.s32.f32 %v1098
    %v2123 = vcvt.s32.f32 %v1099
    %v2124 = vcvt.s32.f32 %v1100
    %v2125 = vcvt.s32.f32 %v1101
    %v2126 = vcvt.s32.f32 %v1102
    %v2127 = vcvt.s32.f32 %v1103
    %v2128 = vcvt.s32.f32 %v1104
    %v2129 = vcvt.s32.f32 %v1105
    %v2130 = vcvt.s32.f32 %v1106
    %v2131 = vcvt.s32.f32 %v1107
    %v2132 = vcvt.s32.f32 %v1108
    %v2133 = vcvt.s32.f32 %v1109
    %v2134 = vcvt.s32.f32 %v1110
    %v2135 = vcvt.s32.f32 %v1111
    %v2136 = vcvt.s32.f32 %v1112
    %v2137 = vcvt.s32.f32 %v1113
    %v2138 = vcvt.s32.f32 %v1114
    %v2139 = vcvt.s32.f32 %v1115
    %v2140 = vcvt.s32.f32 %v1116
    %v2141 = vcvt.s32.f32 %v1117
    %v2142 = vcvt.s32.f32 %v1118
    %v2143 = vcvt.s32.f32 %v1119
    %v2144 = vcvt.s32.f32 %v1120
    %v2145 = vcvt.s32.f32 %v1121
    %v2146 = vcvt.s32.f32 %v1122
    %v2147 = vcvt.s32.f32 %v1123
    %v2148 = vcvt.s32.f32 %v1124
    %v2149 = vcvt.s32.f32 %v1125
    %v2150 = vcvt.s32.f32 %v1126
    %v2151 = vcvt.s32.f32 %v1127
    %v2152 = vcvt.s32.f32 %v1128
    %v2153 = vcvt.s32.f32 %v1129
    %v2154 = vcvt.s32.f32 %v1130
    %v2155 = vcvt.s32.f32 %v1131
    %v2156 = vcvt.s32.f32 %v1132
    %v2157 = vcvt.s32.f32 %v1133
    %v2158 = vcvt.s32.f32 %v1134
    %v2159 = vcvt.s32.f32 %v1135
    %v2160 = vcvt.s32.f32 %v1136
    %v2161 = vcvt.s32.f32 %v1137
    %v2162 = vcvt.s32.f32 %v1138
    %v2163 = vcvt.s32.f32 %v1139
    %v2164 = vcvt.s32.f32 %v1140
    %v2165 = vcvt.s32.f32 %v1141
    %v2166 = vcvt.s32.f32 %v1142
    %v2167 = vcvt.s32.f32 %v1143
    %v2168 = vcvt.s32.f32 %v1144
    %v2169 = vcvt.s32.f32 %v1145
    %v2170 = vcvt.s32.f32 %v1146
    %v2171 = vcvt.s32.f32 %v1147
    %v2172 = vcvt.s32.f32 %v1148
    %v2173 = vcvt.s32.f32 %v1149
    %v2174 = vcvt.s32.f32 %v1150
    %v2175 = vcvt.s32.f32 %v1151
    %v2176 = vcvt.s32.f32 %v1152
    %v2177 = vcvt.s32.f32 %v1153
    %v2178 = vcvt.s32.f32 %v1154
    %v2179 = vcvt.s32.f32 %v1155
    %v2180 = vcvt.s32.f32 %v1156
    %v2181 = vcvt.s32.f32 %v1157
    %v2182 = vcvt.s32.f32 %v1158
    %v2183 = vcvt.s32.f32 %v1159
    %v2184 = vcvt.s32.f32 %v1160
    %v2185 = vcvt.s32.f32 %v1161
    %v2186 = vcvt.s32.f32 %v1162
    %v2187 = vcvt.s32.f32 %v1163
    %v2188 = vcvt.s32.f32 %v1164
    %v2189 = vcvt.s32.f32 %v1165
    %v2190 = vcvt.s32.f32 %v1166
    %v2191 = vcvt.s32.f32 %v1167
    %v2192 = vcvt.s32.f32 %v1168
    %v2193 = vcvt.s32.f32 %v1169
    %v2194 = vcvt.s32.f32 %v1170
    %v2195 = vcvt.s32.f32 %v1171
    %v2196 = vcvt.s32.f32 %v1172
    %v2197 = vcvt.s32.f32 %v1173
    %v2198 = vcvt.s32.f32 %v1174
    %v2199 = vcvt.s32.f32 %v1175
    %v2200 = vcvt.s32.f32 %v1176
    %v2201 = vcvt.s32.f32 %v1177
    %v2202 = vcvt.s32.f32 %v1178
    %v2203 = vcvt.s32.f32 %v1179
    %v2204 = vcvt.s32.f32 %v1180
    %v2205 = vcvt.s32.f32 %v1181
    %v2206 = vcvt.s32.f32 %v1182
    %v2207 = vcvt.s32.f32 %v1183
    %v2208 = vcvt.s32.f32 %v1184
    %v2209 = vcvt.s32.f32 %v1185
    %v2210 = vcvt.s32.f32 %v1186
    %v2211 = vcvt.s32.f32 %v1187
    %v2212 = vcvt.s32.f32 %v1188
    %v2213 = vcvt.s32.f32 %v1189
    %v2214 = vcvt.s32.f32 %v1190
    %v2215 = vcvt.s32.f32 %v1191
    %v2216 = vcvt.s32.f32 %v1192
    %v2217 = vcvt.s32.f32 %v1193
    %v2218 = vcvt.s32.f32 %v1194
    %v2219 = vcvt.s32.f32 %v1195
    %v2220 = vcvt.s32.f32 %v1196
    %v2221 = vcvt.s32.f32 %v1197
    %v2222 = vcvt.s32.f32 %v1198
    %v2223 = vcvt.s32.f32 %v1199
    %v2224 = vcvt.s32.f32 %v1200
    %v2225 = vcvt.s32.f32 %v1201
    %v2226 = vcvt.s32.f32 %v1202
    %v2227 = vcvt.s32.f32 %v1203
    %v2228 = vcvt.s32.f32 %v1204
    %v2229 = vcvt.s32.f32 %v1205
    %v2230 = vcvt.s32.f32 %v1206
    %v2231 = vcvt.s32.f32 %v1207
    %v2232 = vcvt.s32.f32 %v1208
    %v2233 = vcvt.s32.f32 %v1209
    %v2234 = vcvt.s32.f32 %v1210
    %v2235 = vcvt.s32.f32 %v1211
    %v2236 = vcvt.s32.f32 %v1212
    %v2237 = vcvt.s32.f32 %v1213
    %v2238 = vcvt.s32.f32 %v1214
    %v2239 = vcvt.s32.f32 %v1215
    %v2240 = vcvt.s32.f32 %v1216
    %v2241 = vcvt.s32.f32 %v1217
    %v2242 = vcvt.s32.f32 %v1218
    %v2243 = vcvt.s32.f32 %v1219
    %v2244 = vcvt.s32.f32 %v1220
    %v2245 = vcvt.s32.f32 %v1221
    %v2246 = vcvt.s32.f32 %v1222
    %v2247 = vcvt.s32.f32 %v1223
    %v2248 = vcvt.s32.f32 %v1224
    %v2249 = vcvt.s32.f32 %v1225
    %v2250 = vcvt.s32.f32 %v1226
    %v2251 = vcvt.s32.f32 %v1227
    %v2252 = vcvt.s32.f32 %v1228
    %v2253 = vcvt.s32.f32 %v1229
    %v2254 = vcvt.s32.f32 %v1230
    %v2255 = vcvt.s32.f32 %v1231
    %v2256 = vcvt.s32.f32 %v1232
    %v2257 = vcvt.s32.f32 %v1233
    %v2258 = vcvt.s32.f32 %v1234
    %v2259 = vcvt.s32.f32 %v1235
    %v2260 = vcvt.s32.f32 %v1236
    %v2261 = vcvt.s32.f32 %v1237
    %v2262 = vcvt.s32.f32 %v1238
    %v2263 = vcvt.s32.f32 %v1239
    %v2264 = vcvt.s32.f32 %v1240
    %v2265 = vcvt.s32.f32 %v1241
    %v2266 = vcvt.s32.f32 %v1242
    %v2267 = vcvt.s32.f32 %v1243
    %v2268 = vcvt.s32.f32 %v1244
    %v2269 = vcvt.s32.f32 %v1245
    %v2270 = vcvt.s32.f32 %v1246
    %v2271 = vcvt.s32.f32 %v1247
    %v2272 = vcvt.s32.f32 %v1248
    %v2273 = vcvt.s32.f32 %v1249
    %v2274 = vcvt.s32.f32 %v1250
    %v2275 = vcvt.s32.f32 %v1251
    %v2276 = vcvt.s32.f32 %v1252
    %v2277 = vcvt.s32.f32 %v1253
    %v2278 = vcvt.s32.f32 %v1254
    %v2279 = vcvt.s32.f32 %v1255
    %v2280 = vcvt.s32.f32 %v1256
    %v2281 = vcvt.s32.f32 %v1257
    %v2282 = vcvt.s32.f32 %v1258
    %v2283 = vcvt.s32.f32 %v1259
    %v2284 = vcvt.s32.f32 %v1260
    %v2285 = vcvt.s32.f32 %v1261
    %v2286 = vcvt.s32.f32 %v1262
    %v2287 = vcvt.s32.f32 %v1263
    %v2288 = vcvt.s32.f32 %v1264
    %v2289 = vcvt.s32.f32 %v1265
    %v2290 = vcvt.s32.f32 %v1266
    %v2291 = vcvt.s32.f32 %v1267
    %v2292 = vcvt.s32.f32 %v1268
    %v2293 = vcvt.s32.f32 %v1269
    %v2294 = vcvt.s32.f32 %v1270
    %v2295 = vcvt.s32.f32 %v1271
    %v2296 = vcvt.s32.f32 %v1272
    %v2297 = vcvt.s32.f32 %v1273
    %v2298 = vcvt.s32.f32 %v1274
    %v2299 = vcvt.s32.f32 %v1275
    %v2300 = vcvt.s32.f32 %v1276
    %v2301 = vcvt.s32.f32 %v1277
    %v2302 = vcvt.s32.f32 %v1278
    %v2303 = vcvt.s32.f32 %v1279
    %v2304 = vcvt.s32.f32 %v1280
    %v2305 = vcvt.s32.f32 %v1281
    %v2306 = vcvt.s32.f32 %v1282
    %v2307 = vcvt.s32.f32 %v1283
    %v2308 = vcvt.s32.f32 %v1284
    %v2309 = vcvt.s32.f32 %v1285
    %v2310 = vcvt.s32.f32 %v1286
    %v2311 = vcvt.s32.f32 %v1287
    %v2312 = vcvt.s32.f32 %v1288
    %v2313 = vcvt.s32.f32 %v1289
    %v2314 = vcvt.s32.f32 %v1290
    %v2315 = vcvt.s32.f32 %v1291
    %v2316 = vcvt.s32.f32 %v1292
    %v2317 = vcvt.s32.f32 %v1293
    %v2318 = vcvt.s32.f32 %v1294
    %v2319 = vcvt.s32.f32 %v1295
    %v2320 = vcvt.s32.f32 %v1296
    %v2321 = vcvt.s32.f32 %v1297
    %v2322 = vcvt.s32.f32 %v1298
    %v2323 = vcvt.s32.f32 %v1299
    %v2324 = vcvt.s32.f32 %v1300
    %v2325 = vcvt.s32.f32 %v1301
    %v2326 = vcvt.s32.f32 %v1302
    %v2327 = vcvt.s32.f32 %v1303
    %v2328 = vcvt.s32.f32 %v1304
    %v2329 = vcvt.s32.f32 %v1305
    %v2330 = vcvt.s32.f32 %v1306
    %v2331 = vcvt.s32.f32 %v1307
    %v2332 = vcvt.s32.f32 %v1308
    %v2333 = vcvt.s32.f32 %v1309
    %v2334 = vcvt.s32.f32 %v1310
    %v2335 = vcvt.s32.f32 %v1311
    %v2336 = vcvt.s32.f32 %v1312
    %v2337 = vcvt.s32.f32 %v1313
    %v2338 = vcvt.s32.f32 %v1314
    %v2339 = vcvt.s32.f32 %v1315
    %v2340 = vcvt.s32.f32 %v1316
    %v2341 = vcvt.s32.f32 %v1317
    %v2342 = vcvt.s32.f32 %v1318
    %v2343 = vcvt.s32.f32 %v1319
    %v2344 = vcvt.s32.f32 %v1320
    %v2345 = vcvt.s32.f32 %v1321
    %v2346 = vcvt.s32.f32 %v1322
    %v2347 = vcvt.s32.f32 %v1323
    %v2348 = vcvt.s32.f32 %v1324
    %v2349 = vcvt.s32.f32 %v1325
    %v2350 = vcvt.s32.f32 %v1326
    %v2351 = vcvt.s32.f32 %v1327
    %v2352 = vcvt.s32.f32 %v1328
    %v2353 = vcvt.s32.f32 %v1329
    %v2354 = vcvt.s32.f32 %v1330
    %v2355 = vcvt.s32.f32 %v1331
    %v2356 = vcvt.s32.f32 %v1332
    %v2357 = vcvt.s32.f32 %v1333
    %v2358 = vcvt.s32.f32 %v1334
    %v2359 = vcvt.s32.f32 %v1335
    %v2360 = vcvt.s32.f32 %v1336
    %v2361 = vcvt.s32.f32 %v1337
    %v2362 = vcvt.s32.f32 %v1338
    %v2363 = vcvt.s32.f32 %v1339
    %v2364 = vcvt.s32.f32 %v1340
    %v2365 = vcvt.s32.f32 %v1341
    %v2366 = vcvt.s32.f32 %v1342
    %v2367 = vcvt.s32.f32 %v1343
    %v2368 = vcvt.s32.f32 %v1344
    %v2369 = vcvt.s32.f32 %v1345
    %v2370 = vcvt.s32.f32 %v1346
    %v2371 = vcvt.s32.f32 %v1347
    %v2372 = vcvt.s32.f32 %v1348
    %v2373 = vcvt.s32.f32 %v1349
    %v2374 = vcvt.s32.f32 %v1350
    %v2375 = vcvt.s32.f32 %v1351
    %v2376 = vcvt.s32.f32 %v1352
    %v2377 = vcvt.s32.f32 %v1353
    %v2378 = vcvt.s32.f32 %v1354
    %v2379 = vcvt.s32.f32 %v1355
    %v2380 = vcvt.s32.f32 %v1356
    %v2381 = vcvt.s32.f32 %v1357
    %v2382 = vcvt.s32.f32 %v1358
    %v2383 = vcvt.s32.f32 %v1359
    %v2384 = vcvt.s32.f32 %v1360
    %v2385 = vcvt.s32.f32 %v1361
    %v2386 = vcvt.s32.f32 %v1362
    %v2387 = vcvt.s32.f32 %v1363
    %v2388 = vcvt.s32.f32 %v1364
    %v2389 = vcvt.s32.f32 %v1365
    %v2390 = vcvt.s32.f32 %v1366
    %v2391 = vcvt.s32.f32 %v1367
    %v2392 = vcvt.s32.f32 %v1368
    %v2393 = vcvt.s32.f32 %v1369
    %v2394 = vcvt.s32.f32 %v1370
    %v2395 = vcvt.s32.f32 %v1371
    %v2396 = vcvt.s32.f32 %v1372
    %v2397 = vcvt.s32.f32 %v1373
    %v2398 = vcvt.s32.f32 %v1374
    %v2399 = vcvt.s32.f32 %v1375
    %v2400 = vcvt.s32.f32 %v1376
    %v2401 = vcvt.s32.f32 %v1377
    %v2402 = vcvt.s32.f32 %v1378
    %v2403 = vcvt.s32.f32 %v1379
    %v2404 = vcvt.s32.f32 %v1380
    %v2405 = vcvt.s32.f32 %v1381
    %v2406 = vcvt.s32.f32 %v1382
    %v2407 = vcvt.s32.f32 %v1383
    %v2408 = vcvt.s32.f32 %v1384
    %v2409 = vcvt.s32.f32 %v1385
    %v2410 = vcvt.s32.f32 %v1386
    %v2411 = vcvt.s32.f32 %v1387
    %v2412 = vcvt.s32.f32 %v1388
    %v2413 = vcvt.s32.f32 %v1389
    %v2414 = vcvt.s32.f32 %v1390
    %v2415 = vcvt.s32.f32 %v1391
    %v2416 = vcvt.s32.f32 %v1392
    %v2417 = vcvt.s32.f32 %v1393
    %v2418 = vcvt.s32.f32 %v1394
    %v2419 = vcvt.s32.f32 %v1395
    %v2420 = vcvt.s32.f32 %v1396
    %v2421 = vcvt.s32.f32 %v1397
    %v2422 = vcvt.s32.f32 %v1398
    %v2423 = vcvt.s32.f32 %v1399
    %v2424 = vcvt.s32.f32 %v1400
    %v2425 = vcvt.s32.f32 %v1401
    %v2426 = vcvt.s32.f32 %v1402
    %v2427 = vcvt.s32.f32 %v1403
    %v2428 = vcvt.s32.f32 %v1404
    %v2429 = vcvt.s32.f32 %v1405
    %v2430 = vcvt.s32.f32 %v1406
    %v2431 = vcvt.s32.f32 %v1407
    %v2432 = vcvt.s32.f32 %v1408
    %v2433 = vcvt.s32.f32 %v1409
    %v2434 = vcvt.s32.f32 %v1410
    %v2435 = vcvt.s32.f32 %v1411
    %v2436 = vcvt.s32.f32 %v1412
    %v2437 = vcvt.s32.f32 %v1413
    %v2438 = vcvt.s32.f32 %v1414
    %v2439 = vcvt.s32.f32 %v1415
    %v2440 = vcvt.s32.f32 %v1416
    %v2441 = vcvt.s32.f32 %v1417
    %v2442 = vcvt.s32.f32 %v1418
    %v2443 = vcvt.s32.f32 %v1419
    %v2444 = vcvt.s32.f32 %v1420
    %v2445 = vcvt.s32.f32 %v1421
    %v2446 = vcvt.s32.f32 %v1422
    %v2447 = vcvt.s32.f32 %v1423
    %v2448 = vcvt.s32.f32 %v1424
    %v2449 = vcvt.s32.f32 %v1425
    %v2450 = vcvt.s32.f32 %v1426
    %v2451 = vcvt.s32.f32 %v1427
    %v2452 = vcvt.s32.f32 %v1428
    %v2453 = vcvt.s32.f32 %v1429
    %v2454 = vcvt.s32.f32 %v1430
    %v2455 = vcvt.s32.f32 %v1431
    %v2456 = vcvt.s32.f32 %v1432
    %v2457 = vcvt.s32.f32 %v1433
    %v2458 = vcvt.s32.f32 %v1434
    %v2459 = vcvt.s32.f32 %v1435
    %v2460 = vcvt.s32.f32 %v1436
    %v2461 = vcvt.s32.f32 %v1437
    %v2462 = vcvt.s32.f32 %v1438
    %v2463 = vcvt.s32.f32 %v1439
    %v2464 = vcvt.s32.f32 %v1440
    %v2465 = vcvt.s32.f32 %v1441
    %v2466 = vcvt.s32.f32 %v1442
    %v2467 = vcvt.s32.f32 %v1443
    %v2468 = vcvt.s32.f32 %v1444
    %v2469 = vcvt.s32.f32 %v1445
    %v2470 = vcvt.s32.f32 %v1446
    %v2471 = vcvt.s32.f32 %v1447
    %v2472 = vcvt.s32.f32 %v1448
    %v2473 = vcvt.s32.f32 %v1449
    %v2474 = vcvt.s32.f32 %v1450
    %v2475 = vcvt.s32.f32 %v1451
    %v2476 = vcvt.s32.f32 %v1452
    %v2477 = vcvt.s32.f32 %v1453
    %v2478 = vcvt.s32.f32 %v1454
    %v2479 = vcvt.s32.f32 %v1455
    %v2480 = vcvt.s32.f32 %v1456
    %v2481 = vcvt.s32.f32 %v1457
    %v2482 = vcvt.s32.f32 %v1458
    %v2483 = vcvt.s32.f32 %v1459
    %v2484 = vcvt.s32.f32 %v1460
    %v2485 = vcvt.s32.f32 %v1461
    %v2486 = vcvt.s32.f32 %v1462
    %v2487 = vcvt.s32.f32 %v1463
    %v2488 = vcvt.s32.f32 %v1464
    %v2489 = vcvt.s32.f32 %v1465
    %v2490 = vcvt.s32.f32 %v1466
    %v2491 = vcvt.s32.f32 %v1467
    %v2492 = vcvt.s32.f32 %v1468
    %v2493 = vcvt.s32.f32 %v1469
    %v2494 = vcvt.s32.f32 %v1470
    %v2495 = vcvt.s32.f32 %v1471
    %v2496 = vcvt.s32.f32 %v1472
    %v2497 = vcvt.s32.f32 %v1473
    %v2498 = vcvt.s32.f32 %v1474
    %v2499 = vcvt.s32.f32 %v1475
    %v2500 = vcvt.s32.f32 %v1476
    %v2501 = vcvt.s32.f32 %v1477
    %v2502 = vcvt.s32.f32 %v1478
    %v2503 = vcvt.s32.f32 %v1479
    %v2504 = vcvt.s32.f32 %v1480
    %v2505 = vcvt.s32.f32 %v1481
    %v2506 = vcvt.s32.f32 %v1482
    %v2507 = vcvt.s32.f32 %v1483
    %v2508 = vcvt.s32.f32 %v1484
    %v2509 = vcvt.s32.f32 %v1485
    %v2510 = vcvt.s32.f32 %v1486
    %v2511 = vcvt.s32.f32 %v1487
    %v2512 = vcvt.s32.f32 %v1488
    %v2513 = vcvt.s32.f32 %v1489
    %v2514 = vcvt.s32.f32 %v1490
    %v2515 = vcvt.s32.f32 %v1491
    %v2516 = vcvt.s32.f32 %v1492
    %v2517 = vcvt.s32.f32 %v1493
    %v2518 = vcvt.s32.f32 %v1494
    %v2519 = vcvt.s32.f32 %v1495
    %v2520 = vcvt.s32.f32 %v1496
    %v2521 = vcvt.s32.f32 %v1497
    %v2522 = vcvt.s32.f32 %v1498
    %v2523 = vcvt.s32.f32 %v1499
    %v2524 = vcvt.s32.f32 %v1500
    %v2525 = vcvt.s32.f32 %v1501
    %v2526 = vcvt.s32.f32 %v1502
    %v2527 = vcvt.s32.f32 %v1503
    %v2528 = vcvt.s32.f32 %v1504
    %v2529 = vcvt.s32.f32 %v1505
    %v2530 = vcvt.s32.f32 %v1506
    %v2531 = vcvt.s32.f32 %v1507
    %v2532 = vcvt.s32.f32 %v1508
    %v2533 = vcvt.s32.f32 %v1509
    %v2534 = vcvt.s32.f32 %v1510
    %v2535 = vcvt.s32.f32 %v1511
    %v2536 = vcvt.s32.f32 %v1512
    %v2537 = vcvt.s32.f32 %v1513
    %v2538 = vcvt.s32.f32 %v1514
    %v2539 = vcvt.s32.f32 %v1515
    %v2540 = vcvt.s32.f32 %v1516
    %v2541 = vcvt.s32.f32 %v1517
    %v2542 = vcvt.s32.f32 %v1518
    %v2543 = vcvt.s32.f32 %v1519
    %v2544 = vcvt.s32.f32 %v1520
    %v2545 = vcvt.s32.f32 %v1521
    %v2546 = vcvt.s32.f32 %v1522
    %v2547 = vcvt.s32.f32 %v1523
    %v2548 = vcvt.s32.f32 %v1524
    %v2549 = vcvt.s32.f32 %v1525
    %v2550 = vcvt.s32.f32 %v1526
    %v2551 = vcvt.s32.f32 %v1527
    %v2552 = vcvt.s32.f32 %v1528
    %v2553 = vcvt.s32.f32 %v1529
    %v2554 = vcvt.s32.f32 %v1530
    %v2555 = vcvt.s32.f32 %v1531
    %v2556 = vcvt.s32.f32 %v1532
    %v2557 = vcvt.s32.f32 %v1533
    %v2558 = vcvt.s32.f32 %v1534
    %v2559 = vcvt.s32.f32 %v1535
    %v2560 = vcvt.s32.f32 %v1536
    %v2561 = vcvt.s32.f32 %v1537
    %v2562 = vcvt.s32.f32 %v1538
    %v2563 = vcvt.s32.f32 %v1539
    %v2564 = vcvt.s32.f32 %v1540
    %v2565 = vcvt.s32.f32 %v1541
    %v2566 = vcvt.s32.f32 %v1542
    %v2567 = vcvt.s32.f32 %v1543
    %v2568 = vcvt.s32.f32 %v1544
    %v2569 = vcvt.s32.f32 %v1545
    %v2570 = vcvt.s32.f32 %v1546
    %v2571 = vcvt.s32.f32 %v1547
    %v2572 = vcvt.s32.f32 %v1548
    %v2573 = vcvt.s32.f32 %v1549
    %v2574 = vcvt.s32.f32 %v1550
    %v2575 = vcvt.s32.f32 %v1551
    %v2576 = vcvt.s32.f32 %v1552
    %v2577 = vcvt.s32.f32 %v1553
    %v2578 = vcvt.s32.f32 %v1554
    %v2579 = vcvt.s32.f32 %v1555
    %v2580 = vcvt.s32.f32 %v1556
    %v2581 = vcvt.s32.f32 %v1557
    %v2582 = vcvt.s32.f32 %v1558
    %v2583 = vcvt.s32.f32 %v1559
    %v2584 = vcvt.s32.f32 %v1560
    %v2585 = vcvt.s32.f32 %v1561
    %v2586 = vcvt.s32.f32 %v1562
    %v2587 = vcvt.s32.f32 %v1563
    %v2588 = vcvt.s32.f32 %v1564
    %v2589 = vcvt.s32.f32 %v1565
    %v2590 = vcvt.s32.f32 %v1566
    %v2591 = vcvt.s32.f32 %v1567
    %v2592 = vcvt.s32.f32 %v1568
    %v2593 = vcvt.s32.f32 %v1569
    %v2594 = vcvt.s32.f32 %v1570
    %v2595 = vcvt.s32.f32 %v1571
    %v2596 = vcvt.s32.f32 %v1572
    %v2597 = vcvt.s32.f32 %v1573
    %v2598 = vcvt.s32.f32 %v1574
    %v2599 = vcvt.s32.f32 %v1575
    %v2600 = vcvt.s32.f32 %v1576
    %v2601 = vld [vmem:[%s4] sm:$0xff]
    %v2603 = vperm.slane %v2601, 0
    %v2604 = vperm.slane %v2601, 1
    %v2605 = vperm.slane %v2601, 2
    %v2606 = vperm.slane %v2601, 3
    %v2607 = vperm.slane %v2601, 4
    %v2608 = vperm.slane %v2601, 5
    %v2609 = vperm.slane %v2601, 6
    %v2610 = vperm.slane %v2601, 7
    %v2619 = vmul.f32 %v1577, %v2603
    %v2620 = vmul.f32 %v1578, %v2604
    %v2621 = vmul.f32 %v1579, %v2605
    %v2622 = vmul.f32 %v1580, %v2606
    %v2623 = vmul.f32 %v1581, %v2607
    %v2624 = vmul.f32 %v1582, %v2608
    %v2625 = vmul.f32 %v1583, %v2609
    %v2626 = vmul.f32 %v1584, %v2610
    %v2627 = vmul.f32 %v1585, %v2603
    %v2628 = vmul.f32 %v1586, %v2604
    %v2629 = vmul.f32 %v1587, %v2605
    %v2630 = vmul.f32 %v1588, %v2606
    %v2631 = vmul.f32 %v1589, %v2607
    %v2632 = vmul.f32 %v1590, %v2608
    %v2633 = vmul.f32 %v1591, %v2609
    %v2634 = vmul.f32 %v1592, %v2610
    %v2635 = vmul.f32 %v1593, %v2603
    %v2636 = vmul.f32 %v1594, %v2604
    %v2637 = vmul.f32 %v1595, %v2605
    %v2638 = vmul.f32 %v1596, %v2606
    %v2639 = vmul.f32 %v1597, %v2607
    %v2640 = vmul.f32 %v1598, %v2608
    %v2641 = vmul.f32 %v1599, %v2609
    %v2642 = vmul.f32 %v1600, %v2610
    %v2643 = vmul.f32 %v1601, %v2603
    %v2644 = vmul.f32 %v1602, %v2604
    %v2645 = vmul.f32 %v1603, %v2605
    %v2646 = vmul.f32 %v1604, %v2606
    %v2647 = vmul.f32 %v1605, %v2607
    %v2648 = vmul.f32 %v1606, %v2608
    %v2649 = vmul.f32 %v1607, %v2609
    %v2650 = vmul.f32 %v1608, %v2610
    %v2651 = vmul.f32 %v1609, %v2603
    %v2652 = vmul.f32 %v1610, %v2604
    %v2653 = vmul.f32 %v1611, %v2605
    %v2654 = vmul.f32 %v1612, %v2606
    %v2655 = vmul.f32 %v1613, %v2607
    %v2656 = vmul.f32 %v1614, %v2608
    %v2657 = vmul.f32 %v1615, %v2609
    %v2658 = vmul.f32 %v1616, %v2610
    %v2659 = vmul.f32 %v1617, %v2603
    %v2660 = vmul.f32 %v1618, %v2604
    %v2661 = vmul.f32 %v1619, %v2605
    %v2662 = vmul.f32 %v1620, %v2606
    %v2663 = vmul.f32 %v1621, %v2607
    %v2664 = vmul.f32 %v1622, %v2608
    %v2665 = vmul.f32 %v1623, %v2609
    %v2666 = vmul.f32 %v1624, %v2610
    %v2667 = vmul.f32 %v1625, %v2603
    %v2668 = vmul.f32 %v1626, %v2604
    %v2669 = vmul.f32 %v1627, %v2605
    %v2670 = vmul.f32 %v1628, %v2606
    %v2671 = vmul.f32 %v1629, %v2607
    %v2672 = vmul.f32 %v1630, %v2608
    %v2673 = vmul.f32 %v1631, %v2609
    %v2674 = vmul.f32 %v1632, %v2610
    %v2675 = vmul.f32 %v1633, %v2603
    %v2676 = vmul.f32 %v1634, %v2604
    %v2677 = vmul.f32 %v1635, %v2605
    %v2678 = vmul.f32 %v1636, %v2606
    %v2679 = vmul.f32 %v1637, %v2607
    %v2680 = vmul.f32 %v1638, %v2608
    %v2681 = vmul.f32 %v1639, %v2609
    %v2682 = vmul.f32 %v1640, %v2610
    %v2683 = vmul.f32 %v1641, %v2603
    %v2684 = vmul.f32 %v1642, %v2604
    %v2685 = vmul.f32 %v1643, %v2605
    %v2686 = vmul.f32 %v1644, %v2606
    %v2687 = vmul.f32 %v1645, %v2607
    %v2688 = vmul.f32 %v1646, %v2608
    %v2689 = vmul.f32 %v1647, %v2609
    %v2690 = vmul.f32 %v1648, %v2610
    %v2691 = vmul.f32 %v1649, %v2603
    %v2692 = vmul.f32 %v1650, %v2604
    %v2693 = vmul.f32 %v1651, %v2605
    %v2694 = vmul.f32 %v1652, %v2606
    %v2695 = vmul.f32 %v1653, %v2607
    %v2696 = vmul.f32 %v1654, %v2608
    %v2697 = vmul.f32 %v1655, %v2609
    %v2698 = vmul.f32 %v1656, %v2610
    %v2699 = vmul.f32 %v1657, %v2603
    %v2700 = vmul.f32 %v1658, %v2604
    %v2701 = vmul.f32 %v1659, %v2605
    %v2702 = vmul.f32 %v1660, %v2606
    %v2703 = vmul.f32 %v1661, %v2607
    %v2704 = vmul.f32 %v1662, %v2608
    %v2705 = vmul.f32 %v1663, %v2609
    %v2706 = vmul.f32 %v1664, %v2610
    %v2707 = vmul.f32 %v1665, %v2603
    %v2708 = vmul.f32 %v1666, %v2604
    %v2709 = vmul.f32 %v1667, %v2605
    %v2710 = vmul.f32 %v1668, %v2606
    %v2711 = vmul.f32 %v1669, %v2607
    %v2712 = vmul.f32 %v1670, %v2608
    %v2713 = vmul.f32 %v1671, %v2609
    %v2714 = vmul.f32 %v1672, %v2610
    %v2715 = vmul.f32 %v1673, %v2603
    %v2716 = vmul.f32 %v1674, %v2604
    %v2717 = vmul.f32 %v1675, %v2605
    %v2718 = vmul.f32 %v1676, %v2606
    %v2719 = vmul.f32 %v1677, %v2607
    %v2720 = vmul.f32 %v1678, %v2608
    %v2721 = vmul.f32 %v1679, %v2609
    %v2722 = vmul.f32 %v1680, %v2610
    %v2723 = vmul.f32 %v1681, %v2603
    %v2724 = vmul.f32 %v1682, %v2604
    %v2725 = vmul.f32 %v1683, %v2605
    %v2726 = vmul.f32 %v1684, %v2606
    %v2727 = vmul.f32 %v1685, %v2607
    %v2728 = vmul.f32 %v1686, %v2608
    %v2729 = vmul.f32 %v1687, %v2609
    %v2730 = vmul.f32 %v1688, %v2610
    %v2731 = vmul.f32 %v1689, %v2603
    %v2732 = vmul.f32 %v1690, %v2604
    %v2733 = vmul.f32 %v1691, %v2605
    %v2734 = vmul.f32 %v1692, %v2606
    %v2735 = vmul.f32 %v1693, %v2607
    %v2736 = vmul.f32 %v1694, %v2608
    %v2737 = vmul.f32 %v1695, %v2609
    %v2738 = vmul.f32 %v1696, %v2610
    %v2739 = vmul.f32 %v1697, %v2603
    %v2740 = vmul.f32 %v1698, %v2604
    %v2741 = vmul.f32 %v1699, %v2605
    %v2742 = vmul.f32 %v1700, %v2606
    %v2743 = vmul.f32 %v1701, %v2607
    %v2744 = vmul.f32 %v1702, %v2608
    %v2745 = vmul.f32 %v1703, %v2609
    %v2746 = vmul.f32 %v1704, %v2610
    %v2747 = vmul.f32 %v1705, %v2603
    %v2748 = vmul.f32 %v1706, %v2604
    %v2749 = vmul.f32 %v1707, %v2605
    %v2750 = vmul.f32 %v1708, %v2606
    %v2751 = vmul.f32 %v1709, %v2607
    %v2752 = vmul.f32 %v1710, %v2608
    %v2753 = vmul.f32 %v1711, %v2609
    %v2754 = vmul.f32 %v1712, %v2610
    %v2755 = vmul.f32 %v1713, %v2603
    %v2756 = vmul.f32 %v1714, %v2604
    %v2757 = vmul.f32 %v1715, %v2605
    %v2758 = vmul.f32 %v1716, %v2606
    %v2759 = vmul.f32 %v1717, %v2607
    %v2760 = vmul.f32 %v1718, %v2608
    %v2761 = vmul.f32 %v1719, %v2609
    %v2762 = vmul.f32 %v1720, %v2610
    %v2763 = vmul.f32 %v1721, %v2603
    %v2764 = vmul.f32 %v1722, %v2604
    %v2765 = vmul.f32 %v1723, %v2605
    %v2766 = vmul.f32 %v1724, %v2606
    %v2767 = vmul.f32 %v1725, %v2607
    %v2768 = vmul.f32 %v1726, %v2608
    %v2769 = vmul.f32 %v1727, %v2609
    %v2770 = vmul.f32 %v1728, %v2610
    %v2771 = vmul.f32 %v1729, %v2603
    %v2772 = vmul.f32 %v1730, %v2604
    %v2773 = vmul.f32 %v1731, %v2605
    %v2774 = vmul.f32 %v1732, %v2606
    %v2775 = vmul.f32 %v1733, %v2607
    %v2776 = vmul.f32 %v1734, %v2608
    %v2777 = vmul.f32 %v1735, %v2609
    %v2778 = vmul.f32 %v1736, %v2610
    %v2779 = vmul.f32 %v1737, %v2603
    %v2780 = vmul.f32 %v1738, %v2604
    %v2781 = vmul.f32 %v1739, %v2605
    %v2782 = vmul.f32 %v1740, %v2606
    %v2783 = vmul.f32 %v1741, %v2607
    %v2784 = vmul.f32 %v1742, %v2608
    %v2785 = vmul.f32 %v1743, %v2609
    %v2786 = vmul.f32 %v1744, %v2610
    %v2787 = vmul.f32 %v1745, %v2603
    %v2788 = vmul.f32 %v1746, %v2604
    %v2789 = vmul.f32 %v1747, %v2605
    %v2790 = vmul.f32 %v1748, %v2606
    %v2791 = vmul.f32 %v1749, %v2607
    %v2792 = vmul.f32 %v1750, %v2608
    %v2793 = vmul.f32 %v1751, %v2609
    %v2794 = vmul.f32 %v1752, %v2610
    %v2795 = vmul.f32 %v1753, %v2603
    %v2796 = vmul.f32 %v1754, %v2604
    %v2797 = vmul.f32 %v1755, %v2605
    %v2798 = vmul.f32 %v1756, %v2606
    %v2799 = vmul.f32 %v1757, %v2607
    %v2800 = vmul.f32 %v1758, %v2608
    %v2801 = vmul.f32 %v1759, %v2609
    %v2802 = vmul.f32 %v1760, %v2610
    %v2803 = vmul.f32 %v1761, %v2603
    %v2804 = vmul.f32 %v1762, %v2604
    %v2805 = vmul.f32 %v1763, %v2605
    %v2806 = vmul.f32 %v1764, %v2606
    %v2807 = vmul.f32 %v1765, %v2607
    %v2808 = vmul.f32 %v1766, %v2608
    %v2809 = vmul.f32 %v1767, %v2609
    %v2810 = vmul.f32 %v1768, %v2610
    %v2811 = vmul.f32 %v1769, %v2603
    %v2812 = vmul.f32 %v1770, %v2604
    %v2813 = vmul.f32 %v1771, %v2605
    %v2814 = vmul.f32 %v1772, %v2606
    %v2815 = vmul.f32 %v1773, %v2607
    %v2816 = vmul.f32 %v1774, %v2608
    %v2817 = vmul.f32 %v1775, %v2609
    %v2818 = vmul.f32 %v1776, %v2610
    %v2819 = vmul.f32 %v1777, %v2603
    %v2820 = vmul.f32 %v1778, %v2604
    %v2821 = vmul.f32 %v1779, %v2605
    %v2822 = vmul.f32 %v1780, %v2606
    %v2823 = vmul.f32 %v1781, %v2607
    %v2824 = vmul.f32 %v1782, %v2608
    %v2825 = vmul.f32 %v1783, %v2609
    %v2826 = vmul.f32 %v1784, %v2610
    %v2827 = vmul.f32 %v1785, %v2603
    %v2828 = vmul.f32 %v1786, %v2604
    %v2829 = vmul.f32 %v1787, %v2605
    %v2830 = vmul.f32 %v1788, %v2606
    %v2831 = vmul.f32 %v1789, %v2607
    %v2832 = vmul.f32 %v1790, %v2608
    %v2833 = vmul.f32 %v1791, %v2609
    %v2834 = vmul.f32 %v1792, %v2610
    %v2835 = vmul.f32 %v1793, %v2603
    %v2836 = vmul.f32 %v1794, %v2604
    %v2837 = vmul.f32 %v1795, %v2605
    %v2838 = vmul.f32 %v1796, %v2606
    %v2839 = vmul.f32 %v1797, %v2607
    %v2840 = vmul.f32 %v1798, %v2608
    %v2841 = vmul.f32 %v1799, %v2609
    %v2842 = vmul.f32 %v1800, %v2610
    %v2843 = vmul.f32 %v1801, %v2603
    %v2844 = vmul.f32 %v1802, %v2604
    %v2845 = vmul.f32 %v1803, %v2605
    %v2846 = vmul.f32 %v1804, %v2606
    %v2847 = vmul.f32 %v1805, %v2607
    %v2848 = vmul.f32 %v1806, %v2608
    %v2849 = vmul.f32 %v1807, %v2609
    %v2850 = vmul.f32 %v1808, %v2610
    %v2851 = vmul.f32 %v1809, %v2603
    %v2852 = vmul.f32 %v1810, %v2604
    %v2853 = vmul.f32 %v1811, %v2605
    %v2854 = vmul.f32 %v1812, %v2606
    %v2855 = vmul.f32 %v1813, %v2607
    %v2856 = vmul.f32 %v1814, %v2608
    %v2857 = vmul.f32 %v1815, %v2609
    %v2858 = vmul.f32 %v1816, %v2610
    %v2859 = vmul.f32 %v1817, %v2603
    %v2860 = vmul.f32 %v1818, %v2604
    %v2861 = vmul.f32 %v1819, %v2605
    %v2862 = vmul.f32 %v1820, %v2606
    %v2863 = vmul.f32 %v1821, %v2607
    %v2864 = vmul.f32 %v1822, %v2608
    %v2865 = vmul.f32 %v1823, %v2609
    %v2866 = vmul.f32 %v1824, %v2610
    %v2867 = vmul.f32 %v1825, %v2603
    %v2868 = vmul.f32 %v1826, %v2604
    %v2869 = vmul.f32 %v1827, %v2605
    %v2870 = vmul.f32 %v1828, %v2606
    %v2871 = vmul.f32 %v1829, %v2607
    %v2872 = vmul.f32 %v1830, %v2608
    %v2873 = vmul.f32 %v1831, %v2609
    %v2874 = vmul.f32 %v1832, %v2610
    %v2875 = vmul.f32 %v1833, %v2603
    %v2876 = vmul.f32 %v1834, %v2604
    %v2877 = vmul.f32 %v1835, %v2605
    %v2878 = vmul.f32 %v1836, %v2606
    %v2879 = vmul.f32 %v1837, %v2607
    %v2880 = vmul.f32 %v1838, %v2608
    %v2881 = vmul.f32 %v1839, %v2609
    %v2882 = vmul.f32 %v1840, %v2610
    %v2883 = vmul.f32 %v1841, %v2603
    %v2884 = vmul.f32 %v1842, %v2604
    %v2885 = vmul.f32 %v1843, %v2605
    %v2886 = vmul.f32 %v1844, %v2606
    %v2887 = vmul.f32 %v1845, %v2607
    %v2888 = vmul.f32 %v1846, %v2608
    %v2889 = vmul.f32 %v1847, %v2609
    %v2890 = vmul.f32 %v1848, %v2610
    %v2891 = vmul.f32 %v1849, %v2603
    %v2892 = vmul.f32 %v1850, %v2604
    %v2893 = vmul.f32 %v1851, %v2605
    %v2894 = vmul.f32 %v1852, %v2606
    %v2895 = vmul.f32 %v1853, %v2607
    %v2896 = vmul.f32 %v1854, %v2608
    %v2897 = vmul.f32 %v1855, %v2609
    %v2898 = vmul.f32 %v1856, %v2610
    %v2899 = vmul.f32 %v1857, %v2603
    %v2900 = vmul.f32 %v1858, %v2604
    %v2901 = vmul.f32 %v1859, %v2605
    %v2902 = vmul.f32 %v1860, %v2606
    %v2903 = vmul.f32 %v1861, %v2607
    %v2904 = vmul.f32 %v1862, %v2608
    %v2905 = vmul.f32 %v1863, %v2609
    %v2906 = vmul.f32 %v1864, %v2610
    %v2907 = vmul.f32 %v1865, %v2603
    %v2908 = vmul.f32 %v1866, %v2604
    %v2909 = vmul.f32 %v1867, %v2605
    %v2910 = vmul.f32 %v1868, %v2606
    %v2911 = vmul.f32 %v1869, %v2607
    %v2912 = vmul.f32 %v1870, %v2608
    %v2913 = vmul.f32 %v1871, %v2609
    %v2914 = vmul.f32 %v1872, %v2610
    %v2915 = vmul.f32 %v1873, %v2603
    %v2916 = vmul.f32 %v1874, %v2604
    %v2917 = vmul.f32 %v1875, %v2605
    %v2918 = vmul.f32 %v1876, %v2606
    %v2919 = vmul.f32 %v1877, %v2607
    %v2920 = vmul.f32 %v1878, %v2608
    %v2921 = vmul.f32 %v1879, %v2609
    %v2922 = vmul.f32 %v1880, %v2610
    %v2923 = vmul.f32 %v1881, %v2603
    %v2924 = vmul.f32 %v1882, %v2604
    %v2925 = vmul.f32 %v1883, %v2605
    %v2926 = vmul.f32 %v1884, %v2606
    %v2927 = vmul.f32 %v1885, %v2607
    %v2928 = vmul.f32 %v1886, %v2608
    %v2929 = vmul.f32 %v1887, %v2609
    %v2930 = vmul.f32 %v1888, %v2610
    %v2931 = vmul.f32 %v1889, %v2603
    %v2932 = vmul.f32 %v1890, %v2604
    %v2933 = vmul.f32 %v1891, %v2605
    %v2934 = vmul.f32 %v1892, %v2606
    %v2935 = vmul.f32 %v1893, %v2607
    %v2936 = vmul.f32 %v1894, %v2608
    %v2937 = vmul.f32 %v1895, %v2609
    %v2938 = vmul.f32 %v1896, %v2610
    %v2939 = vmul.f32 %v1897, %v2603
    %v2940 = vmul.f32 %v1898, %v2604
    %v2941 = vmul.f32 %v1899, %v2605
    %v2942 = vmul.f32 %v1900, %v2606
    %v2943 = vmul.f32 %v1901, %v2607
    %v2944 = vmul.f32 %v1902, %v2608
    %v2945 = vmul.f32 %v1903, %v2609
    %v2946 = vmul.f32 %v1904, %v2610
    %v2947 = vmul.f32 %v1905, %v2603
    %v2948 = vmul.f32 %v1906, %v2604
    %v2949 = vmul.f32 %v1907, %v2605
    %v2950 = vmul.f32 %v1908, %v2606
    %v2951 = vmul.f32 %v1909, %v2607
    %v2952 = vmul.f32 %v1910, %v2608
    %v2953 = vmul.f32 %v1911, %v2609
    %v2954 = vmul.f32 %v1912, %v2610
    %v2955 = vmul.f32 %v1913, %v2603
    %v2956 = vmul.f32 %v1914, %v2604
    %v2957 = vmul.f32 %v1915, %v2605
    %v2958 = vmul.f32 %v1916, %v2606
    %v2959 = vmul.f32 %v1917, %v2607
    %v2960 = vmul.f32 %v1918, %v2608
    %v2961 = vmul.f32 %v1919, %v2609
    %v2962 = vmul.f32 %v1920, %v2610
    %v2963 = vmul.f32 %v1921, %v2603
    %v2964 = vmul.f32 %v1922, %v2604
    %v2965 = vmul.f32 %v1923, %v2605
    %v2966 = vmul.f32 %v1924, %v2606
    %v2967 = vmul.f32 %v1925, %v2607
    %v2968 = vmul.f32 %v1926, %v2608
    %v2969 = vmul.f32 %v1927, %v2609
    %v2970 = vmul.f32 %v1928, %v2610
    %v2971 = vmul.f32 %v1929, %v2603
    %v2972 = vmul.f32 %v1930, %v2604
    %v2973 = vmul.f32 %v1931, %v2605
    %v2974 = vmul.f32 %v1932, %v2606
    %v2975 = vmul.f32 %v1933, %v2607
    %v2976 = vmul.f32 %v1934, %v2608
    %v2977 = vmul.f32 %v1935, %v2609
    %v2978 = vmul.f32 %v1936, %v2610
    %v2979 = vmul.f32 %v1937, %v2603
    %v2980 = vmul.f32 %v1938, %v2604
    %v2981 = vmul.f32 %v1939, %v2605
    %v2982 = vmul.f32 %v1940, %v2606
    %v2983 = vmul.f32 %v1941, %v2607
    %v2984 = vmul.f32 %v1942, %v2608
    %v2985 = vmul.f32 %v1943, %v2609
    %v2986 = vmul.f32 %v1944, %v2610
    %v2987 = vmul.f32 %v1945, %v2603
    %v2988 = vmul.f32 %v1946, %v2604
    %v2989 = vmul.f32 %v1947, %v2605
    %v2990 = vmul.f32 %v1948, %v2606
    %v2991 = vmul.f32 %v1949, %v2607
    %v2992 = vmul.f32 %v1950, %v2608
    %v2993 = vmul.f32 %v1951, %v2609
    %v2994 = vmul.f32 %v1952, %v2610
    %v2995 = vmul.f32 %v1953, %v2603
    %v2996 = vmul.f32 %v1954, %v2604
    %v2997 = vmul.f32 %v1955, %v2605
    %v2998 = vmul.f32 %v1956, %v2606
    %v2999 = vmul.f32 %v1957, %v2607
    %v3000 = vmul.f32 %v1958, %v2608
    %v3001 = vmul.f32 %v1959, %v2609
    %v3002 = vmul.f32 %v1960, %v2610
    %v3003 = vmul.f32 %v1961, %v2603
    %v3004 = vmul.f32 %v1962, %v2604
    %v3005 = vmul.f32 %v1963, %v2605
    %v3006 = vmul.f32 %v1964, %v2606
    %v3007 = vmul.f32 %v1965, %v2607
    %v3008 = vmul.f32 %v1966, %v2608
    %v3009 = vmul.f32 %v1967, %v2609
    %v3010 = vmul.f32 %v1968, %v2610
    %v3011 = vmul.f32 %v1969, %v2603
    %v3012 = vmul.f32 %v1970, %v2604
    %v3013 = vmul.f32 %v1971, %v2605
    %v3014 = vmul.f32 %v1972, %v2606
    %v3015 = vmul.f32 %v1973, %v2607
    %v3016 = vmul.f32 %v1974, %v2608
    %v3017 = vmul.f32 %v1975, %v2609
    %v3018 = vmul.f32 %v1976, %v2610
    %v3019 = vmul.f32 %v1977, %v2603
    %v3020 = vmul.f32 %v1978, %v2604
    %v3021 = vmul.f32 %v1979, %v2605
    %v3022 = vmul.f32 %v1980, %v2606
    %v3023 = vmul.f32 %v1981, %v2607
    %v3024 = vmul.f32 %v1982, %v2608
    %v3025 = vmul.f32 %v1983, %v2609
    %v3026 = vmul.f32 %v1984, %v2610
    %v3027 = vmul.f32 %v1985, %v2603
    %v3028 = vmul.f32 %v1986, %v2604
    %v3029 = vmul.f32 %v1987, %v2605
    %v3030 = vmul.f32 %v1988, %v2606
    %v3031 = vmul.f32 %v1989, %v2607
    %v3032 = vmul.f32 %v1990, %v2608
    %v3033 = vmul.f32 %v1991, %v2609
    %v3034 = vmul.f32 %v1992, %v2610
    %v3035 = vmul.f32 %v1993, %v2603
    %v3036 = vmul.f32 %v1994, %v2604
    %v3037 = vmul.f32 %v1995, %v2605
    %v3038 = vmul.f32 %v1996, %v2606
    %v3039 = vmul.f32 %v1997, %v2607
    %v3040 = vmul.f32 %v1998, %v2608
    %v3041 = vmul.f32 %v1999, %v2609
    %v3042 = vmul.f32 %v2000, %v2610
    %v3043 = vmul.f32 %v2001, %v2603
    %v3044 = vmul.f32 %v2002, %v2604
    %v3045 = vmul.f32 %v2003, %v2605
    %v3046 = vmul.f32 %v2004, %v2606
    %v3047 = vmul.f32 %v2005, %v2607
    %v3048 = vmul.f32 %v2006, %v2608
    %v3049 = vmul.f32 %v2007, %v2609
    %v3050 = vmul.f32 %v2008, %v2610
    %v3051 = vmul.f32 %v2009, %v2603
    %v3052 = vmul.f32 %v2010, %v2604
    %v3053 = vmul.f32 %v2011, %v2605
    %v3054 = vmul.f32 %v2012, %v2606
    %v3055 = vmul.f32 %v2013, %v2607
    %v3056 = vmul.f32 %v2014, %v2608
    %v3057 = vmul.f32 %v2015, %v2609
    %v3058 = vmul.f32 %v2016, %v2610
    %v3059 = vmul.f32 %v2017, %v2603
    %v3060 = vmul.f32 %v2018, %v2604
    %v3061 = vmul.f32 %v2019, %v2605
    %v3062 = vmul.f32 %v2020, %v2606
    %v3063 = vmul.f32 %v2021, %v2607
    %v3064 = vmul.f32 %v2022, %v2608
    %v3065 = vmul.f32 %v2023, %v2609
    %v3066 = vmul.f32 %v2024, %v2610
    %v3067 = vmul.f32 %v2025, %v2603
    %v3068 = vmul.f32 %v2026, %v2604
    %v3069 = vmul.f32 %v2027, %v2605
    %v3070 = vmul.f32 %v2028, %v2606
    %v3071 = vmul.f32 %v2029, %v2607
    %v3072 = vmul.f32 %v2030, %v2608
    %v3073 = vmul.f32 %v2031, %v2609
    %v3074 = vmul.f32 %v2032, %v2610
    %v3075 = vmul.f32 %v2033, %v2603
    %v3076 = vmul.f32 %v2034, %v2604
    %v3077 = vmul.f32 %v2035, %v2605
    %v3078 = vmul.f32 %v2036, %v2606
    %v3079 = vmul.f32 %v2037, %v2607
    %v3080 = vmul.f32 %v2038, %v2608
    %v3081 = vmul.f32 %v2039, %v2609
    %v3082 = vmul.f32 %v2040, %v2610
    %v3083 = vmul.f32 %v2041, %v2603
    %v3084 = vmul.f32 %v2042, %v2604
    %v3085 = vmul.f32 %v2043, %v2605
    %v3086 = vmul.f32 %v2044, %v2606
    %v3087 = vmul.f32 %v2045, %v2607
    %v3088 = vmul.f32 %v2046, %v2608
    %v3089 = vmul.f32 %v2047, %v2609
    %v3090 = vmul.f32 %v2048, %v2610
    %v3091 = vmul.f32 %v2049, %v2603
    %v3092 = vmul.f32 %v2050, %v2604
    %v3093 = vmul.f32 %v2051, %v2605
    %v3094 = vmul.f32 %v2052, %v2606
    %v3095 = vmul.f32 %v2053, %v2607
    %v3096 = vmul.f32 %v2054, %v2608
    %v3097 = vmul.f32 %v2055, %v2609
    %v3098 = vmul.f32 %v2056, %v2610
    %v3099 = vmul.f32 %v2057, %v2603
    %v3100 = vmul.f32 %v2058, %v2604
    %v3101 = vmul.f32 %v2059, %v2605
    %v3102 = vmul.f32 %v2060, %v2606
    %v3103 = vmul.f32 %v2061, %v2607
    %v3104 = vmul.f32 %v2062, %v2608
    %v3105 = vmul.f32 %v2063, %v2609
    %v3106 = vmul.f32 %v2064, %v2610
    %v3107 = vmul.f32 %v2065, %v2603
    %v3108 = vmul.f32 %v2066, %v2604
    %v3109 = vmul.f32 %v2067, %v2605
    %v3110 = vmul.f32 %v2068, %v2606
    %v3111 = vmul.f32 %v2069, %v2607
    %v3112 = vmul.f32 %v2070, %v2608
    %v3113 = vmul.f32 %v2071, %v2609
    %v3114 = vmul.f32 %v2072, %v2610
    %v3115 = vmul.f32 %v2073, %v2603
    %v3116 = vmul.f32 %v2074, %v2604
    %v3117 = vmul.f32 %v2075, %v2605
    %v3118 = vmul.f32 %v2076, %v2606
    %v3119 = vmul.f32 %v2077, %v2607
    %v3120 = vmul.f32 %v2078, %v2608
    %v3121 = vmul.f32 %v2079, %v2609
    %v3122 = vmul.f32 %v2080, %v2610
    %v3123 = vmul.f32 %v2081, %v2603
    %v3124 = vmul.f32 %v2082, %v2604
    %v3125 = vmul.f32 %v2083, %v2605
    %v3126 = vmul.f32 %v2084, %v2606
    %v3127 = vmul.f32 %v2085, %v2607
    %v3128 = vmul.f32 %v2086, %v2608
    %v3129 = vmul.f32 %v2087, %v2609
    %v3130 = vmul.f32 %v2088, %v2610
    %v3131 = vmul.f32 %v2089, %v2603
    %v3132 = vmul.f32 %v2090, %v2604
    %v3133 = vmul.f32 %v2091, %v2605
    %v3134 = vmul.f32 %v2092, %v2606
    %v3135 = vmul.f32 %v2093, %v2607
    %v3136 = vmul.f32 %v2094, %v2608
    %v3137 = vmul.f32 %v2095, %v2609
    %v3138 = vmul.f32 %v2096, %v2610
    %v3139 = vmul.f32 %v2097, %v2603
    %v3140 = vmul.f32 %v2098, %v2604
    %v3141 = vmul.f32 %v2099, %v2605
    %v3142 = vmul.f32 %v2100, %v2606
    %v3143 = vmul.f32 %v2101, %v2607
    %v3144 = vmul.f32 %v2102, %v2608
    %v3145 = vmul.f32 %v2103, %v2609
    %v3146 = vmul.f32 %v2104, %v2610
    %v3147 = vmul.f32 %v2105, %v2603
    %v3148 = vmul.f32 %v2106, %v2604
    %v3149 = vmul.f32 %v2107, %v2605
    %v3150 = vmul.f32 %v2108, %v2606
    %v3151 = vmul.f32 %v2109, %v2607
    %v3152 = vmul.f32 %v2110, %v2608
    %v3153 = vmul.f32 %v2111, %v2609
    %v3154 = vmul.f32 %v2112, %v2610
    %v3155 = vmul.f32 %v2113, %v2603
    %v3156 = vmul.f32 %v2114, %v2604
    %v3157 = vmul.f32 %v2115, %v2605
    %v3158 = vmul.f32 %v2116, %v2606
    %v3159 = vmul.f32 %v2117, %v2607
    %v3160 = vmul.f32 %v2118, %v2608
    %v3161 = vmul.f32 %v2119, %v2609
    %v3162 = vmul.f32 %v2120, %v2610
    %v3163 = vmul.f32 %v2121, %v2603
    %v3164 = vmul.f32 %v2122, %v2604
    %v3165 = vmul.f32 %v2123, %v2605
    %v3166 = vmul.f32 %v2124, %v2606
    %v3167 = vmul.f32 %v2125, %v2607
    %v3168 = vmul.f32 %v2126, %v2608
    %v3169 = vmul.f32 %v2127, %v2609
    %v3170 = vmul.f32 %v2128, %v2610
    %v3171 = vmul.f32 %v2129, %v2603
    %v3172 = vmul.f32 %v2130, %v2604
    %v3173 = vmul.f32 %v2131, %v2605
    %v3174 = vmul.f32 %v2132, %v2606
    %v3175 = vmul.f32 %v2133, %v2607
    %v3176 = vmul.f32 %v2134, %v2608
    %v3177 = vmul.f32 %v2135, %v2609
    %v3178 = vmul.f32 %v2136, %v2610
    %v3179 = vmul.f32 %v2137, %v2603
    %v3180 = vmul.f32 %v2138, %v2604
    %v3181 = vmul.f32 %v2139, %v2605
    %v3182 = vmul.f32 %v2140, %v2606
    %v3183 = vmul.f32 %v2141, %v2607
    %v3184 = vmul.f32 %v2142, %v2608
    %v3185 = vmul.f32 %v2143, %v2609
    %v3186 = vmul.f32 %v2144, %v2610
    %v3187 = vmul.f32 %v2145, %v2603
    %v3188 = vmul.f32 %v2146, %v2604
    %v3189 = vmul.f32 %v2147, %v2605
    %v3190 = vmul.f32 %v2148, %v2606
    %v3191 = vmul.f32 %v2149, %v2607
    %v3192 = vmul.f32 %v2150, %v2608
    %v3193 = vmul.f32 %v2151, %v2609
    %v3194 = vmul.f32 %v2152, %v2610
    %v3195 = vmul.f32 %v2153, %v2603
    %v3196 = vmul.f32 %v2154, %v2604
    %v3197 = vmul.f32 %v2155, %v2605
    %v3198 = vmul.f32 %v2156, %v2606
    %v3199 = vmul.f32 %v2157, %v2607
    %v3200 = vmul.f32 %v2158, %v2608
    %v3201 = vmul.f32 %v2159, %v2609
    %v3202 = vmul.f32 %v2160, %v2610
    %v3203 = vmul.f32 %v2161, %v2603
    %v3204 = vmul.f32 %v2162, %v2604
    %v3205 = vmul.f32 %v2163, %v2605
    %v3206 = vmul.f32 %v2164, %v2606
    %v3207 = vmul.f32 %v2165, %v2607
    %v3208 = vmul.f32 %v2166, %v2608
    %v3209 = vmul.f32 %v2167, %v2609
    %v3210 = vmul.f32 %v2168, %v2610
    %v3211 = vmul.f32 %v2169, %v2603
    %v3212 = vmul.f32 %v2170, %v2604
    %v3213 = vmul.f32 %v2171, %v2605
    %v3214 = vmul.f32 %v2172, %v2606
    %v3215 = vmul.f32 %v2173, %v2607
    %v3216 = vmul.f32 %v2174, %v2608
    %v3217 = vmul.f32 %v2175, %v2609
    %v3218 = vmul.f32 %v2176, %v2610
    %v3219 = vmul.f32 %v2177, %v2603
    %v3220 = vmul.f32 %v2178, %v2604
    %v3221 = vmul.f32 %v2179, %v2605
    %v3222 = vmul.f32 %v2180, %v2606
    %v3223 = vmul.f32 %v2181, %v2607
    %v3224 = vmul.f32 %v2182, %v2608
    %v3225 = vmul.f32 %v2183, %v2609
    %v3226 = vmul.f32 %v2184, %v2610
    %v3227 = vmul.f32 %v2185, %v2603
    %v3228 = vmul.f32 %v2186, %v2604
    %v3229 = vmul.f32 %v2187, %v2605
    %v3230 = vmul.f32 %v2188, %v2606
    %v3231 = vmul.f32 %v2189, %v2607
    %v3232 = vmul.f32 %v2190, %v2608
    %v3233 = vmul.f32 %v2191, %v2609
    %v3234 = vmul.f32 %v2192, %v2610
    %v3235 = vmul.f32 %v2193, %v2603
    %v3236 = vmul.f32 %v2194, %v2604
    %v3237 = vmul.f32 %v2195, %v2605
    %v3238 = vmul.f32 %v2196, %v2606
    %v3239 = vmul.f32 %v2197, %v2607
    %v3240 = vmul.f32 %v2198, %v2608
    %v3241 = vmul.f32 %v2199, %v2609
    %v3242 = vmul.f32 %v2200, %v2610
    %v3243 = vmul.f32 %v2201, %v2603
    %v3244 = vmul.f32 %v2202, %v2604
    %v3245 = vmul.f32 %v2203, %v2605
    %v3246 = vmul.f32 %v2204, %v2606
    %v3247 = vmul.f32 %v2205, %v2607
    %v3248 = vmul.f32 %v2206, %v2608
    %v3249 = vmul.f32 %v2207, %v2609
    %v3250 = vmul.f32 %v2208, %v2610
    %v3251 = vmul.f32 %v2209, %v2603
    %v3252 = vmul.f32 %v2210, %v2604
    %v3253 = vmul.f32 %v2211, %v2605
    %v3254 = vmul.f32 %v2212, %v2606
    %v3255 = vmul.f32 %v2213, %v2607
    %v3256 = vmul.f32 %v2214, %v2608
    %v3257 = vmul.f32 %v2215, %v2609
    %v3258 = vmul.f32 %v2216, %v2610
    %v3259 = vmul.f32 %v2217, %v2603
    %v3260 = vmul.f32 %v2218, %v2604
    %v3261 = vmul.f32 %v2219, %v2605
    %v3262 = vmul.f32 %v2220, %v2606
    %v3263 = vmul.f32 %v2221, %v2607
    %v3264 = vmul.f32 %v2222, %v2608
    %v3265 = vmul.f32 %v2223, %v2609
    %v3266 = vmul.f32 %v2224, %v2610
    %v3267 = vmul.f32 %v2225, %v2603
    %v3268 = vmul.f32 %v2226, %v2604
    %v3269 = vmul.f32 %v2227, %v2605
    %v3270 = vmul.f32 %v2228, %v2606
    %v3271 = vmul.f32 %v2229, %v2607
    %v3272 = vmul.f32 %v2230, %v2608
    %v3273 = vmul.f32 %v2231, %v2609
    %v3274 = vmul.f32 %v2232, %v2610
    %v3275 = vmul.f32 %v2233, %v2603
    %v3276 = vmul.f32 %v2234, %v2604
    %v3277 = vmul.f32 %v2235, %v2605
    %v3278 = vmul.f32 %v2236, %v2606
    %v3279 = vmul.f32 %v2237, %v2607
    %v3280 = vmul.f32 %v2238, %v2608
    %v3281 = vmul.f32 %v2239, %v2609
    %v3282 = vmul.f32 %v2240, %v2610
    %v3283 = vmul.f32 %v2241, %v2603
    %v3284 = vmul.f32 %v2242, %v2604
    %v3285 = vmul.f32 %v2243, %v2605
    %v3286 = vmul.f32 %v2244, %v2606
    %v3287 = vmul.f32 %v2245, %v2607
    %v3288 = vmul.f32 %v2246, %v2608
    %v3289 = vmul.f32 %v2247, %v2609
    %v3290 = vmul.f32 %v2248, %v2610
    %v3291 = vmul.f32 %v2249, %v2603
    %v3292 = vmul.f32 %v2250, %v2604
    %v3293 = vmul.f32 %v2251, %v2605
    %v3294 = vmul.f32 %v2252, %v2606
    %v3295 = vmul.f32 %v2253, %v2607
    %v3296 = vmul.f32 %v2254, %v2608
    %v3297 = vmul.f32 %v2255, %v2609
    %v3298 = vmul.f32 %v2256, %v2610
    %v3299 = vmul.f32 %v2257, %v2603
    %v3300 = vmul.f32 %v2258, %v2604
    %v3301 = vmul.f32 %v2259, %v2605
    %v3302 = vmul.f32 %v2260, %v2606
    %v3303 = vmul.f32 %v2261, %v2607
    %v3304 = vmul.f32 %v2262, %v2608
    %v3305 = vmul.f32 %v2263, %v2609
    %v3306 = vmul.f32 %v2264, %v2610
    %v3307 = vmul.f32 %v2265, %v2603
    %v3308 = vmul.f32 %v2266, %v2604
    %v3309 = vmul.f32 %v2267, %v2605
    %v3310 = vmul.f32 %v2268, %v2606
    %v3311 = vmul.f32 %v2269, %v2607
    %v3312 = vmul.f32 %v2270, %v2608
    %v3313 = vmul.f32 %v2271, %v2609
    %v3314 = vmul.f32 %v2272, %v2610
    %v3315 = vmul.f32 %v2273, %v2603
    %v3316 = vmul.f32 %v2274, %v2604
    %v3317 = vmul.f32 %v2275, %v2605
    %v3318 = vmul.f32 %v2276, %v2606
    %v3319 = vmul.f32 %v2277, %v2607
    %v3320 = vmul.f32 %v2278, %v2608
    %v3321 = vmul.f32 %v2279, %v2609
    %v3322 = vmul.f32 %v2280, %v2610
    %v3323 = vmul.f32 %v2281, %v2603
    %v3324 = vmul.f32 %v2282, %v2604
    %v3325 = vmul.f32 %v2283, %v2605
    %v3326 = vmul.f32 %v2284, %v2606
    %v3327 = vmul.f32 %v2285, %v2607
    %v3328 = vmul.f32 %v2286, %v2608
    %v3329 = vmul.f32 %v2287, %v2609
    %v3330 = vmul.f32 %v2288, %v2610
    %v3331 = vmul.f32 %v2289, %v2603
    %v3332 = vmul.f32 %v2290, %v2604
    %v3333 = vmul.f32 %v2291, %v2605
    %v3334 = vmul.f32 %v2292, %v2606
    %v3335 = vmul.f32 %v2293, %v2607
    %v3336 = vmul.f32 %v2294, %v2608
    %v3337 = vmul.f32 %v2295, %v2609
    %v3338 = vmul.f32 %v2296, %v2610
    %v3339 = vmul.f32 %v2297, %v2603
    %v3340 = vmul.f32 %v2298, %v2604
    %v3341 = vmul.f32 %v2299, %v2605
    %v3342 = vmul.f32 %v2300, %v2606
    %v3343 = vmul.f32 %v2301, %v2607
    %v3344 = vmul.f32 %v2302, %v2608
    %v3345 = vmul.f32 %v2303, %v2609
    %v3346 = vmul.f32 %v2304, %v2610
    %v3347 = vmul.f32 %v2305, %v2603
    %v3348 = vmul.f32 %v2306, %v2604
    %v3349 = vmul.f32 %v2307, %v2605
    %v3350 = vmul.f32 %v2308, %v2606
    %v3351 = vmul.f32 %v2309, %v2607
    %v3352 = vmul.f32 %v2310, %v2608
    %v3353 = vmul.f32 %v2311, %v2609
    %v3354 = vmul.f32 %v2312, %v2610
    %v3355 = vmul.f32 %v2313, %v2603
    %v3356 = vmul.f32 %v2314, %v2604
    %v3357 = vmul.f32 %v2315, %v2605
    %v3358 = vmul.f32 %v2316, %v2606
    %v3359 = vmul.f32 %v2317, %v2607
    %v3360 = vmul.f32 %v2318, %v2608
    %v3361 = vmul.f32 %v2319, %v2609
    %v3362 = vmul.f32 %v2320, %v2610
    %v3363 = vmul.f32 %v2321, %v2603
    %v3364 = vmul.f32 %v2322, %v2604
    %v3365 = vmul.f32 %v2323, %v2605
    %v3366 = vmul.f32 %v2324, %v2606
    %v3367 = vmul.f32 %v2325, %v2607
    %v3368 = vmul.f32 %v2326, %v2608
    %v3369 = vmul.f32 %v2327, %v2609
    %v3370 = vmul.f32 %v2328, %v2610
    %v3371 = vmul.f32 %v2329, %v2603
    %v3372 = vmul.f32 %v2330, %v2604
    %v3373 = vmul.f32 %v2331, %v2605
    %v3374 = vmul.f32 %v2332, %v2606
    %v3375 = vmul.f32 %v2333, %v2607
    %v3376 = vmul.f32 %v2334, %v2608
    %v3377 = vmul.f32 %v2335, %v2609
    %v3378 = vmul.f32 %v2336, %v2610
    %v3379 = vmul.f32 %v2337, %v2603
    %v3380 = vmul.f32 %v2338, %v2604
    %v3381 = vmul.f32 %v2339, %v2605
    %v3382 = vmul.f32 %v2340, %v2606
    %v3383 = vmul.f32 %v2341, %v2607
    %v3384 = vmul.f32 %v2342, %v2608
    %v3385 = vmul.f32 %v2343, %v2609
    %v3386 = vmul.f32 %v2344, %v2610
    %v3387 = vmul.f32 %v2345, %v2603
    %v3388 = vmul.f32 %v2346, %v2604
    %v3389 = vmul.f32 %v2347, %v2605
    %v3390 = vmul.f32 %v2348, %v2606
    %v3391 = vmul.f32 %v2349, %v2607
    %v3392 = vmul.f32 %v2350, %v2608
    %v3393 = vmul.f32 %v2351, %v2609
    %v3394 = vmul.f32 %v2352, %v2610
    %v3395 = vmul.f32 %v2353, %v2603
    %v3396 = vmul.f32 %v2354, %v2604
    %v3397 = vmul.f32 %v2355, %v2605
    %v3398 = vmul.f32 %v2356, %v2606
    %v3399 = vmul.f32 %v2357, %v2607
    %v3400 = vmul.f32 %v2358, %v2608
    %v3401 = vmul.f32 %v2359, %v2609
    %v3402 = vmul.f32 %v2360, %v2610
    %v3403 = vmul.f32 %v2361, %v2603
    %v3404 = vmul.f32 %v2362, %v2604
    %v3405 = vmul.f32 %v2363, %v2605
    %v3406 = vmul.f32 %v2364, %v2606
    %v3407 = vmul.f32 %v2365, %v2607
    %v3408 = vmul.f32 %v2366, %v2608
    %v3409 = vmul.f32 %v2367, %v2609
    %v3410 = vmul.f32 %v2368, %v2610
    %v3411 = vmul.f32 %v2369, %v2603
    %v3412 = vmul.f32 %v2370, %v2604
    %v3413 = vmul.f32 %v2371, %v2605
    %v3414 = vmul.f32 %v2372, %v2606
    %v3415 = vmul.f32 %v2373, %v2607
    %v3416 = vmul.f32 %v2374, %v2608
    %v3417 = vmul.f32 %v2375, %v2609
    %v3418 = vmul.f32 %v2376, %v2610
    %v3419 = vmul.f32 %v2377, %v2603
    %v3420 = vmul.f32 %v2378, %v2604
    %v3421 = vmul.f32 %v2379, %v2605
    %v3422 = vmul.f32 %v2380, %v2606
    %v3423 = vmul.f32 %v2381, %v2607
    %v3424 = vmul.f32 %v2382, %v2608
    %v3425 = vmul.f32 %v2383, %v2609
    %v3426 = vmul.f32 %v2384, %v2610
    %v3427 = vmul.f32 %v2385, %v2603
    %v3428 = vmul.f32 %v2386, %v2604
    %v3429 = vmul.f32 %v2387, %v2605
    %v3430 = vmul.f32 %v2388, %v2606
    %v3431 = vmul.f32 %v2389, %v2607
    %v3432 = vmul.f32 %v2390, %v2608
    %v3433 = vmul.f32 %v2391, %v2609
    %v3434 = vmul.f32 %v2392, %v2610
    %v3435 = vmul.f32 %v2393, %v2603
    %v3436 = vmul.f32 %v2394, %v2604
    %v3437 = vmul.f32 %v2395, %v2605
    %v3438 = vmul.f32 %v2396, %v2606
    %v3439 = vmul.f32 %v2397, %v2607
    %v3440 = vmul.f32 %v2398, %v2608
    %v3441 = vmul.f32 %v2399, %v2609
    %v3442 = vmul.f32 %v2400, %v2610
    %v3443 = vmul.f32 %v2401, %v2603
    %v3444 = vmul.f32 %v2402, %v2604
    %v3445 = vmul.f32 %v2403, %v2605
    %v3446 = vmul.f32 %v2404, %v2606
    %v3447 = vmul.f32 %v2405, %v2607
    %v3448 = vmul.f32 %v2406, %v2608
    %v3449 = vmul.f32 %v2407, %v2609
    %v3450 = vmul.f32 %v2408, %v2610
    %v3451 = vmul.f32 %v2409, %v2603
    %v3452 = vmul.f32 %v2410, %v2604
    %v3453 = vmul.f32 %v2411, %v2605
    %v3454 = vmul.f32 %v2412, %v2606
    %v3455 = vmul.f32 %v2413, %v2607
    %v3456 = vmul.f32 %v2414, %v2608
    %v3457 = vmul.f32 %v2415, %v2609
    %v3458 = vmul.f32 %v2416, %v2610
    %v3459 = vmul.f32 %v2417, %v2603
    %v3460 = vmul.f32 %v2418, %v2604
    %v3461 = vmul.f32 %v2419, %v2605
    %v3462 = vmul.f32 %v2420, %v2606
    %v3463 = vmul.f32 %v2421, %v2607
    %v3464 = vmul.f32 %v2422, %v2608
    %v3465 = vmul.f32 %v2423, %v2609
    %v3466 = vmul.f32 %v2424, %v2610
    %v3467 = vmul.f32 %v2425, %v2603
    %v3468 = vmul.f32 %v2426, %v2604
    %v3469 = vmul.f32 %v2427, %v2605
    %v3470 = vmul.f32 %v2428, %v2606
    %v3471 = vmul.f32 %v2429, %v2607
    %v3472 = vmul.f32 %v2430, %v2608
    %v3473 = vmul.f32 %v2431, %v2609
    %v3474 = vmul.f32 %v2432, %v2610
    %v3475 = vmul.f32 %v2433, %v2603
    %v3476 = vmul.f32 %v2434, %v2604
    %v3477 = vmul.f32 %v2435, %v2605
    %v3478 = vmul.f32 %v2436, %v2606
    %v3479 = vmul.f32 %v2437, %v2607
    %v3480 = vmul.f32 %v2438, %v2608
    %v3481 = vmul.f32 %v2439, %v2609
    %v3482 = vmul.f32 %v2440, %v2610
    %v3483 = vmul.f32 %v2441, %v2603
    %v3484 = vmul.f32 %v2442, %v2604
    %v3485 = vmul.f32 %v2443, %v2605
    %v3486 = vmul.f32 %v2444, %v2606
    %v3487 = vmul.f32 %v2445, %v2607
    %v3488 = vmul.f32 %v2446, %v2608
    %v3489 = vmul.f32 %v2447, %v2609
    %v3490 = vmul.f32 %v2448, %v2610
    %v3491 = vmul.f32 %v2449, %v2603
    %v3492 = vmul.f32 %v2450, %v2604
    %v3493 = vmul.f32 %v2451, %v2605
    %v3494 = vmul.f32 %v2452, %v2606
    %v3495 = vmul.f32 %v2453, %v2607
    %v3496 = vmul.f32 %v2454, %v2608
    %v3497 = vmul.f32 %v2455, %v2609
    %v3498 = vmul.f32 %v2456, %v2610
    %v3499 = vmul.f32 %v2457, %v2603
    %v3500 = vmul.f32 %v2458, %v2604
    %v3501 = vmul.f32 %v2459, %v2605
    %v3502 = vmul.f32 %v2460, %v2606
    %v3503 = vmul.f32 %v2461, %v2607
    %v3504 = vmul.f32 %v2462, %v2608
    %v3505 = vmul.f32 %v2463, %v2609
    %v3506 = vmul.f32 %v2464, %v2610
    %v3507 = vmul.f32 %v2465, %v2603
    %v3508 = vmul.f32 %v2466, %v2604
    %v3509 = vmul.f32 %v2467, %v2605
    %v3510 = vmul.f32 %v2468, %v2606
    %v3511 = vmul.f32 %v2469, %v2607
    %v3512 = vmul.f32 %v2470, %v2608
    %v3513 = vmul.f32 %v2471, %v2609
    %v3514 = vmul.f32 %v2472, %v2610
    %v3515 = vmul.f32 %v2473, %v2603
    %v3516 = vmul.f32 %v2474, %v2604
    %v3517 = vmul.f32 %v2475, %v2605
    %v3518 = vmul.f32 %v2476, %v2606
    %v3519 = vmul.f32 %v2477, %v2607
    %v3520 = vmul.f32 %v2478, %v2608
    %v3521 = vmul.f32 %v2479, %v2609
    %v3522 = vmul.f32 %v2480, %v2610
    %v3523 = vmul.f32 %v2481, %v2603
    %v3524 = vmul.f32 %v2482, %v2604
    %v3525 = vmul.f32 %v2483, %v2605
    %v3526 = vmul.f32 %v2484, %v2606
    %v3527 = vmul.f32 %v2485, %v2607
    %v3528 = vmul.f32 %v2486, %v2608
    %v3529 = vmul.f32 %v2487, %v2609
    %v3530 = vmul.f32 %v2488, %v2610
    %v3531 = vmul.f32 %v2489, %v2603
    %v3532 = vmul.f32 %v2490, %v2604
    %v3533 = vmul.f32 %v2491, %v2605
    %v3534 = vmul.f32 %v2492, %v2606
    %v3535 = vmul.f32 %v2493, %v2607
    %v3536 = vmul.f32 %v2494, %v2608
    %v3537 = vmul.f32 %v2495, %v2609
    %v3538 = vmul.f32 %v2496, %v2610
    %v3539 = vmul.f32 %v2497, %v2603
    %v3540 = vmul.f32 %v2498, %v2604
    %v3541 = vmul.f32 %v2499, %v2605
    %v3542 = vmul.f32 %v2500, %v2606
    %v3543 = vmul.f32 %v2501, %v2607
    %v3544 = vmul.f32 %v2502, %v2608
    %v3545 = vmul.f32 %v2503, %v2609
    %v3546 = vmul.f32 %v2504, %v2610
    %v3547 = vmul.f32 %v2505, %v2603
    %v3548 = vmul.f32 %v2506, %v2604
    %v3549 = vmul.f32 %v2507, %v2605
    %v3550 = vmul.f32 %v2508, %v2606
    %v3551 = vmul.f32 %v2509, %v2607
    %v3552 = vmul.f32 %v2510, %v2608
    %v3553 = vmul.f32 %v2511, %v2609
    %v3554 = vmul.f32 %v2512, %v2610
    %v3555 = vmul.f32 %v2513, %v2603
    %v3556 = vmul.f32 %v2514, %v2604
    %v3557 = vmul.f32 %v2515, %v2605
    %v3558 = vmul.f32 %v2516, %v2606
    %v3559 = vmul.f32 %v2517, %v2607
    %v3560 = vmul.f32 %v2518, %v2608
    %v3561 = vmul.f32 %v2519, %v2609
    %v3562 = vmul.f32 %v2520, %v2610
    %v3563 = vmul.f32 %v2521, %v2603
    %v3564 = vmul.f32 %v2522, %v2604
    %v3565 = vmul.f32 %v2523, %v2605
    %v3566 = vmul.f32 %v2524, %v2606
    %v3567 = vmul.f32 %v2525, %v2607
    %v3568 = vmul.f32 %v2526, %v2608
    %v3569 = vmul.f32 %v2527, %v2609
    %v3570 = vmul.f32 %v2528, %v2610
    %v3571 = vmul.f32 %v2529, %v2603
    %v3572 = vmul.f32 %v2530, %v2604
    %v3573 = vmul.f32 %v2531, %v2605
    %v3574 = vmul.f32 %v2532, %v2606
    %v3575 = vmul.f32 %v2533, %v2607
    %v3576 = vmul.f32 %v2534, %v2608
    %v3577 = vmul.f32 %v2535, %v2609
    %v3578 = vmul.f32 %v2536, %v2610
    %v3579 = vmul.f32 %v2537, %v2603
    %v3580 = vmul.f32 %v2538, %v2604
    %v3581 = vmul.f32 %v2539, %v2605
    %v3582 = vmul.f32 %v2540, %v2606
    %v3583 = vmul.f32 %v2541, %v2607
    %v3584 = vmul.f32 %v2542, %v2608
    %v3585 = vmul.f32 %v2543, %v2609
    %v3586 = vmul.f32 %v2544, %v2610
    %v3587 = vmul.f32 %v2545, %v2603
    %v3588 = vmul.f32 %v2546, %v2604
    %v3589 = vmul.f32 %v2547, %v2605
    %v3590 = vmul.f32 %v2548, %v2606
    %v3591 = vmul.f32 %v2549, %v2607
    %v3592 = vmul.f32 %v2550, %v2608
    %v3593 = vmul.f32 %v2551, %v2609
    %v3594 = vmul.f32 %v2552, %v2610
    %v3595 = vmul.f32 %v2553, %v2603
    %v3596 = vmul.f32 %v2554, %v2604
    %v3597 = vmul.f32 %v2555, %v2605
    %v3598 = vmul.f32 %v2556, %v2606
    %v3599 = vmul.f32 %v2557, %v2607
    %v3600 = vmul.f32 %v2558, %v2608
    %v3601 = vmul.f32 %v2559, %v2609
    %v3602 = vmul.f32 %v2560, %v2610
    %v3603 = vmul.f32 %v2561, %v2603
    %v3604 = vmul.f32 %v2562, %v2604
    %v3605 = vmul.f32 %v2563, %v2605
    %v3606 = vmul.f32 %v2564, %v2606
    %v3607 = vmul.f32 %v2565, %v2607
    %v3608 = vmul.f32 %v2566, %v2608
    %v3609 = vmul.f32 %v2567, %v2609
    %v3610 = vmul.f32 %v2568, %v2610
    %v3611 = vmul.f32 %v2569, %v2603
    %v3612 = vmul.f32 %v2570, %v2604
    %v3613 = vmul.f32 %v2571, %v2605
    %v3614 = vmul.f32 %v2572, %v2606
    %v3615 = vmul.f32 %v2573, %v2607
    %v3616 = vmul.f32 %v2574, %v2608
    %v3617 = vmul.f32 %v2575, %v2609
    %v3618 = vmul.f32 %v2576, %v2610
    %v3619 = vmul.f32 %v2577, %v2603
    %v3620 = vmul.f32 %v2578, %v2604
    %v3621 = vmul.f32 %v2579, %v2605
    %v3622 = vmul.f32 %v2580, %v2606
    %v3623 = vmul.f32 %v2581, %v2607
    %v3624 = vmul.f32 %v2582, %v2608
    %v3625 = vmul.f32 %v2583, %v2609
    %v3626 = vmul.f32 %v2584, %v2610
    %v3627 = vmul.f32 %v2585, %v2603
    %v3628 = vmul.f32 %v2586, %v2604
    %v3629 = vmul.f32 %v2587, %v2605
    %v3630 = vmul.f32 %v2588, %v2606
    %v3631 = vmul.f32 %v2589, %v2607
    %v3632 = vmul.f32 %v2590, %v2608
    %v3633 = vmul.f32 %v2591, %v2609
    %v3634 = vmul.f32 %v2592, %v2610
    %v3635 = vmul.f32 %v2593, %v2603
    %v3636 = vmul.f32 %v2594, %v2604
    %v3637 = vmul.f32 %v2595, %v2605
    %v3638 = vmul.f32 %v2596, %v2606
    %v3639 = vmul.f32 %v2597, %v2607
    %v3640 = vmul.f32 %v2598, %v2608
    %v3641 = vmul.f32 %v2599, %v2609
    %v3642 = vmul.f32 %v2600, %v2610
    %v3643 = vpack.c.bf16 %v2627, %v2619
    %v3644 = vpack.c.bf16 %v2628, %v2620
    %v3645 = vpack.c.bf16 %v2629, %v2621
    %v3646 = vpack.c.bf16 %v2630, %v2622
    %v3647 = vpack.c.bf16 %v2631, %v2623
    %v3648 = vpack.c.bf16 %v2632, %v2624
    %v3649 = vpack.c.bf16 %v2633, %v2625
    %v3650 = vpack.c.bf16 %v2634, %v2626
    %v3651 = vpack.c.bf16 %v2643, %v2635
    %v3652 = vpack.c.bf16 %v2644, %v2636
    %v3653 = vpack.c.bf16 %v2645, %v2637
    %v3654 = vpack.c.bf16 %v2646, %v2638
    %v3655 = vpack.c.bf16 %v2647, %v2639
    %v3656 = vpack.c.bf16 %v2648, %v2640
    %v3657 = vpack.c.bf16 %v2649, %v2641
    %v3658 = vpack.c.bf16 %v2650, %v2642
    %v3659 = vpack.c.bf16 %v2659, %v2651
    %v3660 = vpack.c.bf16 %v2660, %v2652
    %v3661 = vpack.c.bf16 %v2661, %v2653
    %v3662 = vpack.c.bf16 %v2662, %v2654
    %v3663 = vpack.c.bf16 %v2663, %v2655
    %v3664 = vpack.c.bf16 %v2664, %v2656
    %v3665 = vpack.c.bf16 %v2665, %v2657
    %v3666 = vpack.c.bf16 %v2666, %v2658
    %v3667 = vpack.c.bf16 %v2675, %v2667
    %v3668 = vpack.c.bf16 %v2676, %v2668
    %v3669 = vpack.c.bf16 %v2677, %v2669
    %v3670 = vpack.c.bf16 %v2678, %v2670
    %v3671 = vpack.c.bf16 %v2679, %v2671
    %v3672 = vpack.c.bf16 %v2680, %v2672
    %v3673 = vpack.c.bf16 %v2681, %v2673
    %v3674 = vpack.c.bf16 %v2682, %v2674
    %v3675 = vpack.c.bf16 %v2691, %v2683
    %v3676 = vpack.c.bf16 %v2692, %v2684
    %v3677 = vpack.c.bf16 %v2693, %v2685
    %v3678 = vpack.c.bf16 %v2694, %v2686
    %v3679 = vpack.c.bf16 %v2695, %v2687
    %v3680 = vpack.c.bf16 %v2696, %v2688
    %v3681 = vpack.c.bf16 %v2697, %v2689
    %v3682 = vpack.c.bf16 %v2698, %v2690
    %v3683 = vpack.c.bf16 %v2707, %v2699
    %v3684 = vpack.c.bf16 %v2708, %v2700
    %v3685 = vpack.c.bf16 %v2709, %v2701
    %v3686 = vpack.c.bf16 %v2710, %v2702
    %v3687 = vpack.c.bf16 %v2711, %v2703
    %v3688 = vpack.c.bf16 %v2712, %v2704
    %v3689 = vpack.c.bf16 %v2713, %v2705
    %v3690 = vpack.c.bf16 %v2714, %v2706
    %v3691 = vpack.c.bf16 %v2723, %v2715
    %v3692 = vpack.c.bf16 %v2724, %v2716
    %v3693 = vpack.c.bf16 %v2725, %v2717
    %v3694 = vpack.c.bf16 %v2726, %v2718
    %v3695 = vpack.c.bf16 %v2727, %v2719
    %v3696 = vpack.c.bf16 %v2728, %v2720
    %v3697 = vpack.c.bf16 %v2729, %v2721
    %v3698 = vpack.c.bf16 %v2730, %v2722
    %v3699 = vpack.c.bf16 %v2739, %v2731
    %v3700 = vpack.c.bf16 %v2740, %v2732
    %v3701 = vpack.c.bf16 %v2741, %v2733
    %v3702 = vpack.c.bf16 %v2742, %v2734
    %v3703 = vpack.c.bf16 %v2743, %v2735
    %v3704 = vpack.c.bf16 %v2744, %v2736
    %v3705 = vpack.c.bf16 %v2745, %v2737
    %v3706 = vpack.c.bf16 %v2746, %v2738
    %v3707 = vpack.c.bf16 %v2755, %v2747
    %v3708 = vpack.c.bf16 %v2756, %v2748
    %v3709 = vpack.c.bf16 %v2757, %v2749
    %v3710 = vpack.c.bf16 %v2758, %v2750
    %v3711 = vpack.c.bf16 %v2759, %v2751
    %v3712 = vpack.c.bf16 %v2760, %v2752
    %v3713 = vpack.c.bf16 %v2761, %v2753
    %v3714 = vpack.c.bf16 %v2762, %v2754
    %v3715 = vpack.c.bf16 %v2771, %v2763
    %v3716 = vpack.c.bf16 %v2772, %v2764
    %v3717 = vpack.c.bf16 %v2773, %v2765
    %v3718 = vpack.c.bf16 %v2774, %v2766
    %v3719 = vpack.c.bf16 %v2775, %v2767
    %v3720 = vpack.c.bf16 %v2776, %v2768
    %v3721 = vpack.c.bf16 %v2777, %v2769
    %v3722 = vpack.c.bf16 %v2778, %v2770
    %v3723 = vpack.c.bf16 %v2787, %v2779
    %v3724 = vpack.c.bf16 %v2788, %v2780
    %v3725 = vpack.c.bf16 %v2789, %v2781
    %v3726 = vpack.c.bf16 %v2790, %v2782
    %v3727 = vpack.c.bf16 %v2791, %v2783
    %v3728 = vpack.c.bf16 %v2792, %v2784
    %v3729 = vpack.c.bf16 %v2793, %v2785
    %v3730 = vpack.c.bf16 %v2794, %v2786
    %v3731 = vpack.c.bf16 %v2803, %v2795
    %v3732 = vpack.c.bf16 %v2804, %v2796
    %v3733 = vpack.c.bf16 %v2805, %v2797
    %v3734 = vpack.c.bf16 %v2806, %v2798
    %v3735 = vpack.c.bf16 %v2807, %v2799
    %v3736 = vpack.c.bf16 %v2808, %v2800
    %v3737 = vpack.c.bf16 %v2809, %v2801
    %v3738 = vpack.c.bf16 %v2810, %v2802
    %v3739 = vpack.c.bf16 %v2819, %v2811
    %v3740 = vpack.c.bf16 %v2820, %v2812
    %v3741 = vpack.c.bf16 %v2821, %v2813
    %v3742 = vpack.c.bf16 %v2822, %v2814
    %v3743 = vpack.c.bf16 %v2823, %v2815
    %v3744 = vpack.c.bf16 %v2824, %v2816
    %v3745 = vpack.c.bf16 %v2825, %v2817
    %v3746 = vpack.c.bf16 %v2826, %v2818
    %v3747 = vpack.c.bf16 %v2835, %v2827
    %v3748 = vpack.c.bf16 %v2836, %v2828
    %v3749 = vpack.c.bf16 %v2837, %v2829
    %v3750 = vpack.c.bf16 %v2838, %v2830
    %v3751 = vpack.c.bf16 %v2839, %v2831
    %v3752 = vpack.c.bf16 %v2840, %v2832
    %v3753 = vpack.c.bf16 %v2841, %v2833
    %v3754 = vpack.c.bf16 %v2842, %v2834
    %v3755 = vpack.c.bf16 %v2851, %v2843
    %v3756 = vpack.c.bf16 %v2852, %v2844
    %v3757 = vpack.c.bf16 %v2853, %v2845
    %v3758 = vpack.c.bf16 %v2854, %v2846
    %v3759 = vpack.c.bf16 %v2855, %v2847
    %v3760 = vpack.c.bf16 %v2856, %v2848
    %v3761 = vpack.c.bf16 %v2857, %v2849
    %v3762 = vpack.c.bf16 %v2858, %v2850
    %v3763 = vpack.c.bf16 %v2867, %v2859
    %v3764 = vpack.c.bf16 %v2868, %v2860
    %v3765 = vpack.c.bf16 %v2869, %v2861
    %v3766 = vpack.c.bf16 %v2870, %v2862
    %v3767 = vpack.c.bf16 %v2871, %v2863
    %v3768 = vpack.c.bf16 %v2872, %v2864
    %v3769 = vpack.c.bf16 %v2873, %v2865
    %v3770 = vpack.c.bf16 %v2874, %v2866
    %v3771 = vpack.c.bf16 %v2883, %v2875
    %v3772 = vpack.c.bf16 %v2884, %v2876
    %v3773 = vpack.c.bf16 %v2885, %v2877
    %v3774 = vpack.c.bf16 %v2886, %v2878
    %v3775 = vpack.c.bf16 %v2887, %v2879
    %v3776 = vpack.c.bf16 %v2888, %v2880
    %v3777 = vpack.c.bf16 %v2889, %v2881
    %v3778 = vpack.c.bf16 %v2890, %v2882
    %v3779 = vpack.c.bf16 %v2899, %v2891
    %v3780 = vpack.c.bf16 %v2900, %v2892
    %v3781 = vpack.c.bf16 %v2901, %v2893
    %v3782 = vpack.c.bf16 %v2902, %v2894
    %v3783 = vpack.c.bf16 %v2903, %v2895
    %v3784 = vpack.c.bf16 %v2904, %v2896
    %v3785 = vpack.c.bf16 %v2905, %v2897
    %v3786 = vpack.c.bf16 %v2906, %v2898
    %v3787 = vpack.c.bf16 %v2915, %v2907
    %v3788 = vpack.c.bf16 %v2916, %v2908
    %v3789 = vpack.c.bf16 %v2917, %v2909
    %v3790 = vpack.c.bf16 %v2918, %v2910
    %v3791 = vpack.c.bf16 %v2919, %v2911
    %v3792 = vpack.c.bf16 %v2920, %v2912
    %v3793 = vpack.c.bf16 %v2921, %v2913
    %v3794 = vpack.c.bf16 %v2922, %v2914
    %v3795 = vpack.c.bf16 %v2931, %v2923
    %v3796 = vpack.c.bf16 %v2932, %v2924
    %v3797 = vpack.c.bf16 %v2933, %v2925
    %v3798 = vpack.c.bf16 %v2934, %v2926
    %v3799 = vpack.c.bf16 %v2935, %v2927
    %v3800 = vpack.c.bf16 %v2936, %v2928
    %v3801 = vpack.c.bf16 %v2937, %v2929
    %v3802 = vpack.c.bf16 %v2938, %v2930
    %v3803 = vpack.c.bf16 %v2947, %v2939
    %v3804 = vpack.c.bf16 %v2948, %v2940
    %v3805 = vpack.c.bf16 %v2949, %v2941
    %v3806 = vpack.c.bf16 %v2950, %v2942
    %v3807 = vpack.c.bf16 %v2951, %v2943
    %v3808 = vpack.c.bf16 %v2952, %v2944
    %v3809 = vpack.c.bf16 %v2953, %v2945
    %v3810 = vpack.c.bf16 %v2954, %v2946
    %v3811 = vpack.c.bf16 %v2963, %v2955
    %v3812 = vpack.c.bf16 %v2964, %v2956
    %v3813 = vpack.c.bf16 %v2965, %v2957
    %v3814 = vpack.c.bf16 %v2966, %v2958
    %v3815 = vpack.c.bf16 %v2967, %v2959
    %v3816 = vpack.c.bf16 %v2968, %v2960
    %v3817 = vpack.c.bf16 %v2969, %v2961
    %v3818 = vpack.c.bf16 %v2970, %v2962
    %v3819 = vpack.c.bf16 %v2979, %v2971
    %v3820 = vpack.c.bf16 %v2980, %v2972
    %v3821 = vpack.c.bf16 %v2981, %v2973
    %v3822 = vpack.c.bf16 %v2982, %v2974
    %v3823 = vpack.c.bf16 %v2983, %v2975
    %v3824 = vpack.c.bf16 %v2984, %v2976
    %v3825 = vpack.c.bf16 %v2985, %v2977
    %v3826 = vpack.c.bf16 %v2986, %v2978
    %v3827 = vpack.c.bf16 %v2995, %v2987
    %v3828 = vpack.c.bf16 %v2996, %v2988
    %v3829 = vpack.c.bf16 %v2997, %v2989
    %v3830 = vpack.c.bf16 %v2998, %v2990
    %v3831 = vpack.c.bf16 %v2999, %v2991
    %v3832 = vpack.c.bf16 %v3000, %v2992
    %v3833 = vpack.c.bf16 %v3001, %v2993
    %v3834 = vpack.c.bf16 %v3002, %v2994
    %v3835 = vpack.c.bf16 %v3011, %v3003
    %v3836 = vpack.c.bf16 %v3012, %v3004
    %v3837 = vpack.c.bf16 %v3013, %v3005
    %v3838 = vpack.c.bf16 %v3014, %v3006
    %v3839 = vpack.c.bf16 %v3015, %v3007
    %v3840 = vpack.c.bf16 %v3016, %v3008
    %v3841 = vpack.c.bf16 %v3017, %v3009
    %v3842 = vpack.c.bf16 %v3018, %v3010
    %v3843 = vpack.c.bf16 %v3027, %v3019
    %v3844 = vpack.c.bf16 %v3028, %v3020
    %v3845 = vpack.c.bf16 %v3029, %v3021
    %v3846 = vpack.c.bf16 %v3030, %v3022
    %v3847 = vpack.c.bf16 %v3031, %v3023
    %v3848 = vpack.c.bf16 %v3032, %v3024
    %v3849 = vpack.c.bf16 %v3033, %v3025
    %v3850 = vpack.c.bf16 %v3034, %v3026
    %v3851 = vpack.c.bf16 %v3043, %v3035
    %v3852 = vpack.c.bf16 %v3044, %v3036
    %v3853 = vpack.c.bf16 %v3045, %v3037
    %v3854 = vpack.c.bf16 %v3046, %v3038
    %v3855 = vpack.c.bf16 %v3047, %v3039
    %v3856 = vpack.c.bf16 %v3048, %v3040
    %v3857 = vpack.c.bf16 %v3049, %v3041
    %v3858 = vpack.c.bf16 %v3050, %v3042
    %v3859 = vpack.c.bf16 %v3059, %v3051
    %v3860 = vpack.c.bf16 %v3060, %v3052
    %v3861 = vpack.c.bf16 %v3061, %v3053
    %v3862 = vpack.c.bf16 %v3062, %v3054
    %v3863 = vpack.c.bf16 %v3063, %v3055
    %v3864 = vpack.c.bf16 %v3064, %v3056
    %v3865 = vpack.c.bf16 %v3065, %v3057
    %v3866 = vpack.c.bf16 %v3066, %v3058
    %v3867 = vpack.c.bf16 %v3075, %v3067
    %v3868 = vpack.c.bf16 %v3076, %v3068
    %v3869 = vpack.c.bf16 %v3077, %v3069
    %v3870 = vpack.c.bf16 %v3078, %v3070
    %v3871 = vpack.c.bf16 %v3079, %v3071
    %v3872 = vpack.c.bf16 %v3080, %v3072
    %v3873 = vpack.c.bf16 %v3081, %v3073
    %v3874 = vpack.c.bf16 %v3082, %v3074
    %v3875 = vpack.c.bf16 %v3091, %v3083
    %v3876 = vpack.c.bf16 %v3092, %v3084
    %v3877 = vpack.c.bf16 %v3093, %v3085
    %v3878 = vpack.c.bf16 %v3094, %v3086
    %v3879 = vpack.c.bf16 %v3095, %v3087
    %v3880 = vpack.c.bf16 %v3096, %v3088
    %v3881 = vpack.c.bf16 %v3097, %v3089
    %v3882 = vpack.c.bf16 %v3098, %v3090
    %v3883 = vpack.c.bf16 %v3107, %v3099
    %v3884 = vpack.c.bf16 %v3108, %v3100
    %v3885 = vpack.c.bf16 %v3109, %v3101
    %v3886 = vpack.c.bf16 %v3110, %v3102
    %v3887 = vpack.c.bf16 %v3111, %v3103
    %v3888 = vpack.c.bf16 %v3112, %v3104
    %v3889 = vpack.c.bf16 %v3113, %v3105
    %v3890 = vpack.c.bf16 %v3114, %v3106
    %v3891 = vpack.c.bf16 %v3123, %v3115
    %v3892 = vpack.c.bf16 %v3124, %v3116
    %v3893 = vpack.c.bf16 %v3125, %v3117
    %v3894 = vpack.c.bf16 %v3126, %v3118
    %v3895 = vpack.c.bf16 %v3127, %v3119
    %v3896 = vpack.c.bf16 %v3128, %v3120
    %v3897 = vpack.c.bf16 %v3129, %v3121
    %v3898 = vpack.c.bf16 %v3130, %v3122
    %v3899 = vpack.c.bf16 %v3139, %v3131
    %v3900 = vpack.c.bf16 %v3140, %v3132
    %v3901 = vpack.c.bf16 %v3141, %v3133
    %v3902 = vpack.c.bf16 %v3142, %v3134
    %v3903 = vpack.c.bf16 %v3143, %v3135
    %v3904 = vpack.c.bf16 %v3144, %v3136
    %v3905 = vpack.c.bf16 %v3145, %v3137
    %v3906 = vpack.c.bf16 %v3146, %v3138
    %v3907 = vpack.c.bf16 %v3155, %v3147
    %v3908 = vpack.c.bf16 %v3156, %v3148
    %v3909 = vpack.c.bf16 %v3157, %v3149
    %v3910 = vpack.c.bf16 %v3158, %v3150
    %v3911 = vpack.c.bf16 %v3159, %v3151
    %v3912 = vpack.c.bf16 %v3160, %v3152
    %v3913 = vpack.c.bf16 %v3161, %v3153
    %v3914 = vpack.c.bf16 %v3162, %v3154
    %v3915 = vpack.c.bf16 %v3171, %v3163
    %v3916 = vpack.c.bf16 %v3172, %v3164
    %v3917 = vpack.c.bf16 %v3173, %v3165
    %v3918 = vpack.c.bf16 %v3174, %v3166
    %v3919 = vpack.c.bf16 %v3175, %v3167
    %v3920 = vpack.c.bf16 %v3176, %v3168
    %v3921 = vpack.c.bf16 %v3177, %v3169
    %v3922 = vpack.c.bf16 %v3178, %v3170
    %v3923 = vpack.c.bf16 %v3187, %v3179
    %v3924 = vpack.c.bf16 %v3188, %v3180
    %v3925 = vpack.c.bf16 %v3189, %v3181
    %v3926 = vpack.c.bf16 %v3190, %v3182
    %v3927 = vpack.c.bf16 %v3191, %v3183
    %v3928 = vpack.c.bf16 %v3192, %v3184
    %v3929 = vpack.c.bf16 %v3193, %v3185
    %v3930 = vpack.c.bf16 %v3194, %v3186
    %v3931 = vpack.c.bf16 %v3203, %v3195
    %v3932 = vpack.c.bf16 %v3204, %v3196
    %v3933 = vpack.c.bf16 %v3205, %v3197
    %v3934 = vpack.c.bf16 %v3206, %v3198
    %v3935 = vpack.c.bf16 %v3207, %v3199
    %v3936 = vpack.c.bf16 %v3208, %v3200
    %v3937 = vpack.c.bf16 %v3209, %v3201
    %v3938 = vpack.c.bf16 %v3210, %v3202
    %v3939 = vpack.c.bf16 %v3219, %v3211
    %v3940 = vpack.c.bf16 %v3220, %v3212
    %v3941 = vpack.c.bf16 %v3221, %v3213
    %v3942 = vpack.c.bf16 %v3222, %v3214
    %v3943 = vpack.c.bf16 %v3223, %v3215
    %v3944 = vpack.c.bf16 %v3224, %v3216
    %v3945 = vpack.c.bf16 %v3225, %v3217
    %v3946 = vpack.c.bf16 %v3226, %v3218
    %v3947 = vpack.c.bf16 %v3235, %v3227
    %v3948 = vpack.c.bf16 %v3236, %v3228
    %v3949 = vpack.c.bf16 %v3237, %v3229
    %v3950 = vpack.c.bf16 %v3238, %v3230
    %v3951 = vpack.c.bf16 %v3239, %v3231
    %v3952 = vpack.c.bf16 %v3240, %v3232
    %v3953 = vpack.c.bf16 %v3241, %v3233
    %v3954 = vpack.c.bf16 %v3242, %v3234
    %v3955 = vpack.c.bf16 %v3251, %v3243
    %v3956 = vpack.c.bf16 %v3252, %v3244
    %v3957 = vpack.c.bf16 %v3253, %v3245
    %v3958 = vpack.c.bf16 %v3254, %v3246
    %v3959 = vpack.c.bf16 %v3255, %v3247
    %v3960 = vpack.c.bf16 %v3256, %v3248
    %v3961 = vpack.c.bf16 %v3257, %v3249
    %v3962 = vpack.c.bf16 %v3258, %v3250
    %v3963 = vpack.c.bf16 %v3267, %v3259
    %v3964 = vpack.c.bf16 %v3268, %v3260
    %v3965 = vpack.c.bf16 %v3269, %v3261
    %v3966 = vpack.c.bf16 %v3270, %v3262
    %v3967 = vpack.c.bf16 %v3271, %v3263
    %v3968 = vpack.c.bf16 %v3272, %v3264
    %v3969 = vpack.c.bf16 %v3273, %v3265
    %v3970 = vpack.c.bf16 %v3274, %v3266
    %v3971 = vpack.c.bf16 %v3283, %v3275
    %v3972 = vpack.c.bf16 %v3284, %v3276
    %v3973 = vpack.c.bf16 %v3285, %v3277
    %v3974 = vpack.c.bf16 %v3286, %v3278
    %v3975 = vpack.c.bf16 %v3287, %v3279
    %v3976 = vpack.c.bf16 %v3288, %v3280
    %v3977 = vpack.c.bf16 %v3289, %v3281
    %v3978 = vpack.c.bf16 %v3290, %v3282
    %v3979 = vpack.c.bf16 %v3299, %v3291
    %v3980 = vpack.c.bf16 %v3300, %v3292
    %v3981 = vpack.c.bf16 %v3301, %v3293
    %v3982 = vpack.c.bf16 %v3302, %v3294
    %v3983 = vpack.c.bf16 %v3303, %v3295
    %v3984 = vpack.c.bf16 %v3304, %v3296
    %v3985 = vpack.c.bf16 %v3305, %v3297
    %v3986 = vpack.c.bf16 %v3306, %v3298
    %v3987 = vpack.c.bf16 %v3315, %v3307
    %v3988 = vpack.c.bf16 %v3316, %v3308
    %v3989 = vpack.c.bf16 %v3317, %v3309
    %v3990 = vpack.c.bf16 %v3318, %v3310
    %v3991 = vpack.c.bf16 %v3319, %v3311
    %v3992 = vpack.c.bf16 %v3320, %v3312
    %v3993 = vpack.c.bf16 %v3321, %v3313
    %v3994 = vpack.c.bf16 %v3322, %v3314
    %v3995 = vpack.c.bf16 %v3331, %v3323
    %v3996 = vpack.c.bf16 %v3332, %v3324
    %v3997 = vpack.c.bf16 %v3333, %v3325
    %v3998 = vpack.c.bf16 %v3334, %v3326
    %v3999 = vpack.c.bf16 %v3335, %v3327
    %v4000 = vpack.c.bf16 %v3336, %v3328
    %v4001 = vpack.c.bf16 %v3337, %v3329
    %v4002 = vpack.c.bf16 %v3338, %v3330
    %v4003 = vpack.c.bf16 %v3347, %v3339
    %v4004 = vpack.c.bf16 %v3348, %v3340
    %v4005 = vpack.c.bf16 %v3349, %v3341
    %v4006 = vpack.c.bf16 %v3350, %v3342
    %v4007 = vpack.c.bf16 %v3351, %v3343
    %v4008 = vpack.c.bf16 %v3352, %v3344
    %v4009 = vpack.c.bf16 %v3353, %v3345
    %v4010 = vpack.c.bf16 %v3354, %v3346
    %v4011 = vpack.c.bf16 %v3363, %v3355
    %v4012 = vpack.c.bf16 %v3364, %v3356
    %v4013 = vpack.c.bf16 %v3365, %v3357
    %v4014 = vpack.c.bf16 %v3366, %v3358
    %v4015 = vpack.c.bf16 %v3367, %v3359
    %v4016 = vpack.c.bf16 %v3368, %v3360
    %v4017 = vpack.c.bf16 %v3369, %v3361
    %v4018 = vpack.c.bf16 %v3370, %v3362
    %v4019 = vpack.c.bf16 %v3379, %v3371
    %v4020 = vpack.c.bf16 %v3380, %v3372
    %v4021 = vpack.c.bf16 %v3381, %v3373
    %v4022 = vpack.c.bf16 %v3382, %v3374
    %v4023 = vpack.c.bf16 %v3383, %v3375
    %v4024 = vpack.c.bf16 %v3384, %v3376
    %v4025 = vpack.c.bf16 %v3385, %v3377
    %v4026 = vpack.c.bf16 %v3386, %v3378
    %v4027 = vpack.c.bf16 %v3395, %v3387
    %v4028 = vpack.c.bf16 %v3396, %v3388
    %v4029 = vpack.c.bf16 %v3397, %v3389
    %v4030 = vpack.c.bf16 %v3398, %v3390
    %v4031 = vpack.c.bf16 %v3399, %v3391
    %v4032 = vpack.c.bf16 %v3400, %v3392
    %v4033 = vpack.c.bf16 %v3401, %v3393
    %v4034 = vpack.c.bf16 %v3402, %v3394
    %v4035 = vpack.c.bf16 %v3411, %v3403
    %v4036 = vpack.c.bf16 %v3412, %v3404
    %v4037 = vpack.c.bf16 %v3413, %v3405
    %v4038 = vpack.c.bf16 %v3414, %v3406
    %v4039 = vpack.c.bf16 %v3415, %v3407
    %v4040 = vpack.c.bf16 %v3416, %v3408
    %v4041 = vpack.c.bf16 %v3417, %v3409
    %v4042 = vpack.c.bf16 %v3418, %v3410
    %v4043 = vpack.c.bf16 %v3427, %v3419
    %v4044 = vpack.c.bf16 %v3428, %v3420
    %v4045 = vpack.c.bf16 %v3429, %v3421
    %v4046 = vpack.c.bf16 %v3430, %v3422
    %v4047 = vpack.c.bf16 %v3431, %v3423
    %v4048 = vpack.c.bf16 %v3432, %v3424
    %v4049 = vpack.c.bf16 %v3433, %v3425
    %v4050 = vpack.c.bf16 %v3434, %v3426
    %v4051 = vpack.c.bf16 %v3443, %v3435
    %v4052 = vpack.c.bf16 %v3444, %v3436
    %v4053 = vpack.c.bf16 %v3445, %v3437
    %v4054 = vpack.c.bf16 %v3446, %v3438
    %v4055 = vpack.c.bf16 %v3447, %v3439
    %v4056 = vpack.c.bf16 %v3448, %v3440
    %v4057 = vpack.c.bf16 %v3449, %v3441
    %v4058 = vpack.c.bf16 %v3450, %v3442
    %v4059 = vpack.c.bf16 %v3459, %v3451
    %v4060 = vpack.c.bf16 %v3460, %v3452
    %v4061 = vpack.c.bf16 %v3461, %v3453
    %v4062 = vpack.c.bf16 %v3462, %v3454
    %v4063 = vpack.c.bf16 %v3463, %v3455
    %v4064 = vpack.c.bf16 %v3464, %v3456
    %v4065 = vpack.c.bf16 %v3465, %v3457
    %v4066 = vpack.c.bf16 %v3466, %v3458
    %v4067 = vpack.c.bf16 %v3475, %v3467
    %v4068 = vpack.c.bf16 %v3476, %v3468
    %v4069 = vpack.c.bf16 %v3477, %v3469
    %v4070 = vpack.c.bf16 %v3478, %v3470
    %v4071 = vpack.c.bf16 %v3479, %v3471
    %v4072 = vpack.c.bf16 %v3480, %v3472
    %v4073 = vpack.c.bf16 %v3481, %v3473
    %v4074 = vpack.c.bf16 %v3482, %v3474
    %v4075 = vpack.c.bf16 %v3491, %v3483
    %v4076 = vpack.c.bf16 %v3492, %v3484
    %v4077 = vpack.c.bf16 %v3493, %v3485
    %v4078 = vpack.c.bf16 %v3494, %v3486
    %v4079 = vpack.c.bf16 %v3495, %v3487
    %v4080 = vpack.c.bf16 %v3496, %v3488
    %v4081 = vpack.c.bf16 %v3497, %v3489
    %v4082 = vpack.c.bf16 %v3498, %v3490
    %v4083 = vpack.c.bf16 %v3507, %v3499
    %v4084 = vpack.c.bf16 %v3508, %v3500
    %v4085 = vpack.c.bf16 %v3509, %v3501
    %v4086 = vpack.c.bf16 %v3510, %v3502
    %v4087 = vpack.c.bf16 %v3511, %v3503
    %v4088 = vpack.c.bf16 %v3512, %v3504
    %v4089 = vpack.c.bf16 %v3513, %v3505
    %v4090 = vpack.c.bf16 %v3514, %v3506
    %v4091 = vpack.c.bf16 %v3523, %v3515
    %v4092 = vpack.c.bf16 %v3524, %v3516
    %v4093 = vpack.c.bf16 %v3525, %v3517
    %v4094 = vpack.c.bf16 %v3526, %v3518
    %v4095 = vpack.c.bf16 %v3527, %v3519
    %v4096 = vpack.c.bf16 %v3528, %v3520
    %v4097 = vpack.c.bf16 %v3529, %v3521
    %v4098 = vpack.c.bf16 %v3530, %v3522
    %v4099 = vpack.c.bf16 %v3539, %v3531
    %v4100 = vpack.c.bf16 %v3540, %v3532
    %v4101 = vpack.c.bf16 %v3541, %v3533
    %v4102 = vpack.c.bf16 %v3542, %v3534
    %v4103 = vpack.c.bf16 %v3543, %v3535
    %v4104 = vpack.c.bf16 %v3544, %v3536
    %v4105 = vpack.c.bf16 %v3545, %v3537
    %v4106 = vpack.c.bf16 %v3546, %v3538
    %v4107 = vpack.c.bf16 %v3555, %v3547
    %v4108 = vpack.c.bf16 %v3556, %v3548
    %v4109 = vpack.c.bf16 %v3557, %v3549
    %v4110 = vpack.c.bf16 %v3558, %v3550
    %v4111 = vpack.c.bf16 %v3559, %v3551
    %v4112 = vpack.c.bf16 %v3560, %v3552
    %v4113 = vpack.c.bf16 %v3561, %v3553
    %v4114 = vpack.c.bf16 %v3562, %v3554
    %v4115 = vpack.c.bf16 %v3571, %v3563
    %v4116 = vpack.c.bf16 %v3572, %v3564
    %v4117 = vpack.c.bf16 %v3573, %v3565
    %v4118 = vpack.c.bf16 %v3574, %v3566
    %v4119 = vpack.c.bf16 %v3575, %v3567
    %v4120 = vpack.c.bf16 %v3576, %v3568
    %v4121 = vpack.c.bf16 %v3577, %v3569
    %v4122 = vpack.c.bf16 %v3578, %v3570
    %v4123 = vpack.c.bf16 %v3587, %v3579
    %v4124 = vpack.c.bf16 %v3588, %v3580
    %v4125 = vpack.c.bf16 %v3589, %v3581
    %v4126 = vpack.c.bf16 %v3590, %v3582
    %v4127 = vpack.c.bf16 %v3591, %v3583
    %v4128 = vpack.c.bf16 %v3592, %v3584
    %v4129 = vpack.c.bf16 %v3593, %v3585
    %v4130 = vpack.c.bf16 %v3594, %v3586
    %v4131 = vpack.c.bf16 %v3603, %v3595
    %v4132 = vpack.c.bf16 %v3604, %v3596
    %v4133 = vpack.c.bf16 %v3605, %v3597
    %v4134 = vpack.c.bf16 %v3606, %v3598
    %v4135 = vpack.c.bf16 %v3607, %v3599
    %v4136 = vpack.c.bf16 %v3608, %v3600
    %v4137 = vpack.c.bf16 %v3609, %v3601
    %v4138 = vpack.c.bf16 %v3610, %v3602
    %v4139 = vpack.c.bf16 %v3619, %v3611
    %v4140 = vpack.c.bf16 %v3620, %v3612
    %v4141 = vpack.c.bf16 %v3621, %v3613
    %v4142 = vpack.c.bf16 %v3622, %v3614
    %v4143 = vpack.c.bf16 %v3623, %v3615
    %v4144 = vpack.c.bf16 %v3624, %v3616
    %v4145 = vpack.c.bf16 %v3625, %v3617
    %v4146 = vpack.c.bf16 %v3626, %v3618
    %v4147 = vpack.c.bf16 %v3635, %v3627
    %v4148 = vpack.c.bf16 %v3636, %v3628
    %v4149 = vpack.c.bf16 %v3637, %v3629
    %v4150 = vpack.c.bf16 %v3638, %v3630
    %v4151 = vpack.c.bf16 %v3639, %v3631
    %v4152 = vpack.c.bf16 %v3640, %v3632
    %v4153 = vpack.c.bf16 %v3641, %v3633
    %v4154 = vpack.c.bf16 %v3642, %v3634
    %v4155 = vld [vmem:[%s5] sm:$0xff]
    %v4157 = vperm.slane %v4155, 0
    %v4158 = vperm.slane %v4155, 1
    %v4159 = vperm.slane %v4155, 2
    %v4160 = vperm.slane %v4155, 3
    %v4161 = vperm.slane %v4155, 4
    %v4162 = vperm.slane %v4155, 5
    %v4163 = vperm.slane %v4155, 6
    %v4164 = vperm.slane %v4155, 7
    %4173 = vmatpush.bf16.msra.mxu0 %v3699
    %4174 = vmatpush.bf16.msra.mxu0 %v3691
    %4175 = vmatpush.bf16.msra.mxu0 %v3683
    %4176 = vmatpush.bf16.msra.mxu0 %v3675
    %4177 = vmatpush.bf16.msra.mxu0 %v3667
    %4178 = vmatpush.bf16.msra.mxu0 %v3659
    %4179 = vmatpush.bf16.msra.mxu0 %v3651
    %4180 = vmatpush.bf16.msra.mxu0 %v3643
    %4181 = vmatmul.bf16.gmra.mxu0 %v289
    %v4182 = vpop.f32.mrf.mxu0
    %v4183 = vadd.f32 %v4157, %v4182
    %v4184 = vpop.f32.mrf.mxu0
    %4185 = vdwg.mxu0
    %4186 = vmatpush.bf16.msra.mxu0 %v3763
    %4187 = vmatpush.bf16.msra.mxu0 %v3755
    %4188 = vmatpush.bf16.msra.mxu0 %v3747
    %4189 = vmatpush.bf16.msra.mxu0 %v3739
    %4190 = vmatpush.bf16.msra.mxu0 %v3731
    %4191 = vmatpush.bf16.msra.mxu0 %v3723
    %4192 = vmatpush.bf16.msra.mxu0 %v3715
    %4193 = vmatpush.bf16.msra.mxu0 %v3707
    %4194 = vmatmul.bf16.gmra.mxu0 %v290
    %v4195 = vpop.f32.mrf.mxu0
    %v4196 = vadd.f32 %v4183, %v4195
    %v4197 = vpop.f32.mrf.mxu0
    %4198 = vdwg.mxu0
    %4199 = vmatpush.bf16.msra.mxu0 %v3827
    %4200 = vmatpush.bf16.msra.mxu0 %v3819
    %4201 = vmatpush.bf16.msra.mxu0 %v3811
    %4202 = vmatpush.bf16.msra.mxu0 %v3803
    %4203 = vmatpush.bf16.msra.mxu0 %v3795
    %4204 = vmatpush.bf16.msra.mxu0 %v3787
    %4205 = vmatpush.bf16.msra.mxu0 %v3779
    %4206 = vmatpush.bf16.msra.mxu0 %v3771
    %4207 = vmatmul.bf16.gmra.mxu0 %v291
    %v4208 = vpop.f32.mrf.mxu0
    %v4209 = vadd.f32 %v4196, %v4208
    %v4210 = vpop.f32.mrf.mxu0
    %4211 = vdwg.mxu0
    %4212 = vmatpush.bf16.msra.mxu0 %v3891
    %4213 = vmatpush.bf16.msra.mxu0 %v3883
    %4214 = vmatpush.bf16.msra.mxu0 %v3875
    %4215 = vmatpush.bf16.msra.mxu0 %v3867
    %4216 = vmatpush.bf16.msra.mxu0 %v3859
    %4217 = vmatpush.bf16.msra.mxu0 %v3851
    %4218 = vmatpush.bf16.msra.mxu0 %v3843
    %4219 = vmatpush.bf16.msra.mxu0 %v3835
    %4220 = vmatmul.bf16.gmra.mxu0 %v292
    %v4221 = vpop.f32.mrf.mxu0
    %v4222 = vadd.f32 %v4209, %v4221
    %v4223 = vpop.f32.mrf.mxu0
    %4224 = vdwg.mxu0
    %4225 = vmatpush.bf16.msra.mxu0 %v3955
    %4226 = vmatpush.bf16.msra.mxu0 %v3947
    %4227 = vmatpush.bf16.msra.mxu0 %v3939
    %4228 = vmatpush.bf16.msra.mxu0 %v3931
    %4229 = vmatpush.bf16.msra.mxu0 %v3923
    %4230 = vmatpush.bf16.msra.mxu0 %v3915
    %4231 = vmatpush.bf16.msra.mxu0 %v3907
    %4232 = vmatpush.bf16.msra.mxu0 %v3899
    %4233 = vmatmul.bf16.gmra.mxu0 %v293
    %v4234 = vpop.f32.mrf.mxu0
    %v4235 = vadd.f32 %v4222, %v4234
    %v4236 = vpop.f32.mrf.mxu0
    %4237 = vdwg.mxu0
    %4238 = vmatpush.bf16.msra.mxu0 %v4019
    %4239 = vmatpush.bf16.msra.mxu0 %v4011
    %4240 = vmatpush.bf16.msra.mxu0 %v4003
    %4241 = vmatpush.bf16.msra.mxu0 %v3995
    %4242 = vmatpush.bf16.msra.mxu0 %v3987
    %4243 = vmatpush.bf16.msra.mxu0 %v3979
    %4244 = vmatpush.bf16.msra.mxu0 %v3971
    %4245 = vmatpush.bf16.msra.mxu0 %v3963
    %4246 = vmatmul.bf16.gmra.mxu0 %v294
    %v4247 = vpop.f32.mrf.mxu0
    %v4248 = vadd.f32 %v4235, %v4247
    %v4249 = vpop.f32.mrf.mxu0
    %4250 = vdwg.mxu0
    %4251 = vmatpush.bf16.msra.mxu0 %v4083
    %4252 = vmatpush.bf16.msra.mxu0 %v4075
    %4253 = vmatpush.bf16.msra.mxu0 %v4067
    %4254 = vmatpush.bf16.msra.mxu0 %v4059
    %4255 = vmatpush.bf16.msra.mxu0 %v4051
    %4256 = vmatpush.bf16.msra.mxu0 %v4043
    %4257 = vmatpush.bf16.msra.mxu0 %v4035
    %4258 = vmatpush.bf16.msra.mxu0 %v4027
    %4259 = vmatmul.bf16.gmra.mxu0 %v295
    %v4260 = vpop.f32.mrf.mxu0
    %v4261 = vadd.f32 %v4248, %v4260
    %v4262 = vpop.f32.mrf.mxu0
    %4263 = vdwg.mxu0
    %4264 = vmatpush.bf16.msra.mxu0 %v4147
    %4265 = vmatpush.bf16.msra.mxu0 %v4139
    %4266 = vmatpush.bf16.msra.mxu0 %v4131
    %4267 = vmatpush.bf16.msra.mxu0 %v4123
    %4268 = vmatpush.bf16.msra.mxu0 %v4115
    %4269 = vmatpush.bf16.msra.mxu0 %v4107
    %4270 = vmatpush.bf16.msra.mxu0 %v4099
    %4271 = vmatpush.bf16.msra.mxu0 %v4091
    %4272 = vmatmul.bf16.gmra.mxu0 %v296
    %v4273 = vpop.f32.mrf.mxu0
    %v4274 = vadd.f32 %v4261, %v4273
    %v4275 = vpop.f32.mrf.mxu0
    %4276 = vdwg.mxu0
    %4277 = vmatpush.bf16.msra.mxu0 %v3700
    %4278 = vmatpush.bf16.msra.mxu0 %v3692
    %4279 = vmatpush.bf16.msra.mxu0 %v3684
    %4280 = vmatpush.bf16.msra.mxu0 %v3676
    %4281 = vmatpush.bf16.msra.mxu0 %v3668
    %4282 = vmatpush.bf16.msra.mxu0 %v3660
    %4283 = vmatpush.bf16.msra.mxu0 %v3652
    %4284 = vmatpush.bf16.msra.mxu0 %v3644
    %4285 = vmatmul.bf16.gmra.mxu0 %v289
    %v4286 = vpop.f32.mrf.mxu0
    %v4287 = vadd.f32 %v4158, %v4286
    %v4288 = vpop.f32.mrf.mxu0
    %4289 = vdwg.mxu0
    %4290 = vmatpush.bf16.msra.mxu0 %v3764
    %4291 = vmatpush.bf16.msra.mxu0 %v3756
    %4292 = vmatpush.bf16.msra.mxu0 %v3748
    %4293 = vmatpush.bf16.msra.mxu0 %v3740
    %4294 = vmatpush.bf16.msra.mxu0 %v3732
    %4295 = vmatpush.bf16.msra.mxu0 %v3724
    %4296 = vmatpush.bf16.msra.mxu0 %v3716
    %4297 = vmatpush.bf16.msra.mxu0 %v3708
    %4298 = vmatmul.bf16.gmra.mxu0 %v290
    %v4299 = vpop.f32.mrf.mxu0
    %v4300 = vadd.f32 %v4287, %v4299
    %v4301 = vpop.f32.mrf.mxu0
    %4302 = vdwg.mxu0
    %4303 = vmatpush.bf16.msra.mxu0 %v3828
    %4304 = vmatpush.bf16.msra.mxu0 %v3820
    %4305 = vmatpush.bf16.msra.mxu0 %v3812
    %4306 = vmatpush.bf16.msra.mxu0 %v3804
    %4307 = vmatpush.bf16.msra.mxu0 %v3796
    %4308 = vmatpush.bf16.msra.mxu0 %v3788
    %4309 = vmatpush.bf16.msra.mxu0 %v3780
    %4310 = vmatpush.bf16.msra.mxu0 %v3772
    %4311 = vmatmul.bf16.gmra.mxu0 %v291
    %v4312 = vpop.f32.mrf.mxu0
    %v4313 = vadd.f32 %v4300, %v4312
    %v4314 = vpop.f32.mrf.mxu0
    %4315 = vdwg.mxu0
    %4316 = vmatpush.bf16.msra.mxu0 %v3892
    %4317 = vmatpush.bf16.msra.mxu0 %v3884
    %4318 = vmatpush.bf16.msra.mxu0 %v3876
    %4319 = vmatpush.bf16.msra.mxu0 %v3868
    %4320 = vmatpush.bf16.msra.mxu0 %v3860
    %4321 = vmatpush.bf16.msra.mxu0 %v3852
    %4322 = vmatpush.bf16.msra.mxu0 %v3844
    %4323 = vmatpush.bf16.msra.mxu0 %v3836
    %4324 = vmatmul.bf16.gmra.mxu0 %v292
    %v4325 = vpop.f32.mrf.mxu0
    %v4326 = vadd.f32 %v4313, %v4325
    %v4327 = vpop.f32.mrf.mxu0
    %4328 = vdwg.mxu0
    %4329 = vmatpush.bf16.msra.mxu0 %v3956
    %4330 = vmatpush.bf16.msra.mxu0 %v3948
    %4331 = vmatpush.bf16.msra.mxu0 %v3940
    %4332 = vmatpush.bf16.msra.mxu0 %v3932
    %4333 = vmatpush.bf16.msra.mxu0 %v3924
    %4334 = vmatpush.bf16.msra.mxu0 %v3916
    %4335 = vmatpush.bf16.msra.mxu0 %v3908
    %4336 = vmatpush.bf16.msra.mxu0 %v3900
    %4337 = vmatmul.bf16.gmra.mxu0 %v293
    %v4338 = vpop.f32.mrf.mxu0
    %v4339 = vadd.f32 %v4326, %v4338
    %v4340 = vpop.f32.mrf.mxu0
    %4341 = vdwg.mxu0
    %4342 = vmatpush.bf16.msra.mxu0 %v4020
    %4343 = vmatpush.bf16.msra.mxu0 %v4012
    %4344 = vmatpush.bf16.msra.mxu0 %v4004
    %4345 = vmatpush.bf16.msra.mxu0 %v3996
    %4346 = vmatpush.bf16.msra.mxu0 %v3988
    %4347 = vmatpush.bf16.msra.mxu0 %v3980
    %4348 = vmatpush.bf16.msra.mxu0 %v3972
    %4349 = vmatpush.bf16.msra.mxu0 %v3964
    %4350 = vmatmul.bf16.gmra.mxu0 %v294
    %v4351 = vpop.f32.mrf.mxu0
    %v4352 = vadd.f32 %v4339, %v4351
    %v4353 = vpop.f32.mrf.mxu0
    %4354 = vdwg.mxu0
    %4355 = vmatpush.bf16.msra.mxu0 %v4084
    %4356 = vmatpush.bf16.msra.mxu0 %v4076
    %4357 = vmatpush.bf16.msra.mxu0 %v4068
    %4358 = vmatpush.bf16.msra.mxu0 %v4060
    %4359 = vmatpush.bf16.msra.mxu0 %v4052
    %4360 = vmatpush.bf16.msra.mxu0 %v4044
    %4361 = vmatpush.bf16.msra.mxu0 %v4036
    %4362 = vmatpush.bf16.msra.mxu0 %v4028
    %4363 = vmatmul.bf16.gmra.mxu0 %v295
    %v4364 = vpop.f32.mrf.mxu0
    %v4365 = vadd.f32 %v4352, %v4364
    %v4366 = vpop.f32.mrf.mxu0
    %4367 = vdwg.mxu0
    %4368 = vmatpush.bf16.msra.mxu0 %v4148
    %4369 = vmatpush.bf16.msra.mxu0 %v4140
    %4370 = vmatpush.bf16.msra.mxu0 %v4132
    %4371 = vmatpush.bf16.msra.mxu0 %v4124
    %4372 = vmatpush.bf16.msra.mxu0 %v4116
    %4373 = vmatpush.bf16.msra.mxu0 %v4108
    %4374 = vmatpush.bf16.msra.mxu0 %v4100
    %4375 = vmatpush.bf16.msra.mxu0 %v4092
    %4376 = vmatmul.bf16.gmra.mxu0 %v296
    %v4377 = vpop.f32.mrf.mxu0
    %v4378 = vadd.f32 %v4365, %v4377
    %v4379 = vpop.f32.mrf.mxu0
    %4380 = vdwg.mxu0
    %4381 = vmatpush.bf16.msra.mxu0 %v3701
    %4382 = vmatpush.bf16.msra.mxu0 %v3693
    %4383 = vmatpush.bf16.msra.mxu0 %v3685
    %4384 = vmatpush.bf16.msra.mxu0 %v3677
    %4385 = vmatpush.bf16.msra.mxu0 %v3669
    %4386 = vmatpush.bf16.msra.mxu0 %v3661
    %4387 = vmatpush.bf16.msra.mxu0 %v3653
    %4388 = vmatpush.bf16.msra.mxu0 %v3645
    %4389 = vmatmul.bf16.gmra.mxu0 %v289
    %v4390 = vpop.f32.mrf.mxu0
    %v4391 = vadd.f32 %v4159, %v4390
    %v4392 = vpop.f32.mrf.mxu0
    %4393 = vdwg.mxu0
    %4394 = vmatpush.bf16.msra.mxu0 %v3765
    %4395 = vmatpush.bf16.msra.mxu0 %v3757
    %4396 = vmatpush.bf16.msra.mxu0 %v3749
    %4397 = vmatpush.bf16.msra.mxu0 %v3741
    %4398 = vmatpush.bf16.msra.mxu0 %v3733
    %4399 = vmatpush.bf16.msra.mxu0 %v3725
    %4400 = vmatpush.bf16.msra.mxu0 %v3717
    %4401 = vmatpush.bf16.msra.mxu0 %v3709
    %4402 = vmatmul.bf16.gmra.mxu0 %v290
    %v4403 = vpop.f32.mrf.mxu0
    %v4404 = vadd.f32 %v4391, %v4403
    %v4405 = vpop.f32.mrf.mxu0
    %4406 = vdwg.mxu0
    %4407 = vmatpush.bf16.msra.mxu0 %v3829
    %4408 = vmatpush.bf16.msra.mxu0 %v3821
    %4409 = vmatpush.bf16.msra.mxu0 %v3813
    %4410 = vmatpush.bf16.msra.mxu0 %v3805
    %4411 = vmatpush.bf16.msra.mxu0 %v3797
    %4412 = vmatpush.bf16.msra.mxu0 %v3789
    %4413 = vmatpush.bf16.msra.mxu0 %v3781
    %4414 = vmatpush.bf16.msra.mxu0 %v3773
    %4415 = vmatmul.bf16.gmra.mxu0 %v291
    %v4416 = vpop.f32.mrf.mxu0
    %v4417 = vadd.f32 %v4404, %v4416
    %v4418 = vpop.f32.mrf.mxu0
    %4419 = vdwg.mxu0
    %4420 = vmatpush.bf16.msra.mxu0 %v3893
    %4421 = vmatpush.bf16.msra.mxu0 %v3885
    %4422 = vmatpush.bf16.msra.mxu0 %v3877
    %4423 = vmatpush.bf16.msra.mxu0 %v3869
    %4424 = vmatpush.bf16.msra.mxu0 %v3861
    %4425 = vmatpush.bf16.msra.mxu0 %v3853
    %4426 = vmatpush.bf16.msra.mxu0 %v3845
    %4427 = vmatpush.bf16.msra.mxu0 %v3837
    %4428 = vmatmul.bf16.gmra.mxu0 %v292
    %v4429 = vpop.f32.mrf.mxu0
    %v4430 = vadd.f32 %v4417, %v4429
    %v4431 = vpop.f32.mrf.mxu0
    %4432 = vdwg.mxu0
    %4433 = vmatpush.bf16.msra.mxu0 %v3957
    %4434 = vmatpush.bf16.msra.mxu0 %v3949
    %4435 = vmatpush.bf16.msra.mxu0 %v3941
    %4436 = vmatpush.bf16.msra.mxu0 %v3933
    %4437 = vmatpush.bf16.msra.mxu0 %v3925
    %4438 = vmatpush.bf16.msra.mxu0 %v3917
    %4439 = vmatpush.bf16.msra.mxu0 %v3909
    %4440 = vmatpush.bf16.msra.mxu0 %v3901
    %4441 = vmatmul.bf16.gmra.mxu0 %v293
    %v4442 = vpop.f32.mrf.mxu0
    %v4443 = vadd.f32 %v4430, %v4442
    %v4444 = vpop.f32.mrf.mxu0
    %4445 = vdwg.mxu0
    %4446 = vmatpush.bf16.msra.mxu0 %v4021
    %4447 = vmatpush.bf16.msra.mxu0 %v4013
    %4448 = vmatpush.bf16.msra.mxu0 %v4005
    %4449 = vmatpush.bf16.msra.mxu0 %v3997
    %4450 = vmatpush.bf16.msra.mxu0 %v3989
    %4451 = vmatpush.bf16.msra.mxu0 %v3981
    %4452 = vmatpush.bf16.msra.mxu0 %v3973
    %4453 = vmatpush.bf16.msra.mxu0 %v3965
    %4454 = vmatmul.bf16.gmra.mxu0 %v294
    %v4455 = vpop.f32.mrf.mxu0
    %v4456 = vadd.f32 %v4443, %v4455
    %v4457 = vpop.f32.mrf.mxu0
    %4458 = vdwg.mxu0
    %4459 = vmatpush.bf16.msra.mxu0 %v4085
    %4460 = vmatpush.bf16.msra.mxu0 %v4077
    %4461 = vmatpush.bf16.msra.mxu0 %v4069
    %4462 = vmatpush.bf16.msra.mxu0 %v4061
    %4463 = vmatpush.bf16.msra.mxu0 %v4053
    %4464 = vmatpush.bf16.msra.mxu0 %v4045
    %4465 = vmatpush.bf16.msra.mxu0 %v4037
    %4466 = vmatpush.bf16.msra.mxu0 %v4029
    %4467 = vmatmul.bf16.gmra.mxu0 %v295
    %v4468 = vpop.f32.mrf.mxu0
    %v4469 = vadd.f32 %v4456, %v4468
    %v4470 = vpop.f32.mrf.mxu0
    %4471 = vdwg.mxu0
    %4472 = vmatpush.bf16.msra.mxu0 %v4149
    %4473 = vmatpush.bf16.msra.mxu0 %v4141
    %4474 = vmatpush.bf16.msra.mxu0 %v4133
    %4475 = vmatpush.bf16.msra.mxu0 %v4125
    %4476 = vmatpush.bf16.msra.mxu0 %v4117
    %4477 = vmatpush.bf16.msra.mxu0 %v4109
    %4478 = vmatpush.bf16.msra.mxu0 %v4101
    %4479 = vmatpush.bf16.msra.mxu0 %v4093
    %4480 = vmatmul.bf16.gmra.mxu0 %v296
    %v4481 = vpop.f32.mrf.mxu0
    %v4482 = vadd.f32 %v4469, %v4481
    %v4483 = vpop.f32.mrf.mxu0
    %4484 = vdwg.mxu0
    %4485 = vmatpush.bf16.msra.mxu0 %v3702
    %4486 = vmatpush.bf16.msra.mxu0 %v3694
    %4487 = vmatpush.bf16.msra.mxu0 %v3686
    %4488 = vmatpush.bf16.msra.mxu0 %v3678
    %4489 = vmatpush.bf16.msra.mxu0 %v3670
    %4490 = vmatpush.bf16.msra.mxu0 %v3662
    %4491 = vmatpush.bf16.msra.mxu0 %v3654
    %4492 = vmatpush.bf16.msra.mxu0 %v3646
    %4493 = vmatmul.bf16.gmra.mxu0 %v289
    %v4494 = vpop.f32.mrf.mxu0
    %v4495 = vadd.f32 %v4160, %v4494
    %v4496 = vpop.f32.mrf.mxu0
    %4497 = vdwg.mxu0
    %4498 = vmatpush.bf16.msra.mxu0 %v3766
    %4499 = vmatpush.bf16.msra.mxu0 %v3758
    %4500 = vmatpush.bf16.msra.mxu0 %v3750
    %4501 = vmatpush.bf16.msra.mxu0 %v3742
    %4502 = vmatpush.bf16.msra.mxu0 %v3734
    %4503 = vmatpush.bf16.msra.mxu0 %v3726
    %4504 = vmatpush.bf16.msra.mxu0 %v3718
    %4505 = vmatpush.bf16.msra.mxu0 %v3710
    %4506 = vmatmul.bf16.gmra.mxu0 %v290
    %v4507 = vpop.f32.mrf.mxu0
    %v4508 = vadd.f32 %v4495, %v4507
    %v4509 = vpop.f32.mrf.mxu0
    %4510 = vdwg.mxu0
    %4511 = vmatpush.bf16.msra.mxu0 %v3830
    %4512 = vmatpush.bf16.msra.mxu0 %v3822
    %4513 = vmatpush.bf16.msra.mxu0 %v3814
    %4514 = vmatpush.bf16.msra.mxu0 %v3806
    %4515 = vmatpush.bf16.msra.mxu0 %v3798
    %4516 = vmatpush.bf16.msra.mxu0 %v3790
    %4517 = vmatpush.bf16.msra.mxu0 %v3782
    %4518 = vmatpush.bf16.msra.mxu0 %v3774
    %4519 = vmatmul.bf16.gmra.mxu0 %v291
    %v4520 = vpop.f32.mrf.mxu0
    %v4521 = vadd.f32 %v4508, %v4520
    %v4522 = vpop.f32.mrf.mxu0
    %4523 = vdwg.mxu0
    %4524 = vmatpush.bf16.msra.mxu0 %v3894
    %4525 = vmatpush.bf16.msra.mxu0 %v3886
    %4526 = vmatpush.bf16.msra.mxu0 %v3878
    %4527 = vmatpush.bf16.msra.mxu0 %v3870
    %4528 = vmatpush.bf16.msra.mxu0 %v3862
    %4529 = vmatpush.bf16.msra.mxu0 %v3854
    %4530 = vmatpush.bf16.msra.mxu0 %v3846
    %4531 = vmatpush.bf16.msra.mxu0 %v3838
    %4532 = vmatmul.bf16.gmra.mxu0 %v292
    %v4533 = vpop.f32.mrf.mxu0
    %v4534 = vadd.f32 %v4521, %v4533
    %v4535 = vpop.f32.mrf.mxu0
    %4536 = vdwg.mxu0
    %4537 = vmatpush.bf16.msra.mxu0 %v3958
    %4538 = vmatpush.bf16.msra.mxu0 %v3950
    %4539 = vmatpush.bf16.msra.mxu0 %v3942
    %4540 = vmatpush.bf16.msra.mxu0 %v3934
    %4541 = vmatpush.bf16.msra.mxu0 %v3926
    %4542 = vmatpush.bf16.msra.mxu0 %v3918
    %4543 = vmatpush.bf16.msra.mxu0 %v3910
    %4544 = vmatpush.bf16.msra.mxu0 %v3902
    %4545 = vmatmul.bf16.gmra.mxu0 %v293
    %v4546 = vpop.f32.mrf.mxu0
    %v4547 = vadd.f32 %v4534, %v4546
    %v4548 = vpop.f32.mrf.mxu0
    %4549 = vdwg.mxu0
    %4550 = vmatpush.bf16.msra.mxu0 %v4022
    %4551 = vmatpush.bf16.msra.mxu0 %v4014
    %4552 = vmatpush.bf16.msra.mxu0 %v4006
    %4553 = vmatpush.bf16.msra.mxu0 %v3998
    %4554 = vmatpush.bf16.msra.mxu0 %v3990
    %4555 = vmatpush.bf16.msra.mxu0 %v3982
    %4556 = vmatpush.bf16.msra.mxu0 %v3974
    %4557 = vmatpush.bf16.msra.mxu0 %v3966
    %4558 = vmatmul.bf16.gmra.mxu0 %v294
    %v4559 = vpop.f32.mrf.mxu0
    %v4560 = vadd.f32 %v4547, %v4559
    %v4561 = vpop.f32.mrf.mxu0
    %4562 = vdwg.mxu0
    %4563 = vmatpush.bf16.msra.mxu0 %v4086
    %4564 = vmatpush.bf16.msra.mxu0 %v4078
    %4565 = vmatpush.bf16.msra.mxu0 %v4070
    %4566 = vmatpush.bf16.msra.mxu0 %v4062
    %4567 = vmatpush.bf16.msra.mxu0 %v4054
    %4568 = vmatpush.bf16.msra.mxu0 %v4046
    %4569 = vmatpush.bf16.msra.mxu0 %v4038
    %4570 = vmatpush.bf16.msra.mxu0 %v4030
    %4571 = vmatmul.bf16.gmra.mxu0 %v295
    %v4572 = vpop.f32.mrf.mxu0
    %v4573 = vadd.f32 %v4560, %v4572
    %v4574 = vpop.f32.mrf.mxu0
    %4575 = vdwg.mxu0
    %4576 = vmatpush.bf16.msra.mxu0 %v4150
    %4577 = vmatpush.bf16.msra.mxu0 %v4142
    %4578 = vmatpush.bf16.msra.mxu0 %v4134
    %4579 = vmatpush.bf16.msra.mxu0 %v4126
    %4580 = vmatpush.bf16.msra.mxu0 %v4118
    %4581 = vmatpush.bf16.msra.mxu0 %v4110
    %4582 = vmatpush.bf16.msra.mxu0 %v4102
    %4583 = vmatpush.bf16.msra.mxu0 %v4094
    %4584 = vmatmul.bf16.gmra.mxu0 %v296
    %v4585 = vpop.f32.mrf.mxu0
    %v4586 = vadd.f32 %v4573, %v4585
    %v4587 = vpop.f32.mrf.mxu0
    %4588 = vdwg.mxu0
    %4589 = vmatpush.bf16.msra.mxu0 %v3703
    %4590 = vmatpush.bf16.msra.mxu0 %v3695
    %4591 = vmatpush.bf16.msra.mxu0 %v3687
    %4592 = vmatpush.bf16.msra.mxu0 %v3679
    %4593 = vmatpush.bf16.msra.mxu0 %v3671
    %4594 = vmatpush.bf16.msra.mxu0 %v3663
    %4595 = vmatpush.bf16.msra.mxu0 %v3655
    %4596 = vmatpush.bf16.msra.mxu0 %v3647
    %4597 = vmatmul.bf16.gmra.mxu0 %v289
    %v4598 = vpop.f32.mrf.mxu0
    %v4599 = vadd.f32 %v4161, %v4598
    %v4600 = vpop.f32.mrf.mxu0
    %4601 = vdwg.mxu0
    %4602 = vmatpush.bf16.msra.mxu0 %v3767
    %4603 = vmatpush.bf16.msra.mxu0 %v3759
    %4604 = vmatpush.bf16.msra.mxu0 %v3751
    %4605 = vmatpush.bf16.msra.mxu0 %v3743
    %4606 = vmatpush.bf16.msra.mxu0 %v3735
    %4607 = vmatpush.bf16.msra.mxu0 %v3727
    %4608 = vmatpush.bf16.msra.mxu0 %v3719
    %4609 = vmatpush.bf16.msra.mxu0 %v3711
    %4610 = vmatmul.bf16.gmra.mxu0 %v290
    %v4611 = vpop.f32.mrf.mxu0
    %v4612 = vadd.f32 %v4599, %v4611
    %v4613 = vpop.f32.mrf.mxu0
    %4614 = vdwg.mxu0
    %4615 = vmatpush.bf16.msra.mxu0 %v3831
    %4616 = vmatpush.bf16.msra.mxu0 %v3823
    %4617 = vmatpush.bf16.msra.mxu0 %v3815
    %4618 = vmatpush.bf16.msra.mxu0 %v3807
    %4619 = vmatpush.bf16.msra.mxu0 %v3799
    %4620 = vmatpush.bf16.msra.mxu0 %v3791
    %4621 = vmatpush.bf16.msra.mxu0 %v3783
    %4622 = vmatpush.bf16.msra.mxu0 %v3775
    %4623 = vmatmul.bf16.gmra.mxu0 %v291
    %v4624 = vpop.f32.mrf.mxu0
    %v4625 = vadd.f32 %v4612, %v4624
    %v4626 = vpop.f32.mrf.mxu0
    %4627 = vdwg.mxu0
    %4628 = vmatpush.bf16.msra.mxu0 %v3895
    %4629 = vmatpush.bf16.msra.mxu0 %v3887
    %4630 = vmatpush.bf16.msra.mxu0 %v3879
    %4631 = vmatpush.bf16.msra.mxu0 %v3871
    %4632 = vmatpush.bf16.msra.mxu0 %v3863
    %4633 = vmatpush.bf16.msra.mxu0 %v3855
    %4634 = vmatpush.bf16.msra.mxu0 %v3847
    %4635 = vmatpush.bf16.msra.mxu0 %v3839
    %4636 = vmatmul.bf16.gmra.mxu0 %v292
    %v4637 = vpop.f32.mrf.mxu0
    %v4638 = vadd.f32 %v4625, %v4637
    %v4639 = vpop.f32.mrf.mxu0
    %4640 = vdwg.mxu0
    %4641 = vmatpush.bf16.msra.mxu0 %v3959
    %4642 = vmatpush.bf16.msra.mxu0 %v3951
    %4643 = vmatpush.bf16.msra.mxu0 %v3943
    %4644 = vmatpush.bf16.msra.mxu0 %v3935
    %4645 = vmatpush.bf16.msra.mxu0 %v3927
    %4646 = vmatpush.bf16.msra.mxu0 %v3919
    %4647 = vmatpush.bf16.msra.mxu0 %v3911
    %4648 = vmatpush.bf16.msra.mxu0 %v3903
    %4649 = vmatmul.bf16.gmra.mxu0 %v293
    %v4650 = vpop.f32.mrf.mxu0
    %v4651 = vadd.f32 %v4638, %v4650
    %v4652 = vpop.f32.mrf.mxu0
    %4653 = vdwg.mxu0
    %4654 = vmatpush.bf16.msra.mxu0 %v4023
    %4655 = vmatpush.bf16.msra.mxu0 %v4015
    %4656 = vmatpush.bf16.msra.mxu0 %v4007
    %4657 = vmatpush.bf16.msra.mxu0 %v3999
    %4658 = vmatpush.bf16.msra.mxu0 %v3991
    %4659 = vmatpush.bf16.msra.mxu0 %v3983
    %4660 = vmatpush.bf16.msra.mxu0 %v3975
    %4661 = vmatpush.bf16.msra.mxu0 %v3967
    %4662 = vmatmul.bf16.gmra.mxu0 %v294
    %v4663 = vpop.f32.mrf.mxu0
    %v4664 = vadd.f32 %v4651, %v4663
    %v4665 = vpop.f32.mrf.mxu0
    %4666 = vdwg.mxu0
    %4667 = vmatpush.bf16.msra.mxu0 %v4087
    %4668 = vmatpush.bf16.msra.mxu0 %v4079
    %4669 = vmatpush.bf16.msra.mxu0 %v4071
    %4670 = vmatpush.bf16.msra.mxu0 %v4063
    %4671 = vmatpush.bf16.msra.mxu0 %v4055
    %4672 = vmatpush.bf16.msra.mxu0 %v4047
    %4673 = vmatpush.bf16.msra.mxu0 %v4039
    %4674 = vmatpush.bf16.msra.mxu0 %v4031
    %4675 = vmatmul.bf16.gmra.mxu0 %v295
    %v4676 = vpop.f32.mrf.mxu0
    %v4677 = vadd.f32 %v4664, %v4676
    %v4678 = vpop.f32.mrf.mxu0
    %4679 = vdwg.mxu0
    %4680 = vmatpush.bf16.msra.mxu0 %v4151
    %4681 = vmatpush.bf16.msra.mxu0 %v4143
    %4682 = vmatpush.bf16.msra.mxu0 %v4135
    %4683 = vmatpush.bf16.msra.mxu0 %v4127
    %4684 = vmatpush.bf16.msra.mxu0 %v4119
    %4685 = vmatpush.bf16.msra.mxu0 %v4111
    %4686 = vmatpush.bf16.msra.mxu0 %v4103
    %4687 = vmatpush.bf16.msra.mxu0 %v4095
    %4688 = vmatmul.bf16.gmra.mxu0 %v296
    %v4689 = vpop.f32.mrf.mxu0
    %v4690 = vadd.f32 %v4677, %v4689
    %v4691 = vpop.f32.mrf.mxu0
    %4692 = vdwg.mxu0
    %4693 = vmatpush.bf16.msra.mxu0 %v3704
    %4694 = vmatpush.bf16.msra.mxu0 %v3696
    %4695 = vmatpush.bf16.msra.mxu0 %v3688
    %4696 = vmatpush.bf16.msra.mxu0 %v3680
    %4697 = vmatpush.bf16.msra.mxu0 %v3672
    %4698 = vmatpush.bf16.msra.mxu0 %v3664
    %4699 = vmatpush.bf16.msra.mxu0 %v3656
    %4700 = vmatpush.bf16.msra.mxu0 %v3648
    %4701 = vmatmul.bf16.gmra.mxu0 %v289
    %v4702 = vpop.f32.mrf.mxu0
    %v4703 = vadd.f32 %v4162, %v4702
    %v4704 = vpop.f32.mrf.mxu0
    %4705 = vdwg.mxu0
    %4706 = vmatpush.bf16.msra.mxu0 %v3768
    %4707 = vmatpush.bf16.msra.mxu0 %v3760
    %4708 = vmatpush.bf16.msra.mxu0 %v3752
    %4709 = vmatpush.bf16.msra.mxu0 %v3744
    %4710 = vmatpush.bf16.msra.mxu0 %v3736
    %4711 = vmatpush.bf16.msra.mxu0 %v3728
    %4712 = vmatpush.bf16.msra.mxu0 %v3720
    %4713 = vmatpush.bf16.msra.mxu0 %v3712
    %4714 = vmatmul.bf16.gmra.mxu0 %v290
    %v4715 = vpop.f32.mrf.mxu0
    %v4716 = vadd.f32 %v4703, %v4715
    %v4717 = vpop.f32.mrf.mxu0
    %4718 = vdwg.mxu0
    %4719 = vmatpush.bf16.msra.mxu0 %v3832
    %4720 = vmatpush.bf16.msra.mxu0 %v3824
    %4721 = vmatpush.bf16.msra.mxu0 %v3816
    %4722 = vmatpush.bf16.msra.mxu0 %v3808
    %4723 = vmatpush.bf16.msra.mxu0 %v3800
    %4724 = vmatpush.bf16.msra.mxu0 %v3792
    %4725 = vmatpush.bf16.msra.mxu0 %v3784
    %4726 = vmatpush.bf16.msra.mxu0 %v3776
    %4727 = vmatmul.bf16.gmra.mxu0 %v291
    %v4728 = vpop.f32.mrf.mxu0
    %v4729 = vadd.f32 %v4716, %v4728
    %v4730 = vpop.f32.mrf.mxu0
    %4731 = vdwg.mxu0
    %4732 = vmatpush.bf16.msra.mxu0 %v3896
    %4733 = vmatpush.bf16.msra.mxu0 %v3888
    %4734 = vmatpush.bf16.msra.mxu0 %v3880
    %4735 = vmatpush.bf16.msra.mxu0 %v3872
    %4736 = vmatpush.bf16.msra.mxu0 %v3864
    %4737 = vmatpush.bf16.msra.mxu0 %v3856
    %4738 = vmatpush.bf16.msra.mxu0 %v3848
    %4739 = vmatpush.bf16.msra.mxu0 %v3840
    %4740 = vmatmul.bf16.gmra.mxu0 %v292
    %v4741 = vpop.f32.mrf.mxu0
    %v4742 = vadd.f32 %v4729, %v4741
    %v4743 = vpop.f32.mrf.mxu0
    %4744 = vdwg.mxu0
    %4745 = vmatpush.bf16.msra.mxu0 %v3960
    %4746 = vmatpush.bf16.msra.mxu0 %v3952
    %4747 = vmatpush.bf16.msra.mxu0 %v3944
    %4748 = vmatpush.bf16.msra.mxu0 %v3936
    %4749 = vmatpush.bf16.msra.mxu0 %v3928
    %4750 = vmatpush.bf16.msra.mxu0 %v3920
    %4751 = vmatpush.bf16.msra.mxu0 %v3912
    %4752 = vmatpush.bf16.msra.mxu0 %v3904
    %4753 = vmatmul.bf16.gmra.mxu0 %v293
    %v4754 = vpop.f32.mrf.mxu0
    %v4755 = vadd.f32 %v4742, %v4754
    %v4756 = vpop.f32.mrf.mxu0
    %4757 = vdwg.mxu0
    %4758 = vmatpush.bf16.msra.mxu0 %v4024
    %4759 = vmatpush.bf16.msra.mxu0 %v4016
    %4760 = vmatpush.bf16.msra.mxu0 %v4008
    %4761 = vmatpush.bf16.msra.mxu0 %v4000
    %4762 = vmatpush.bf16.msra.mxu0 %v3992
    %4763 = vmatpush.bf16.msra.mxu0 %v3984
    %4764 = vmatpush.bf16.msra.mxu0 %v3976
    %4765 = vmatpush.bf16.msra.mxu0 %v3968
    %4766 = vmatmul.bf16.gmra.mxu0 %v294
    %v4767 = vpop.f32.mrf.mxu0
    %v4768 = vadd.f32 %v4755, %v4767
    %v4769 = vpop.f32.mrf.mxu0
    %4770 = vdwg.mxu0
    %4771 = vmatpush.bf16.msra.mxu0 %v4088
    %4772 = vmatpush.bf16.msra.mxu0 %v4080
    %4773 = vmatpush.bf16.msra.mxu0 %v4072
    %4774 = vmatpush.bf16.msra.mxu0 %v4064
    %4775 = vmatpush.bf16.msra.mxu0 %v4056
    %4776 = vmatpush.bf16.msra.mxu0 %v4048
    %4777 = vmatpush.bf16.msra.mxu0 %v4040
    %4778 = vmatpush.bf16.msra.mxu0 %v4032
    %4779 = vmatmul.bf16.gmra.mxu0 %v295
    %v4780 = vpop.f32.mrf.mxu0
    %v4781 = vadd.f32 %v4768, %v4780
    %v4782 = vpop.f32.mrf.mxu0
    %4783 = vdwg.mxu0
    %4784 = vmatpush.bf16.msra.mxu0 %v4152
    %4785 = vmatpush.bf16.msra.mxu0 %v4144
    %4786 = vmatpush.bf16.msra.mxu0 %v4136
    %4787 = vmatpush.bf16.msra.mxu0 %v4128
    %4788 = vmatpush.bf16.msra.mxu0 %v4120
    %4789 = vmatpush.bf16.msra.mxu0 %v4112
    %4790 = vmatpush.bf16.msra.mxu0 %v4104
    %4791 = vmatpush.bf16.msra.mxu0 %v4096
    %4792 = vmatmul.bf16.gmra.mxu0 %v296
    %v4793 = vpop.f32.mrf.mxu0
    %v4794 = vadd.f32 %v4781, %v4793
    %v4795 = vpop.f32.mrf.mxu0
    %4796 = vdwg.mxu0
    %4797 = vmatpush.bf16.msra.mxu0 %v3705
    %4798 = vmatpush.bf16.msra.mxu0 %v3697
    %4799 = vmatpush.bf16.msra.mxu0 %v3689
    %4800 = vmatpush.bf16.msra.mxu0 %v3681
    %4801 = vmatpush.bf16.msra.mxu0 %v3673
    %4802 = vmatpush.bf16.msra.mxu0 %v3665
    %4803 = vmatpush.bf16.msra.mxu0 %v3657
    %4804 = vmatpush.bf16.msra.mxu0 %v3649
    %4805 = vmatmul.bf16.gmra.mxu0 %v289
    %v4806 = vpop.f32.mrf.mxu0
    %v4807 = vadd.f32 %v4163, %v4806
    %v4808 = vpop.f32.mrf.mxu0
    %4809 = vdwg.mxu0
    %4810 = vmatpush.bf16.msra.mxu0 %v3769
    %4811 = vmatpush.bf16.msra.mxu0 %v3761
    %4812 = vmatpush.bf16.msra.mxu0 %v3753
    %4813 = vmatpush.bf16.msra.mxu0 %v3745
    %4814 = vmatpush.bf16.msra.mxu0 %v3737
    %4815 = vmatpush.bf16.msra.mxu0 %v3729
    %4816 = vmatpush.bf16.msra.mxu0 %v3721
    %4817 = vmatpush.bf16.msra.mxu0 %v3713
    %4818 = vmatmul.bf16.gmra.mxu0 %v290
    %v4819 = vpop.f32.mrf.mxu0
    %v4820 = vadd.f32 %v4807, %v4819
    %v4821 = vpop.f32.mrf.mxu0
    %4822 = vdwg.mxu0
    %4823 = vmatpush.bf16.msra.mxu0 %v3833
    %4824 = vmatpush.bf16.msra.mxu0 %v3825
    %4825 = vmatpush.bf16.msra.mxu0 %v3817
    %4826 = vmatpush.bf16.msra.mxu0 %v3809
    %4827 = vmatpush.bf16.msra.mxu0 %v3801
    %4828 = vmatpush.bf16.msra.mxu0 %v3793
    %4829 = vmatpush.bf16.msra.mxu0 %v3785
    %4830 = vmatpush.bf16.msra.mxu0 %v3777
    %4831 = vmatmul.bf16.gmra.mxu0 %v291
    %v4832 = vpop.f32.mrf.mxu0
    %v4833 = vadd.f32 %v4820, %v4832
    %v4834 = vpop.f32.mrf.mxu0
    %4835 = vdwg.mxu0
    %4836 = vmatpush.bf16.msra.mxu0 %v3897
    %4837 = vmatpush.bf16.msra.mxu0 %v3889
    %4838 = vmatpush.bf16.msra.mxu0 %v3881
    %4839 = vmatpush.bf16.msra.mxu0 %v3873
    %4840 = vmatpush.bf16.msra.mxu0 %v3865
    %4841 = vmatpush.bf16.msra.mxu0 %v3857
    %4842 = vmatpush.bf16.msra.mxu0 %v3849
    %4843 = vmatpush.bf16.msra.mxu0 %v3841
    %4844 = vmatmul.bf16.gmra.mxu0 %v292
    %v4845 = vpop.f32.mrf.mxu0
    %v4846 = vadd.f32 %v4833, %v4845
    %v4847 = vpop.f32.mrf.mxu0
    %4848 = vdwg.mxu0
    %4849 = vmatpush.bf16.msra.mxu0 %v3961
    %4850 = vmatpush.bf16.msra.mxu0 %v3953
    %4851 = vmatpush.bf16.msra.mxu0 %v3945
    %4852 = vmatpush.bf16.msra.mxu0 %v3937
    %4853 = vmatpush.bf16.msra.mxu0 %v3929
    %4854 = vmatpush.bf16.msra.mxu0 %v3921
    %4855 = vmatpush.bf16.msra.mxu0 %v3913
    %4856 = vmatpush.bf16.msra.mxu0 %v3905
    %4857 = vmatmul.bf16.gmra.mxu0 %v293
    %v4858 = vpop.f32.mrf.mxu0
    %v4859 = vadd.f32 %v4846, %v4858
    %v4860 = vpop.f32.mrf.mxu0
    %4861 = vdwg.mxu0
    %4862 = vmatpush.bf16.msra.mxu0 %v4025
    %4863 = vmatpush.bf16.msra.mxu0 %v4017
    %4864 = vmatpush.bf16.msra.mxu0 %v4009
    %4865 = vmatpush.bf16.msra.mxu0 %v4001
    %4866 = vmatpush.bf16.msra.mxu0 %v3993
    %4867 = vmatpush.bf16.msra.mxu0 %v3985
    %4868 = vmatpush.bf16.msra.mxu0 %v3977
    %4869 = vmatpush.bf16.msra.mxu0 %v3969
    %4870 = vmatmul.bf16.gmra.mxu0 %v294
    %v4871 = vpop.f32.mrf.mxu0
    %v4872 = vadd.f32 %v4859, %v4871
    %v4873 = vpop.f32.mrf.mxu0
    %4874 = vdwg.mxu0
    %4875 = vmatpush.bf16.msra.mxu0 %v4089
    %4876 = vmatpush.bf16.msra.mxu0 %v4081
    %4877 = vmatpush.bf16.msra.mxu0 %v4073
    %4878 = vmatpush.bf16.msra.mxu0 %v4065
    %4879 = vmatpush.bf16.msra.mxu0 %v4057
    %4880 = vmatpush.bf16.msra.mxu0 %v4049
    %4881 = vmatpush.bf16.msra.mxu0 %v4041
    %4882 = vmatpush.bf16.msra.mxu0 %v4033
    %4883 = vmatmul.bf16.gmra.mxu0 %v295
    %v4884 = vpop.f32.mrf.mxu0
    %v4885 = vadd.f32 %v4872, %v4884
    %v4886 = vpop.f32.mrf.mxu0
    %4887 = vdwg.mxu0
    %4888 = vmatpush.bf16.msra.mxu0 %v4153
    %4889 = vmatpush.bf16.msra.mxu0 %v4145
    %4890 = vmatpush.bf16.msra.mxu0 %v4137
    %4891 = vmatpush.bf16.msra.mxu0 %v4129
    %4892 = vmatpush.bf16.msra.mxu0 %v4121
    %4893 = vmatpush.bf16.msra.mxu0 %v4113
    %4894 = vmatpush.bf16.msra.mxu0 %v4105
    %4895 = vmatpush.bf16.msra.mxu0 %v4097
    %4896 = vmatmul.bf16.gmra.mxu0 %v296
    %v4897 = vpop.f32.mrf.mxu0
    %v4898 = vadd.f32 %v4885, %v4897
    %v4899 = vpop.f32.mrf.mxu0
    %4900 = vdwg.mxu0
    %4901 = vmatpush.bf16.msra.mxu0 %v3706
    %4902 = vmatpush.bf16.msra.mxu0 %v3698
    %4903 = vmatpush.bf16.msra.mxu0 %v3690
    %4904 = vmatpush.bf16.msra.mxu0 %v3682
    %4905 = vmatpush.bf16.msra.mxu0 %v3674
    %4906 = vmatpush.bf16.msra.mxu0 %v3666
    %4907 = vmatpush.bf16.msra.mxu0 %v3658
    %4908 = vmatpush.bf16.msra.mxu0 %v3650
    %4909 = vmatmul.bf16.gmra.mxu0 %v289
    %v4910 = vpop.f32.mrf.mxu0
    %v4911 = vadd.f32 %v4164, %v4910
    %v4912 = vpop.f32.mrf.mxu0
    %4913 = vdwg.mxu0
    %4914 = vmatpush.bf16.msra.mxu0 %v3770
    %4915 = vmatpush.bf16.msra.mxu0 %v3762
    %4916 = vmatpush.bf16.msra.mxu0 %v3754
    %4917 = vmatpush.bf16.msra.mxu0 %v3746
    %4918 = vmatpush.bf16.msra.mxu0 %v3738
    %4919 = vmatpush.bf16.msra.mxu0 %v3730
    %4920 = vmatpush.bf16.msra.mxu0 %v3722
    %4921 = vmatpush.bf16.msra.mxu0 %v3714
    %4922 = vmatmul.bf16.gmra.mxu0 %v290
    %v4923 = vpop.f32.mrf.mxu0
    %v4924 = vadd.f32 %v4911, %v4923
    %v4925 = vpop.f32.mrf.mxu0
    %4926 = vdwg.mxu0
    %4927 = vmatpush.bf16.msra.mxu0 %v3834
    %4928 = vmatpush.bf16.msra.mxu0 %v3826
    %4929 = vmatpush.bf16.msra.mxu0 %v3818
    %4930 = vmatpush.bf16.msra.mxu0 %v3810
    %4931 = vmatpush.bf16.msra.mxu0 %v3802
    %4932 = vmatpush.bf16.msra.mxu0 %v3794
    %4933 = vmatpush.bf16.msra.mxu0 %v3786
    %4934 = vmatpush.bf16.msra.mxu0 %v3778
    %4935 = vmatmul.bf16.gmra.mxu0 %v291
    %v4936 = vpop.f32.mrf.mxu0
    %v4937 = vadd.f32 %v4924, %v4936
    %v4938 = vpop.f32.mrf.mxu0
    %4939 = vdwg.mxu0
    %4940 = vmatpush.bf16.msra.mxu0 %v3898
    %4941 = vmatpush.bf16.msra.mxu0 %v3890
    %4942 = vmatpush.bf16.msra.mxu0 %v3882
    %4943 = vmatpush.bf16.msra.mxu0 %v3874
    %4944 = vmatpush.bf16.msra.mxu0 %v3866
    %4945 = vmatpush.bf16.msra.mxu0 %v3858
    %4946 = vmatpush.bf16.msra.mxu0 %v3850
    %4947 = vmatpush.bf16.msra.mxu0 %v3842
    %4948 = vmatmul.bf16.gmra.mxu0 %v292
    %v4949 = vpop.f32.mrf.mxu0
    %v4950 = vadd.f32 %v4937, %v4949
    %v4951 = vpop.f32.mrf.mxu0
    %4952 = vdwg.mxu0
    %4953 = vmatpush.bf16.msra.mxu0 %v3962
    %4954 = vmatpush.bf16.msra.mxu0 %v3954
    %4955 = vmatpush.bf16.msra.mxu0 %v3946
    %4956 = vmatpush.bf16.msra.mxu0 %v3938
    %4957 = vmatpush.bf16.msra.mxu0 %v3930
    %4958 = vmatpush.bf16.msra.mxu0 %v3922
    %4959 = vmatpush.bf16.msra.mxu0 %v3914
    %4960 = vmatpush.bf16.msra.mxu0 %v3906
    %4961 = vmatmul.bf16.gmra.mxu0 %v293
    %v4962 = vpop.f32.mrf.mxu0
    %v4963 = vadd.f32 %v4950, %v4962
    %v4964 = vpop.f32.mrf.mxu0
    %4965 = vdwg.mxu0
    %4966 = vmatpush.bf16.msra.mxu0 %v4026
    %4967 = vmatpush.bf16.msra.mxu0 %v4018
    %4968 = vmatpush.bf16.msra.mxu0 %v4010
    %4969 = vmatpush.bf16.msra.mxu0 %v4002
    %4970 = vmatpush.bf16.msra.mxu0 %v3994
    %4971 = vmatpush.bf16.msra.mxu0 %v3986
    %4972 = vmatpush.bf16.msra.mxu0 %v3978
    %4973 = vmatpush.bf16.msra.mxu0 %v3970
    %4974 = vmatmul.bf16.gmra.mxu0 %v294
    %v4975 = vpop.f32.mrf.mxu0
    %v4976 = vadd.f32 %v4963, %v4975
    %v4977 = vpop.f32.mrf.mxu0
    %4978 = vdwg.mxu0
    %4979 = vmatpush.bf16.msra.mxu0 %v4090
    %4980 = vmatpush.bf16.msra.mxu0 %v4082
    %4981 = vmatpush.bf16.msra.mxu0 %v4074
    %4982 = vmatpush.bf16.msra.mxu0 %v4066
    %4983 = vmatpush.bf16.msra.mxu0 %v4058
    %4984 = vmatpush.bf16.msra.mxu0 %v4050
    %4985 = vmatpush.bf16.msra.mxu0 %v4042
    %4986 = vmatpush.bf16.msra.mxu0 %v4034
    %4987 = vmatmul.bf16.gmra.mxu0 %v295
    %v4988 = vpop.f32.mrf.mxu0
    %v4989 = vadd.f32 %v4976, %v4988
    %v4990 = vpop.f32.mrf.mxu0
    %4991 = vdwg.mxu0
    %4992 = vmatpush.bf16.msra.mxu0 %v4154
    %4993 = vmatpush.bf16.msra.mxu0 %v4146
    %4994 = vmatpush.bf16.msra.mxu0 %v4138
    %4995 = vmatpush.bf16.msra.mxu0 %v4130
    %4996 = vmatpush.bf16.msra.mxu0 %v4122
    %4997 = vmatpush.bf16.msra.mxu0 %v4114
    %4998 = vmatpush.bf16.msra.mxu0 %v4106
    %4999 = vmatpush.bf16.msra.mxu0 %v4098
    %5000 = vmatmul.bf16.gmra.mxu0 %v296
    %v5001 = vpop.f32.mrf.mxu0
    %v5002 = vadd.f32 %v4989, %v5001
    %v5003 = vpop.f32.mrf.mxu0
    %5004 = vdwg.mxu0
    %v5005 = vmax.f32 %v4274, 0.0
    %v5006 = vmax.f32 %v4378, 0.0
    %v5007 = vmax.f32 %v4482, 0.0
    %v5008 = vmax.f32 %v4586, 0.0
    %v5009 = vmax.f32 %v4690, 0.0
    %v5010 = vmax.f32 %v4794, 0.0
    %v5011 = vmax.f32 %v4898, 0.0
    %v5012 = vmax.f32 %v5002, 0.0
    %v5013 = vpack.c.bf16 %v5005, %v5005
    %v5014 = vpack.c.bf16 %v5006, %v5006
    %v5015 = vpack.c.bf16 %v5007, %v5007
    %v5016 = vpack.c.bf16 %v5008, %v5008
    %v5017 = vpack.c.bf16 %v5009, %v5009
    %v5018 = vpack.c.bf16 %v5010, %v5010
    %v5019 = vpack.c.bf16 %v5011, %v5011
    %v5020 = vpack.c.bf16 %v5012, %v5012
    %v5021 = vld [vmem:[%s6] sm:$0xf]
    %v5022 = vld [vmem:[%s6 + $0x4] sm:$0xf]
    %v5023 = vld [vmem:[%s6 + $0x8] sm:$0xf]
    %v5024 = vld [vmem:[%s6 + $0xc] sm:$0xf]
    %v5025 = vld [vmem:[%s6 + $0x10] sm:$0xf]
    %v5026 = vld [vmem:[%s6 + $0x14] sm:$0xf]
    %v5027 = vld [vmem:[%s6 + $0x18] sm:$0xf]
    %v5028 = vld [vmem:[%s6 + $0x1c] sm:$0xf]
    %v5029 = vld [vmem:[%s6 + $0x20] sm:$0xf]
    %v5030 = vld [vmem:[%s6 + $0x24] sm:$0xf]
    %v5031 = vld [vmem:[%s6 + $0x28] sm:$0xf]
    %v5032 = vld [vmem:[%s6 + $0x2c] sm:$0xf]
    %v5033 = vld [vmem:[%s6 + $0x30] sm:$0xf]
    %v5034 = vld [vmem:[%s6 + $0x34] sm:$0xf]
    %v5035 = vld [vmem:[%s6 + $0x38] sm:$0xf]
    %v5036 = vld [vmem:[%s6 + $0x3c] sm:$0xf]
    %v5037 = vld [vmem:[%s6 + $0x40] sm:$0xf]
    %v5038 = vld [vmem:[%s6 + $0x44] sm:$0xf]
    %v5039 = vld [vmem:[%s6 + $0x48] sm:$0xf]
    %v5040 = vld [vmem:[%s6 + $0x4c] sm:$0xf]
    %v5041 = vld [vmem:[%s6 + $0x50] sm:$0xf]
    %v5042 = vld [vmem:[%s6 + $0x54] sm:$0xf]
    %v5043 = vld [vmem:[%s6 + $0x58] sm:$0xf]
    %v5044 = vld [vmem:[%s6 + $0x5c] sm:$0xf]
    %v5045 = vld [vmem:[%s6 + $0x60] sm:$0xf]
    %v5046 = vld [vmem:[%s6 + $0x64] sm:$0xf]
    %v5047 = vld [vmem:[%s6 + $0x68] sm:$0xf]
    %v5048 = vld [vmem:[%s6 + $0x6c] sm:$0xf]
    %v5049 = vld [vmem:[%s6 + $0x70] sm:$0xf]
    %v5050 = vld [vmem:[%s6 + $0x74] sm:$0xf]
    %v5051 = vld [vmem:[%s6 + $0x78] sm:$0xf]
    %v5052 = vld [vmem:[%s6 + $0x7c] sm:$0xf]
    %v5053 = vld [vmem:[%s6 + $0x80] sm:$0xf]
    %v5054 = vld [vmem:[%s6 + $0x84] sm:$0xf]
    %v5055 = vld [vmem:[%s6 + $0x88] sm:$0xf]
    %v5056 = vld [vmem:[%s6 + $0x8c] sm:$0xf]
    %v5057 = vld [vmem:[%s6 + $0x90] sm:$0xf]
    %v5058 = vld [vmem:[%s6 + $0x94] sm:$0xf]
    %v5059 = vld [vmem:[%s6 + $0x98] sm:$0xf]
    %v5060 = vld [vmem:[%s6 + $0x9c] sm:$0xf]
    %v5061 = vld [vmem:[%s6 + $0xa0] sm:$0xf]
    %v5062 = vld [vmem:[%s6 + $0xa4] sm:$0xf]
    %v5063 = vld [vmem:[%s6 + $0xa8] sm:$0xf]
    %v5064 = vld [vmem:[%s6 + $0xac] sm:$0xf]
    %v5065 = vld [vmem:[%s6 + $0xb0] sm:$0xf]
    %v5066 = vld [vmem:[%s6 + $0xb4] sm:$0xf]
    %v5067 = vld [vmem:[%s6 + $0xb8] sm:$0xf]
    %v5068 = vld [vmem:[%s6 + $0xbc] sm:$0xf]
    %v5069 = vld [vmem:[%s6 + $0xc0] sm:$0xf]
    %v5070 = vld [vmem:[%s6 + $0xc4] sm:$0xf]
    %v5071 = vld [vmem:[%s6 + $0xc8] sm:$0xf]
    %v5072 = vld [vmem:[%s6 + $0xcc] sm:$0xf]
    %v5073 = vld [vmem:[%s6 + $0xd0] sm:$0xf]
    %v5074 = vld [vmem:[%s6 + $0xd4] sm:$0xf]
    %v5075 = vld [vmem:[%s6 + $0xd8] sm:$0xf]
    %v5076 = vld [vmem:[%s6 + $0xdc] sm:$0xf]
    %v5077 = vld [vmem:[%s6 + $0xe0] sm:$0xf]
    %v5078 = vld [vmem:[%s6 + $0xe4] sm:$0xf]
    %v5079 = vld [vmem:[%s6 + $0xe8] sm:$0xf]
    %v5080 = vld [vmem:[%s6 + $0xec] sm:$0xf]
    %v5081 = vld [vmem:[%s6 + $0xf0] sm:$0xf]
    %v5082 = vld [vmem:[%s6 + $0xf4] sm:$0xf]
    %v5083 = vld [vmem:[%s6 + $0xf8] sm:$0xf]
    %v5084 = vld [vmem:[%s6 + $0xfc] sm:$0xf]
    %v5085 = vld [vmem:[%s6 + $0x100] sm:$0xf]
    %v5086 = vld [vmem:[%s6 + $0x104] sm:$0xf]
    %v5087 = vld [vmem:[%s6 + $0x108] sm:$0xf]
    %v5088 = vld [vmem:[%s6 + $0x10c] sm:$0xf]
    %v5089 = vld [vmem:[%s6 + $0x110] sm:$0xf]
    %v5090 = vld [vmem:[%s6 + $0x114] sm:$0xf]
    %v5091 = vld [vmem:[%s6 + $0x118] sm:$0xf]
    %v5092 = vld [vmem:[%s6 + $0x11c] sm:$0xf]
    %v5093 = vld [vmem:[%s6 + $0x120] sm:$0xf]
    %v5094 = vld [vmem:[%s6 + $0x124] sm:$0xf]
    %v5095 = vld [vmem:[%s6 + $0x128] sm:$0xf]
    %v5096 = vld [vmem:[%s6 + $0x12c] sm:$0xf]
    %v5097 = vld [vmem:[%s6 + $0x130] sm:$0xf]
    %v5098 = vld [vmem:[%s6 + $0x134] sm:$0xf]
    %v5099 = vld [vmem:[%s6 + $0x138] sm:$0xf]
    %v5100 = vld [vmem:[%s6 + $0x13c] sm:$0xf]
    %v5101 = vld [vmem:[%s6 + $0x140] sm:$0xf]
    %v5102 = vld [vmem:[%s6 + $0x144] sm:$0xf]
    %v5103 = vld [vmem:[%s6 + $0x148] sm:$0xf]
    %v5104 = vld [vmem:[%s6 + $0x14c] sm:$0xf]
    %v5105 = vld [vmem:[%s6 + $0x150] sm:$0xf]
    %v5106 = vld [vmem:[%s6 + $0x154] sm:$0xf]
    %v5107 = vld [vmem:[%s6 + $0x158] sm:$0xf]
    %v5108 = vld [vmem:[%s6 + $0x15c] sm:$0xf]
    %v5109 = vld [vmem:[%s6 + $0x160] sm:$0xf]
    %v5110 = vld [vmem:[%s6 + $0x164] sm:$0xf]
    %v5111 = vld [vmem:[%s6 + $0x168] sm:$0xf]
    %v5112 = vld [vmem:[%s6 + $0x16c] sm:$0xf]
    %v5113 = vld [vmem:[%s6 + $0x170] sm:$0xf]
    %v5114 = vld [vmem:[%s6 + $0x174] sm:$0xf]
    %v5115 = vld [vmem:[%s6 + $0x178] sm:$0xf]
    %v5116 = vld [vmem:[%s6 + $0x17c] sm:$0xf]
    %v5117 = vld [vmem:[%s6 + $0x180] sm:$0xf]
    %v5118 = vld [vmem:[%s6 + $0x184] sm:$0xf]
    %v5119 = vld [vmem:[%s6 + $0x188] sm:$0xf]
    %v5120 = vld [vmem:[%s6 + $0x18c] sm:$0xf]
    %v5121 = vld [vmem:[%s6 + $0x190] sm:$0xf]
    %v5122 = vld [vmem:[%s6 + $0x194] sm:$0xf]
    %v5123 = vld [vmem:[%s6 + $0x198] sm:$0xf]
    %v5124 = vld [vmem:[%s6 + $0x19c] sm:$0xf]
    %v5125 = vld [vmem:[%s6 + $0x1a0] sm:$0xf]
    %v5126 = vld [vmem:[%s6 + $0x1a4] sm:$0xf]
    %v5127 = vld [vmem:[%s6 + $0x1a8] sm:$0xf]
    %v5128 = vld [vmem:[%s6 + $0x1ac] sm:$0xf]
    %v5129 = vld [vmem:[%s6 + $0x1b0] sm:$0xf]
    %v5130 = vld [vmem:[%s6 + $0x1b4] sm:$0xf]
    %v5131 = vld [vmem:[%s6 + $0x1b8] sm:$0xf]
    %v5132 = vld [vmem:[%s6 + $0x1bc] sm:$0xf]
    %v5133 = vld [vmem:[%s6 + $0x1c0] sm:$0xf]
    %v5134 = vld [vmem:[%s6 + $0x1c4] sm:$0xf]
    %v5135 = vld [vmem:[%s6 + $0x1c8] sm:$0xf]
    %v5136 = vld [vmem:[%s6 + $0x1cc] sm:$0xf]
    %v5137 = vld [vmem:[%s6 + $0x1d0] sm:$0xf]
    %v5138 = vld [vmem:[%s6 + $0x1d4] sm:$0xf]
    %v5139 = vld [vmem:[%s6 + $0x1d8] sm:$0xf]
    %v5140 = vld [vmem:[%s6 + $0x1dc] sm:$0xf]
    %v5141 = vld [vmem:[%s6 + $0x1e0] sm:$0xf]
    %v5142 = vld [vmem:[%s6 + $0x1e4] sm:$0xf]
    %v5143 = vld [vmem:[%s6 + $0x1e8] sm:$0xf]
    %v5144 = vld [vmem:[%s6 + $0x1ec] sm:$0xf]
    %v5145 = vld [vmem:[%s6 + $0x1f0] sm:$0xf]
    %v5146 = vld [vmem:[%s6 + $0x1f4] sm:$0xf]
    %v5147 = vld [vmem:[%s6 + $0x1f8] sm:$0xf]
    %v5148 = vld [vmem:[%s6 + $0x1fc] sm:$0xf]
    %v5149 = vperm.slane %v47, 0
    %v5278 = vunpack.c.l.b16 %v5021
    %v5279 = vunpack.c.l.b16 %v5022
    %v5280 = vunpack.c.l.b16 %v5023
    %v5281 = vunpack.c.l.b16 %v5024
    %v5282 = vunpack.c.l.b16 %v5025
    %v5283 = vunpack.c.l.b16 %v5026
    %v5284 = vunpack.c.l.b16 %v5027
    %v5285 = vunpack.c.l.b16 %v5028
    %v5286 = vunpack.c.l.b16 %v5029
    %v5287 = vunpack.c.l.b16 %v5030
    %v5288 = vunpack.c.l.b16 %v5031
    %v5289 = vunpack.c.l.b16 %v5032
    %v5290 = vunpack.c.l.b16 %v5033
    %v5291 = vunpack.c.l.b16 %v5034
    %v5292 = vunpack.c.l.b16 %v5035
    %v5293 = vunpack.c.l.b16 %v5036
    %v5294 = vunpack.c.l.b16 %v5037
    %v5295 = vunpack.c.l.b16 %v5038
    %v5296 = vunpack.c.l.b16 %v5039
    %v5297 = vunpack.c.l.b16 %v5040
    %v5298 = vunpack.c.l.b16 %v5041
    %v5299 = vunpack.c.l.b16 %v5042
    %v5300 = vunpack.c.l.b16 %v5043
    %v5301 = vunpack.c.l.b16 %v5044
    %v5302 = vunpack.c.l.b16 %v5045
    %v5303 = vunpack.c.l.b16 %v5046
    %v5304 = vunpack.c.l.b16 %v5047
    %v5305 = vunpack.c.l.b16 %v5048
    %v5306 = vunpack.c.l.b16 %v5049
    %v5307 = vunpack.c.l.b16 %v5050
    %v5308 = vunpack.c.l.b16 %v5051
    %v5309 = vunpack.c.l.b16 %v5052
    %v5310 = vunpack.c.l.b16 %v5053
    %v5311 = vunpack.c.l.b16 %v5054
    %v5312 = vunpack.c.l.b16 %v5055
    %v5313 = vunpack.c.l.b16 %v5056
    %v5314 = vunpack.c.l.b16 %v5057
    %v5315 = vunpack.c.l.b16 %v5058
    %v5316 = vunpack.c.l.b16 %v5059
    %v5317 = vunpack.c.l.b16 %v5060
    %v5318 = vunpack.c.l.b16 %v5061
    %v5319 = vunpack.c.l.b16 %v5062
    %v5320 = vunpack.c.l.b16 %v5063
    %v5321 = vunpack.c.l.b16 %v5064
    %v5322 = vunpack.c.l.b16 %v5065
    %v5323 = vunpack.c.l.b16 %v5066
    %v5324 = vunpack.c.l.b16 %v5067
    %v5325 = vunpack.c.l.b16 %v5068
    %v5326 = vunpack.c.l.b16 %v5069
    %v5327 = vunpack.c.l.b16 %v5070
    %v5328 = vunpack.c.l.b16 %v5071
    %v5329 = vunpack.c.l.b16 %v5072
    %v5330 = vunpack.c.l.b16 %v5073
    %v5331 = vunpack.c.l.b16 %v5074
    %v5332 = vunpack.c.l.b16 %v5075
    %v5333 = vunpack.c.l.b16 %v5076
    %v5334 = vunpack.c.l.b16 %v5077
    %v5335 = vunpack.c.l.b16 %v5078
    %v5336 = vunpack.c.l.b16 %v5079
    %v5337 = vunpack.c.l.b16 %v5080
    %v5338 = vunpack.c.l.b16 %v5081
    %v5339 = vunpack.c.l.b16 %v5082
    %v5340 = vunpack.c.l.b16 %v5083
    %v5341 = vunpack.c.l.b16 %v5084
    %v5342 = vunpack.c.l.b16 %v5085
    %v5343 = vunpack.c.l.b16 %v5086
    %v5344 = vunpack.c.l.b16 %v5087
    %v5345 = vunpack.c.l.b16 %v5088
    %v5346 = vunpack.c.l.b16 %v5089
    %v5347 = vunpack.c.l.b16 %v5090
    %v5348 = vunpack.c.l.b16 %v5091
    %v5349 = vunpack.c.l.b16 %v5092
    %v5350 = vunpack.c.l.b16 %v5093
    %v5351 = vunpack.c.l.b16 %v5094
    %v5352 = vunpack.c.l.b16 %v5095
    %v5353 = vunpack.c.l.b16 %v5096
    %v5354 = vunpack.c.l.b16 %v5097
    %v5355 = vunpack.c.l.b16 %v5098
    %v5356 = vunpack.c.l.b16 %v5099
    %v5357 = vunpack.c.l.b16 %v5100
    %v5358 = vunpack.c.l.b16 %v5101
    %v5359 = vunpack.c.l.b16 %v5102
    %v5360 = vunpack.c.l.b16 %v5103
    %v5361 = vunpack.c.l.b16 %v5104
    %v5362 = vunpack.c.l.b16 %v5105
    %v5363 = vunpack.c.l.b16 %v5106
    %v5364 = vunpack.c.l.b16 %v5107
    %v5365 = vunpack.c.l.b16 %v5108
    %v5366 = vunpack.c.l.b16 %v5109
    %v5367 = vunpack.c.l.b16 %v5110
    %v5368 = vunpack.c.l.b16 %v5111
    %v5369 = vunpack.c.l.b16 %v5112
    %v5370 = vunpack.c.l.b16 %v5113
    %v5371 = vunpack.c.l.b16 %v5114
    %v5372 = vunpack.c.l.b16 %v5115
    %v5373 = vunpack.c.l.b16 %v5116
    %v5374 = vunpack.c.l.b16 %v5117
    %v5375 = vunpack.c.l.b16 %v5118
    %v5376 = vunpack.c.l.b16 %v5119
    %v5377 = vunpack.c.l.b16 %v5120
    %v5378 = vunpack.c.l.b16 %v5121
    %v5379 = vunpack.c.l.b16 %v5122
    %v5380 = vunpack.c.l.b16 %v5123
    %v5381 = vunpack.c.l.b16 %v5124
    %v5382 = vunpack.c.l.b16 %v5125
    %v5383 = vunpack.c.l.b16 %v5126
    %v5384 = vunpack.c.l.b16 %v5127
    %v5385 = vunpack.c.l.b16 %v5128
    %v5386 = vunpack.c.l.b16 %v5129
    %v5387 = vunpack.c.l.b16 %v5130
    %v5388 = vunpack.c.l.b16 %v5131
    %v5389 = vunpack.c.l.b16 %v5132
    %v5390 = vunpack.c.l.b16 %v5133
    %v5391 = vunpack.c.l.b16 %v5134
    %v5392 = vunpack.c.l.b16 %v5135
    %v5393 = vunpack.c.l.b16 %v5136
    %v5394 = vunpack.c.l.b16 %v5137
    %v5395 = vunpack.c.l.b16 %v5138
    %v5396 = vunpack.c.l.b16 %v5139
    %v5397 = vunpack.c.l.b16 %v5140
    %v5398 = vunpack.c.l.b16 %v5141
    %v5399 = vunpack.c.l.b16 %v5142
    %v5400 = vunpack.c.l.b16 %v5143
    %v5401 = vunpack.c.l.b16 %v5144
    %v5402 = vunpack.c.l.b16 %v5145
    %v5403 = vunpack.c.l.b16 %v5146
    %v5404 = vunpack.c.l.b16 %v5147
    %v5405 = vunpack.c.l.b16 %v5148
    %v5406 = vpack.c.b16 %v5279, %v5278
    %v5407 = vpack.c.b16 %v5281, %v5280
    %v5408 = vpack.c.b16 %v5283, %v5282
    %v5409 = vpack.c.b16 %v5285, %v5284
    %v5410 = vpack.c.b16 %v5287, %v5286
    %v5411 = vpack.c.b16 %v5289, %v5288
    %v5412 = vpack.c.b16 %v5291, %v5290
    %v5413 = vpack.c.b16 %v5293, %v5292
    %v5414 = vpack.c.b16 %v5295, %v5294
    %v5415 = vpack.c.b16 %v5297, %v5296
    %v5416 = vpack.c.b16 %v5299, %v5298
    %v5417 = vpack.c.b16 %v5301, %v5300
    %v5418 = vpack.c.b16 %v5303, %v5302
    %v5419 = vpack.c.b16 %v5305, %v5304
    %v5420 = vpack.c.b16 %v5307, %v5306
    %v5421 = vpack.c.b16 %v5309, %v5308
    %v5422 = vpack.c.b16 %v5311, %v5310
    %v5423 = vpack.c.b16 %v5313, %v5312
    %v5424 = vpack.c.b16 %v5315, %v5314
    %v5425 = vpack.c.b16 %v5317, %v5316
    %v5426 = vpack.c.b16 %v5319, %v5318
    %v5427 = vpack.c.b16 %v5321, %v5320
    %v5428 = vpack.c.b16 %v5323, %v5322
    %v5429 = vpack.c.b16 %v5325, %v5324
    %v5430 = vpack.c.b16 %v5327, %v5326
    %v5431 = vpack.c.b16 %v5329, %v5328
    %v5432 = vpack.c.b16 %v5331, %v5330
    %v5433 = vpack.c.b16 %v5333, %v5332
    %v5434 = vpack.c.b16 %v5335, %v5334
    %v5435 = vpack.c.b16 %v5337, %v5336
    %v5436 = vpack.c.b16 %v5339, %v5338
    %v5437 = vpack.c.b16 %v5341, %v5340
    %v5438 = vpack.c.b16 %v5343, %v5342
    %v5439 = vpack.c.b16 %v5345, %v5344
    %v5440 = vpack.c.b16 %v5347, %v5346
    %v5441 = vpack.c.b16 %v5349, %v5348
    %v5442 = vpack.c.b16 %v5351, %v5350
    %v5443 = vpack.c.b16 %v5353, %v5352
    %v5444 = vpack.c.b16 %v5355, %v5354
    %v5445 = vpack.c.b16 %v5357, %v5356
    %v5446 = vpack.c.b16 %v5359, %v5358
    %v5447 = vpack.c.b16 %v5361, %v5360
    %v5448 = vpack.c.b16 %v5363, %v5362
    %v5449 = vpack.c.b16 %v5365, %v5364
    %v5450 = vpack.c.b16 %v5367, %v5366
    %v5451 = vpack.c.b16 %v5369, %v5368
    %v5452 = vpack.c.b16 %v5371, %v5370
    %v5453 = vpack.c.b16 %v5373, %v5372
    %v5454 = vpack.c.b16 %v5375, %v5374
    %v5455 = vpack.c.b16 %v5377, %v5376
    %v5456 = vpack.c.b16 %v5379, %v5378
    %v5457 = vpack.c.b16 %v5381, %v5380
    %v5458 = vpack.c.b16 %v5383, %v5382
    %v5459 = vpack.c.b16 %v5385, %v5384
    %v5460 = vpack.c.b16 %v5387, %v5386
    %v5461 = vpack.c.b16 %v5389, %v5388
    %v5462 = vpack.c.b16 %v5391, %v5390
    %v5463 = vpack.c.b16 %v5393, %v5392
    %v5464 = vpack.c.b16 %v5395, %v5394
    %v5465 = vpack.c.b16 %v5397, %v5396
    %v5466 = vpack.c.b16 %v5399, %v5398
    %v5467 = vpack.c.b16 %v5401, %v5400
    %v5468 = vpack.c.b16 %v5403, %v5402
    %v5469 = vpack.c.b16 %v5405, %v5404
    %5534 = vmatpush.bf16.msra.mxu0 %v5413
    %5535 = vmatpush.bf16.msra.mxu0 %v5412
    %5536 = vmatpush.bf16.msra.mxu0 %v5411
    %5537 = vmatpush.bf16.msra.mxu0 %v5410
    %5538 = vmatpush.bf16.msra.mxu0 %v5409
    %5539 = vmatpush.bf16.msra.mxu0 %v5408
    %5540 = vmatpush.bf16.msra.mxu0 %v5407
    %5541 = vmatpush.bf16.msra.mxu0 %v5406
    %5542 = vmatmul.bf16.gmra.mxu0 %v5013
    %v5543 = vpop.f32.mrf.mxu0
    %v5544 = vadd.f32 %v5149, %v5543
    %v5545 = vpop.f32.mrf.mxu0
    %5546 = vdwg.mxu0
    %5547 = vmatpush.bf16.msra.mxu0 %v5421
    %5548 = vmatpush.bf16.msra.mxu0 %v5420
    %5549 = vmatpush.bf16.msra.mxu0 %v5419
    %5550 = vmatpush.bf16.msra.mxu0 %v5418
    %5551 = vmatpush.bf16.msra.mxu0 %v5417
    %5552 = vmatpush.bf16.msra.mxu0 %v5416
    %5553 = vmatpush.bf16.msra.mxu0 %v5415
    %5554 = vmatpush.bf16.msra.mxu0 %v5414
    %5555 = vmatmul.bf16.gmra.mxu0 %v5014
    %v5556 = vpop.f32.mrf.mxu0
    %v5557 = vadd.f32 %v5544, %v5556
    %v5558 = vpop.f32.mrf.mxu0
    %5559 = vdwg.mxu0
    %5560 = vmatpush.bf16.msra.mxu0 %v5429
    %5561 = vmatpush.bf16.msra.mxu0 %v5428
    %5562 = vmatpush.bf16.msra.mxu0 %v5427
    %5563 = vmatpush.bf16.msra.mxu0 %v5426
    %5564 = vmatpush.bf16.msra.mxu0 %v5425
    %5565 = vmatpush.bf16.msra.mxu0 %v5424
    %5566 = vmatpush.bf16.msra.mxu0 %v5423
    %5567 = vmatpush.bf16.msra.mxu0 %v5422
    %5568 = vmatmul.bf16.gmra.mxu0 %v5015
    %v5569 = vpop.f32.mrf.mxu0
    %v5570 = vadd.f32 %v5557, %v5569
    %v5571 = vpop.f32.mrf.mxu0
    %5572 = vdwg.mxu0
    %5573 = vmatpush.bf16.msra.mxu0 %v5437
    %5574 = vmatpush.bf16.msra.mxu0 %v5436
    %5575 = vmatpush.bf16.msra.mxu0 %v5435
    %5576 = vmatpush.bf16.msra.mxu0 %v5434
    %5577 = vmatpush.bf16.msra.mxu0 %v5433
    %5578 = vmatpush.bf16.msra.mxu0 %v5432
    %5579 = vmatpush.bf16.msra.mxu0 %v5431
    %5580 = vmatpush.bf16.msra.mxu0 %v5430
    %5581 = vmatmul.bf16.gmra.mxu0 %v5016
    %v5582 = vpop.f32.mrf.mxu0
    %v5583 = vadd.f32 %v5570, %v5582
    %v5584 = vpop.f32.mrf.mxu0
    %5585 = vdwg.mxu0
    %5586 = vmatpush.bf16.msra.mxu0 %v5445
    %5587 = vmatpush.bf16.msra.mxu0 %v5444
    %5588 = vmatpush.bf16.msra.mxu0 %v5443
    %5589 = vmatpush.bf16.msra.mxu0 %v5442
    %5590 = vmatpush.bf16.msra.mxu0 %v5441
    %5591 = vmatpush.bf16.msra.mxu0 %v5440
    %5592 = vmatpush.bf16.msra.mxu0 %v5439
    %5593 = vmatpush.bf16.msra.mxu0 %v5438
    %5594 = vmatmul.bf16.gmra.mxu0 %v5017
    %v5595 = vpop.f32.mrf.mxu0
    %v5596 = vadd.f32 %v5583, %v5595
    %v5597 = vpop.f32.mrf.mxu0
    %5598 = vdwg.mxu0
    %5599 = vmatpush.bf16.msra.mxu0 %v5453
    %5600 = vmatpush.bf16.msra.mxu0 %v5452
    %5601 = vmatpush.bf16.msra.mxu0 %v5451
    %5602 = vmatpush.bf16.msra.mxu0 %v5450
    %5603 = vmatpush.bf16.msra.mxu0 %v5449
    %5604 = vmatpush.bf16.msra.mxu0 %v5448
    %5605 = vmatpush.bf16.msra.mxu0 %v5447
    %5606 = vmatpush.bf16.msra.mxu0 %v5446
    %5607 = vmatmul.bf16.gmra.mxu0 %v5018
    %v5608 = vpop.f32.mrf.mxu0
    %v5609 = vadd.f32 %v5596, %v5608
    %v5610 = vpop.f32.mrf.mxu0
    %5611 = vdwg.mxu0
    %5612 = vmatpush.bf16.msra.mxu0 %v5461
    %5613 = vmatpush.bf16.msra.mxu0 %v5460
    %5614 = vmatpush.bf16.msra.mxu0 %v5459
    %5615 = vmatpush.bf16.msra.mxu0 %v5458
    %5616 = vmatpush.bf16.msra.mxu0 %v5457
    %5617 = vmatpush.bf16.msra.mxu0 %v5456
    %5618 = vmatpush.bf16.msra.mxu0 %v5455
    %5619 = vmatpush.bf16.msra.mxu0 %v5454
    %5620 = vmatmul.bf16.gmra.mxu0 %v5019
    %v5621 = vpop.f32.mrf.mxu0
    %v5622 = vadd.f32 %v5609, %v5621
    %v5623 = vpop.f32.mrf.mxu0
    %5624 = vdwg.mxu0
    %5625 = vmatpush.bf16.msra.mxu0 %v5469
    %5626 = vmatpush.bf16.msra.mxu0 %v5468
    %5627 = vmatpush.bf16.msra.mxu0 %v5467
    %5628 = vmatpush.bf16.msra.mxu0 %v5466
    %5629 = vmatpush.bf16.msra.mxu0 %v5465
    %5630 = vmatpush.bf16.msra.mxu0 %v5464
    %5631 = vmatpush.bf16.msra.mxu0 %v5463
    %5632 = vmatpush.bf16.msra.mxu0 %v5462
    %5633 = vmatmul.bf16.gmra.mxu0 %v5020
    %v5634 = vpop.f32.mrf.mxu0
    %v5635 = vadd.f32 %v5622, %v5634
    %v5636 = vpop.f32.mrf.mxu0
    %5637 = vdwg.mxu0
    %v5638 = vpack.c.bf16 %v5635, %v5635
    %v5639 = vperm.slane %v47, 1
    %v5641 = vsel %vm173, %v5638, 0
    %5643 = vmatpush.bf16.msra.mxu0 0
    %5644 = vmatpush.bf16.msra.mxu0 0
    %5645 = vmatpush.bf16.msra.mxu0 0
    %5646 = vmatpush.bf16.msra.mxu0 0
    %5647 = vmatpush.bf16.msra.mxu0 0
    %5648 = vmatpush.bf16.msra.mxu0 0
    %5649 = vmatpush.bf16.msra.mxu0 %v55
    %5650 = vmatpush.bf16.msra.mxu0 %v54
    %5651 = vmatmul.bf16.gmra.mxu0 %v5641
    %v5652 = vpop.f32.mrf.mxu0
    %v5653 = vadd.f32 %v5639, %v5652
    %v5654 = vpop.f32.mrf.mxu0
    %5655 = vdwg.mxu0
    %v5656 = vmax.f32 %v5653, 0.0
    %v5657 = vpack.c.bf16 %v5656, %v5656
    %v5658 = vperm.slane %v47, 2
    %vm5659 = vcmask 64512
    %v5661 = vsel %vm5659, %v5657, 0
    %vm5663 = vcmask 1043456
    %v5665 = vsel %vm5663, %v56, 0
    %5667 = vmatpush.bf16.msra.mxu0 0
    %5668 = vmatpush.bf16.msra.mxu0 0
    %5669 = vmatpush.bf16.msra.mxu0 0
    %5670 = vmatpush.bf16.msra.mxu0 0
    %5671 = vmatpush.bf16.msra.mxu0 0
    %5672 = vmatpush.bf16.msra.mxu0 0
    %5673 = vmatpush.bf16.msra.mxu0 0
    %5674 = vmatpush.bf16.msra.mxu0 %v5665
    %5675 = vmatmul.bf16.gmra.mxu0 %v5661
    %v5676 = vpop.f32.mrf.mxu0
    %v5677 = vadd.f32 %v5658, %v5676
    %v5678 = vpop.f32.mrf.mxu0
    %5679 = vdwg.mxu0
    %v5680 = vmax.f32 %v5677, 0.0
    %v5681 = vpack.c.bf16 %v5680, %v5680
    %v5682 = vperm.slane %v47, 3
    %v5684 = vsel %vm5659, %v5681, 0
    %v5687 = vsel %vm5663, %v57, 0
    %5689 = vmatpush.bf16.msra.mxu0 0
    %5690 = vmatpush.bf16.msra.mxu0 0
    %5691 = vmatpush.bf16.msra.mxu0 0
    %5692 = vmatpush.bf16.msra.mxu0 0
    %5693 = vmatpush.bf16.msra.mxu0 0
    %5694 = vmatpush.bf16.msra.mxu0 0
    %5695 = vmatpush.bf16.msra.mxu0 0
    %5696 = vmatpush.bf16.msra.mxu0 %v5687
    %5697 = vmatmul.bf16.gmra.mxu0 %v5684
    %v5698 = vpop.f32.mrf.mxu0
    %v5699 = vadd.f32 %v5682, %v5698
    %v5700 = vpop.f32.mrf.mxu0
    %5701 = vdwg.mxu0
    %v5702 = vlaneseq
    %v5703 = vand.u32 %v5702, 127
    %vm5704 = vcmp.eq.s32.totalorder %v5703, 0
    %vm5705 = vcmp.ge.s32.totalorder %v5703, 1
    %vm5706 = vcmp.le.s32.totalorder %v5703, 8
    %vm5707 = vmand %vm5705, %vm5706
    %v5708 = vxor.u32 %v5699, 2147483648
    %v5709 = vmul.f32 %v5708, 1.442695
    %v5710 = vpow.pop %v5709
    %v5711 = vadd.f32 %v5710, 1.0
    %v5712 = vrcp.pop %v5711
    %v5713 = vmul.f32 %v5711, %v5712
    %v5714 = vsub.f32 1.0, %v5713
    %v5715 = vmul.f32 %v5712, %v5714
    %v5716 = vadd.f32 %v5712, %v5715
    %vm5717 = vweird.f32 %v5711
    %vm5718 = vweird.f32 %v5712
    %vm5719 = vmor %vm5717, %vm5718
    %v5720 = vsel %vm5719, %v5712, %v5716
    %v5721 = vand.u32 2147483647, %v5711
    %vm5722 = vcmp.eq.f32.partialorder %v5721, 8.507059e+37
    %v5723 = vand.u32 %v5711, 2147483648
    %v5724 = vor.u32 1.1754944e-38, %v5723
    %v5725 = vsel %vm5722, %v5724, %v5720
    %v5726 = vmul.f32 1.0, %v5725
    %v5727 = vsel %vm5707, %v5699, -inf
    %5728 = vmax.xlane.f32.xlu0 %v5727
    %v5729 = vpop.xlane.xlu0 %5728
    %v5730 = vsub.f32 %v5727, %v5729
    %v5731 = vmul.f32 %v5730, 1.442695
    %v5732 = vpow.pop %v5731
    %v5733 = vsel %vm5707, %v5732, 0.0
    %5734 = vadd.xlane.f32.xlu0 %v5733
    %v5735 = vpop.xlane.xlu0 %5734
    %v5736 = vrcp.pop %v5735
    %v5737 = vmul.f32 %v5735, %v5736
    %v5738 = vsub.f32 1.0, %v5737
    %v5739 = vmul.f32 %v5736, %v5738
    %v5740 = vadd.f32 %v5736, %v5739
    %vm5741 = vweird.f32 %v5735
    %vm5742 = vweird.f32 %v5736
    %vm5743 = vmor %vm5741, %vm5742
    %v5744 = vsel %vm5743, %v5736, %v5740
    %v5745 = vand.u32 2147483647, %v5735
    %vm5746 = vcmp.eq.f32.partialorder %v5745, 8.507059e+37
    %v5747 = vand.u32 %v5735, 2147483648
    %v5748 = vor.u32 1.1754944e-38, %v5747
    %v5749 = vsel %vm5746, %v5748, %v5744
    %v5750 = vmul.f32 %v5733, %v5749
    %v5751 = vsel %vm5704, %v5726, %v5750
    %5752 = vst [vmem:[#allocation5] sm:$0xff] %v5751
    // Predicated region
    $region38: #{tpu_custom_call.1} parent=1 // pred_check
      _
    $region39: #{tpu_custom_call.1} parent=1 // pred_check_branch
      %5754 = sbr.rel (0) target = $region41
    $region40: #{tpu_custom_call.1} parent=1 // pred_region
      %5756 = vsyncadd [#allocation4], 0
      %s5758 = sshll.u32 [#allocation5], 4
      %s5759 = int_to_ptr.vmem [resolvable:$true] %s5758
      %s5760 = sshll.u32 %s8, 4
      %s5761 = int_to_ptr.hbm [resolvable:$true] %s5760
      %5763 = dma.vmem_to_hbm [thread:$0]  %s5759, 128, %s5761, [#allocation4]
    $region41: #{tpu_custom_call.1} parent=1 // pred_fallthru
      _
    // Predicated region
    $region42: #{tpu_custom_call.1} parent=1 // pred_check
      _
    $region43: #{tpu_custom_call.1} parent=1 // pred_check_branch
      %5765 = sbr.rel (0) target = $region45
    $region44: #{tpu_custom_call.1} parent=1 // pred_region
      %5767 = dma.done [#allocation4], 128
    $region45: #{tpu_custom_call.1} parent=1 // pred_fallthru
      _
    %5768 = vsyncpa [#allocation3], 1
    %5769 = vsyncpa [#allocation4], 1

</llo_original>
